<compile_context>
chip_gen: v7x
topology: tpu7x:2x2x1
jax: 0.10.0
libtpu: 0.0.40
codegen_flags: <defaults>
</compile_context>

<pallas_src>
import functools

import jax
import jax.numpy as jnp
import numpy as np
from jax import lax
from jax.experimental import pallas as pl
from jax.experimental.pallas import tpu as pltpu

_SUB = 8  # images per inner sub-tile: keeps every (SUB, HW) array sublane-dense


def _resblock_kernel(C, W_img, HW, n_sub,
                     x_ref, mask_ref, w1_ref, b1_ref, w2_ref, b2_ref, o_ref):
    """One grid step over Bb = n_sub * _SUB images (channel-major layout).

    x_ref:    (C, Bb, HW)    VMEM  input, channel-major, spatial flattened
    mask_ref: (9, _SUB, HW)  VMEM  per-tap validity masks (pre-broadcast)
    w*_ref:   (9*C*C,)       SMEM  conv weights, flat [tap, cin, cout]
    b*_ref:   (C,)           SMEM  conv bias
    o_ref:    (C, Bb, HW)    VMEM  output
    """

    def conv3x3(in_ch, w_ref, b_ref):
        # in_ch: list of C arrays (SUB, HW). Returns conv + bias (no activation).
        acc = [jnp.full((_SUB, HW), b_ref[co], dtype=jnp.float32)
               for co in range(C)]
        for t in range(9):
            dy, dx = t // 3 - 1, t % 3 - 1
            k = dy * W_img + dx                    # flat spatial offset of tap
            if k == 0:
                shifted = in_ch                    # center tap: no shift/mask
            else:
                m = mask_ref[t]                    # (SUB, HW) full-vreg mask
                shift = (-k) % HW                  # roll so out[i] sees in[i+k]
                shifted = [pltpu.roll(in_ch[ci], shift, axis=1) * m
                           for ci in range(C)]
            for ci in range(C):
                src = shifted[ci]
                base = (t * C + ci) * C
                for co in range(C):
                    # broadcast-scalar FMA on the VPU (weight sld hides under VALU)
                    acc[co] = acc[co] + w_ref[base + co] * src
        return acc

    def sub_tile(s):
        start = s * _SUB
        if not isinstance(start, int):
            start = pl.multiple_of(start, _SUB)    # aligned sublane window
        x_ch = [x_ref[ci, pl.ds(start, _SUB), :] for ci in range(C)]
        h = conv3x3(x_ch, w1_ref, b1_ref)
        h = [jnp.maximum(a, 0.0) for a in h]       # ReLU after conv1
        y = conv3x3(h, w2_ref, b2_ref)             # conv2
        for co in range(C):                        # residual add + final ReLU
            x_co = x_ref[co, pl.ds(start, _SUB), :]   # re-read (low vreg pressure)
            o_ref[co, pl.ds(start, _SUB), :] = jnp.maximum(x_co + y[co], 0.0)

    if n_sub == 1:
        sub_tile(0)
    else:
        def body(s, carry):
            sub_tile(s)
            return carry
        lax.fori_loop(0, n_sub, body, 0)


def _tap_masks(H, W, sub):
    """(9, sub, H*W) f32 masks: 1.0 where the tap's source pixel is in-bounds."""
    yy, xx = np.meshgrid(np.arange(H), np.arange(W), indexing="ij")
    yy = yy.reshape(-1)
    xx = xx.reshape(-1)
    masks = np.zeros((9, sub, H * W), np.float32)
    for t in range(9):
        dy, dx = t // 3 - 1, t % 3 - 1
        valid = ((yy + dy >= 0) & (yy + dy < H) &
                 (xx + dx >= 0) & (xx + dx < W))
        masks[t, :, :] = valid.astype(np.float32)[None, :]
    return masks


def _batch_plan(B, max_sub_per_step=16):
    """Pick (grid steps, sub-tiles per step, padded batch).

    Up to 128 images per grid step (amortizes ~0.35us step overhead); at least
    2 steps whenever the batch allows so the 'parallel' axis can shard across
    both TensorCores on v7x; batch padded to a multiple of _SUB = 8.
    """
    n_sub = -(-B // _SUB)                              # ceil(B / 8)
    n_steps = max(1, -(-n_sub // max_sub_per_step))
    if n_sub >= 2 and n_steps == 1:
        n_steps = 2
    sub_per_step = -(-n_sub // n_steps)
    B_pad = n_steps * sub_per_step * _SUB
    return n_steps, sub_per_step, B_pad


@jax.jit
def resblock_pallas(x_nchw, w1, b1, w2, b2):
    """ResBlock forward.

    x_nchw: (B, C, H, W) float32
    w1, w2: (9, C, C) float32  (tap-major conv weights, [tap, Cin, Cout])
    b1, b2: (1, C)    float32
    returns: (B, C, H, W) float32
    """
    B, C, H, W = x_nchw.shape
    HW = H * W
    n_steps, sub_per_step, B_pad = _batch_plan(B)
    Bb = sub_per_step * _SUB

    # NCHW -> (C, B, HW): channel-major so every per-channel block is a dense,
    # sublane-aligned (Bb, HW) tile inside the kernel.  Leading-dim transpose
    # is a cheap contiguous-row copy; pad batch to a multiple of 8.
    x_cbh = jnp.transpose(x_nchw.astype(jnp.float32).reshape(B, C, HW), (1, 0, 2))
    if B_pad != B:
        x_cbh = jnp.pad(x_cbh, ((0, 0), (0, B_pad - B), (0, 0)))

    masks = jnp.asarray(_tap_masks(H, W, _SUB))        # constant-folded under jit
    w1_flat = w1.reshape(-1).astype(jnp.float32)       # (9*C*C,) -> SMEM
    w2_flat = w2.reshape(-1).astype(jnp.float32)
    b1_flat = b1.reshape(-1).astype(jnp.float32)       # (C,)     -> SMEM
    b2_flat = b2.reshape(-1).astype(jnp.float32)

    kernel = functools.partial(_resblock_kernel, C, W, HW, sub_per_step)

    flops = (2 * (2 * 9 * C * C * HW) + 6 * C * HW) * B_pad
    bytes_accessed = 4 * (2 * B_pad * C * HW + 2 * 9 * C * C + 2 * C
                          + 9 * _SUB * HW)

    smem = pltpu.MemorySpace.SMEM
    out_cbh = pl.pallas_call(
        kernel,
        out_shape=jax.ShapeDtypeStruct((C, B_pad, HW), jnp.float32),
        grid=(n_steps,),
        in_specs=[
            pl.BlockSpec((C, Bb, HW), lambda b: (0, b, 0)),   # x block
            # tap masks: constant index map (could be single-buffered via
            # pipeline_mode=pl.Buffered(1); left default -- it is only 72 KiB)
            pl.BlockSpec((9, _SUB, HW), lambda b: (0, 0, 0)),
            pl.BlockSpec(memory_space=smem),                  # w1 (scalars)
            pl.BlockSpec(memory_space=smem),                  # b1
            pl.BlockSpec(memory_space=smem),                  # w2
            pl.BlockSpec(memory_space=smem),                  # b2
        ],
        out_specs=pl.BlockSpec((C, Bb, HW), lambda b: (0, b, 0)),
        compiler_params=pltpu.CompilerParams(
            dimension_semantics=("parallel",)),
        cost_estimate=pl.CostEstimate(flops=flops, transcendentals=0,
                                      bytes_accessed=bytes_accessed),
    )(x_cbh, masks, w1_flat, b1_flat, w2_flat, b2_flat)

    out = jnp.transpose(out_cbh, (1, 0, 2))[:B]
    return out.reshape(B, C, H, W)


def _conv3x3_ref(x_nhwc, w_tap, b):
    """Pure-JAX reference conv (SAME padding). w_tap: (9, Cin, Cout)."""
    C = x_nhwc.shape[-1]
    w_hwio = w_tap.reshape(3, 3, C, C)
    y = lax.conv_general_dilated(
        x_nhwc, w_hwio, window_strides=(1, 1), padding="SAME",
        dimension_numbers=("NHWC", "HWIO", "NHWC"),
        precision=lax.Precision.HIGHEST)
    return y + b.reshape(1, 1, 1, C)


def _resblock_ref(x_nchw, w1, b1, w2, b2):
    x_nhwc = jnp.transpose(x_nchw, (0, 2, 3, 1))
    y = _conv3x3_ref(x_nhwc, w1, b1)
    y = jnp.maximum(y, 0.0)
    y = _conv3x3_ref(y, w2, b2)
    out = jnp.maximum(x_nhwc + y, 0.0)
    return jnp.transpose(out, (0, 3, 1, 2))


if __name__ == "__main__":
    B, C, H, W = 2, 4, 16, 16

    key = jax.random.PRNGKey(0)
    kx, kw1, kb1, kw2, kb2 = jax.random.split(key, 5)

    # Deterministic synthetic parameters (shapes match nn.Conv2d(C, C, 3, padding=1)).
    # PyTorch weight layout is (Cout, Cin, 3, 3); we store tap-major (9, Cin, Cout),
    # i.e. w_tap[t, ci, co] == w_torch[co, ci, t // 3, t % 3].
    x = jax.random.normal(kx, (B, C, H, W), dtype=jnp.float32)
    w1 = 0.1 * jax.random.normal(kw1, (9, C, C), dtype=jnp.float32)
    b1 = 0.1 * jax.random.normal(kb1, (1, C), dtype=jnp.float32)
    w2 = 0.1 * jax.random.normal(kw2, (9, C, C), dtype=jnp.float32)
    b2 = 0.1 * jax.random.normal(kb2, (1, C), dtype=jnp.float32)

    out = resblock_pallas(x, w1, b1, w2, b2)
    out = jax.block_until_ready(out)

    ref = jax.block_until_ready(_resblock_ref(x, w1, b1, w2, b2))
    np.testing.assert_allclose(np.asarray(out), np.asarray(ref),
                               rtol=1e-4, atol=1e-4)

    print("KERNEL_OK")
</pallas_src>

<mosaic_0001>
module attributes {stable_mosaic.version = 11 : i64} {
  func.func @_resblock_kernel(%arg0: i32, %arg1: memref<4x8x256xf32, #tpu.memory_space<vmem>>, %arg2: memref<9x8x256xf32, #tpu.memory_space<vmem>>, %arg3: memref<144xf32, #tpu.memory_space<smem>>, %arg4: memref<4xf32, #tpu.memory_space<smem>>, %arg5: memref<144xf32, #tpu.memory_space<smem>>, %arg6: memref<4xf32, #tpu.memory_space<smem>>, %arg7: memref<4x8x256xf32, #tpu.memory_space<vmem>>) attributes {dimension_semantics = [#tpu.dimension_semantics<parallel>], iteration_bounds = array<i64: 1>, scalar_prefetch = 0 : i64, scratch_operands = 0 : i64, tpu.core_type = #tpu.core_type<tc>, window_params = [{transform_indices = @transform_0, window_bounds = array<i64: 4, 8, 256>}, {pipeline_mode = #tpu.pipeline_mode<synchronous>, transform_indices = @transform_1, window_bounds = array<i64: 9, 8, 256>}, {transform_indices = @transform_2, window_bounds = array<i64: 144>}, {transform_indices = @transform_3, window_bounds = array<i64: 4>}, {transform_indices = @transform_4, window_bounds = array<i64: 144>}, {transform_indices = @transform_5, window_bounds = array<i64: 4>}, {transform_indices = @transform_6, window_bounds = array<i64: 4, 8, 256>}]} {
    %c0 = arith.constant 0 : index
    %c0_0 = arith.constant 0 : index
    %c0_1 = arith.constant 0 : index
    %0 = vector.load %arg1[%c0, %c0_0, %c0_1] : memref<4x8x256xf32, #tpu.memory_space<vmem>>, vector<1x8x256xf32>
    %1 = vector.shape_cast %0 : vector<1x8x256xf32> to vector<8x256xf32>
    %c1 = arith.constant 1 : index
    %c0_2 = arith.constant 0 : index
    %c0_3 = arith.constant 0 : index
    %2 = vector.load %arg1[%c1, %c0_2, %c0_3] : memref<4x8x256xf32, #tpu.memory_space<vmem>>, vector<1x8x256xf32>
    %3 = vector.shape_cast %2 : vector<1x8x256xf32> to vector<8x256xf32>
    %c2 = arith.constant 2 : index
    %c0_4 = arith.constant 0 : index
    %c0_5 = arith.constant 0 : index
    %4 = vector.load %arg1[%c2, %c0_4, %c0_5] : memref<4x8x256xf32, #tpu.memory_space<vmem>>, vector<1x8x256xf32>
    %5 = vector.shape_cast %4 : vector<1x8x256xf32> to vector<8x256xf32>
    %c3 = arith.constant 3 : index
    %c0_6 = arith.constant 0 : index
    %c0_7 = arith.constant 0 : index
    %6 = vector.load %arg1[%c3, %c0_6, %c0_7] : memref<4x8x256xf32, #tpu.memory_space<vmem>>, vector<1x8x256xf32>
    %7 = vector.shape_cast %6 : vector<1x8x256xf32> to vector<8x256xf32>
    %c0_8 = arith.constant 0 : index
    %8 = memref.load %arg4[%c0_8] : memref<4xf32, #tpu.memory_space<smem>>
    %9 = vector.broadcast %8 : f32 to vector<8x256xf32>
    %c1_9 = arith.constant 1 : index
    %10 = memref.load %arg4[%c1_9] : memref<4xf32, #tpu.memory_space<smem>>
    %11 = vector.broadcast %10 : f32 to vector<8x256xf32>
    %c2_10 = arith.constant 2 : index
    %12 = memref.load %arg4[%c2_10] : memref<4xf32, #tpu.memory_space<smem>>
    %13 = vector.broadcast %12 : f32 to vector<8x256xf32>
    %c3_11 = arith.constant 3 : index
    %14 = memref.load %arg4[%c3_11] : memref<4xf32, #tpu.memory_space<smem>>
    %15 = vector.broadcast %14 : f32 to vector<8x256xf32>
    %c0_12 = arith.constant 0 : index
    %c0_13 = arith.constant 0 : index
    %c0_14 = arith.constant 0 : index
    %16 = vector.load %arg2[%c0_12, %c0_13, %c0_14] : memref<9x8x256xf32, #tpu.memory_space<vmem>>, vector<1x8x256xf32>
    %17 = vector.shape_cast %16 : vector<1x8x256xf32> to vector<8x256xf32>
    %c17_i32 = arith.constant 17 : i32
    %18 = tpu.dynamic_rotate %1 by %c17_i32 dim 1 : vector<8x256xf32>, i32 -> vector<8x256xf32>
    %19 = arith.mulf %18, %17 : vector<8x256xf32>
    %c17_i32_15 = arith.constant 17 : i32
    %20 = tpu.dynamic_rotate %3 by %c17_i32_15 dim 1 : vector<8x256xf32>, i32 -> vector<8x256xf32>
    %21 = arith.mulf %20, %17 : vector<8x256xf32>
    %c17_i32_16 = arith.constant 17 : i32
    %22 = tpu.dynamic_rotate %5 by %c17_i32_16 dim 1 : vector<8x256xf32>, i32 -> vector<8x256xf32>
    %23 = arith.mulf %22, %17 : vector<8x256xf32>
    %c17_i32_17 = arith.constant 17 : i32
    %24 = tpu.dynamic_rotate %7 by %c17_i32_17 dim 1 : vector<8x256xf32>, i32 -> vector<8x256xf32>
    %25 = arith.mulf %24, %17 : vector<8x256xf32>
    %c0_18 = arith.constant 0 : index
    %26 = memref.load %arg3[%c0_18] : memref<144xf32, #tpu.memory_space<smem>>
    %27 = vector.broadcast %26 : f32 to vector<8x256xf32>
    %28 = arith.mulf %27, %19 : vector<8x256xf32>
    %29 = arith.addf %9, %28 : vector<8x256xf32>
    %c1_19 = arith.constant 1 : index
    %30 = memref.load %arg3[%c1_19] : memref<144xf32, #tpu.memory_space<smem>>
    %31 = vector.broadcast %30 : f32 to vector<8x256xf32>
    %32 = arith.mulf %31, %19 : vector<8x256xf32>
    %33 = arith.addf %11, %32 : vector<8x256xf32>
    %c2_20 = arith.constant 2 : index
    %34 = memref.load %arg3[%c2_20] : memref<144xf32, #tpu.memory_space<smem>>
    %35 = vector.broadcast %34 : f32 to vector<8x256xf32>
    %36 = arith.mulf %35, %19 : vector<8x256xf32>
    %37 = arith.addf %13, %36 : vector<8x256xf32>
    %c3_21 = arith.constant 3 : index
    %38 = memref.load %arg3[%c3_21] : memref<144xf32, #tpu.memory_space<smem>>
    %39 = vector.broadcast %38 : f32 to vector<8x256xf32>
    %40 = arith.mulf %39, %19 : vector<8x256xf32>
    %41 = arith.addf %15, %40 : vector<8x256xf32>
    %c4 = arith.constant 4 : index
    %42 = memref.load %arg3[%c4] : memref<144xf32, #tpu.memory_space<smem>>
    %43 = vector.broadcast %42 : f32 to vector<8x256xf32>
    %44 = arith.mulf %43, %21 : vector<8x256xf32>
    %45 = arith.addf %29, %44 : vector<8x256xf32>
    %c5 = arith.constant 5 : index
    %46 = memref.load %arg3[%c5] : memref<144xf32, #tpu.memory_space<smem>>
    %47 = vector.broadcast %46 : f32 to vector<8x256xf32>
    %48 = arith.mulf %47, %21 : vector<8x256xf32>
    %49 = arith.addf %33, %48 : vector<8x256xf32>
    %c6 = arith.constant 6 : index
    %50 = memref.load %arg3[%c6] : memref<144xf32, #tpu.memory_space<smem>>
    %51 = vector.broadcast %50 : f32 to vector<8x256xf32>
    %52 = arith.mulf %51, %21 : vector<8x256xf32>
    %53 = arith.addf %37, %52 : vector<8x256xf32>
    %c7 = arith.constant 7 : index
    %54 = memref.load %arg3[%c7] : memref<144xf32, #tpu.memory_space<smem>>
    %55 = vector.broadcast %54 : f32 to vector<8x256xf32>
    %56 = arith.mulf %55, %21 : vector<8x256xf32>
    %57 = arith.addf %41, %56 : vector<8x256xf32>
    %c8 = arith.constant 8 : index
    %58 = memref.load %arg3[%c8] : memref<144xf32, #tpu.memory_space<smem>>
    %59 = vector.broadcast %58 : f32 to vector<8x256xf32>
    %60 = arith.mulf %59, %23 : vector<8x256xf32>
    %61 = arith.addf %45, %60 : vector<8x256xf32>
    %c9 = arith.constant 9 : index
    %62 = memref.load %arg3[%c9] : memref<144xf32, #tpu.memory_space<smem>>
    %63 = vector.broadcast %62 : f32 to vector<8x256xf32>
    %64 = arith.mulf %63, %23 : vector<8x256xf32>
    %65 = arith.addf %49, %64 : vector<8x256xf32>
    %c10 = arith.constant 10 : index
    %66 = memref.load %arg3[%c10] : memref<144xf32, #tpu.memory_space<smem>>
    %67 = vector.broadcast %66 : f32 to vector<8x256xf32>
    %68 = arith.mulf %67, %23 : vector<8x256xf32>
    %69 = arith.addf %53, %68 : vector<8x256xf32>
    %c11 = arith.constant 11 : index
    %70 = memref.load %arg3[%c11] : memref<144xf32, #tpu.memory_space<smem>>
    %71 = vector.broadcast %70 : f32 to vector<8x256xf32>
    %72 = arith.mulf %71, %23 : vector<8x256xf32>
    %73 = arith.addf %57, %72 : vector<8x256xf32>
    %c12 = arith.constant 12 : index
    %74 = memref.load %arg3[%c12] : memref<144xf32, #tpu.memory_space<smem>>
    %75 = vector.broadcast %74 : f32 to vector<8x256xf32>
    %76 = arith.mulf %75, %25 : vector<8x256xf32>
    %77 = arith.addf %61, %76 : vector<8x256xf32>
    %c13 = arith.constant 13 : index
    %78 = memref.load %arg3[%c13] : memref<144xf32, #tpu.memory_space<smem>>
    %79 = vector.broadcast %78 : f32 to vector<8x256xf32>
    %80 = arith.mulf %79, %25 : vector<8x256xf32>
    %81 = arith.addf %65, %80 : vector<8x256xf32>
    %c14 = arith.constant 14 : index
    %82 = memref.load %arg3[%c14] : memref<144xf32, #tpu.memory_space<smem>>
    %83 = vector.broadcast %82 : f32 to vector<8x256xf32>
    %84 = arith.mulf %83, %25 : vector<8x256xf32>
    %85 = arith.addf %69, %84 : vector<8x256xf32>
    %c15 = arith.constant 15 : index
    %86 = memref.load %arg3[%c15] : memref<144xf32, #tpu.memory_space<smem>>
    %87 = vector.broadcast %86 : f32 to vector<8x256xf32>
    %88 = arith.mulf %87, %25 : vector<8x256xf32>
    %89 = arith.addf %73, %88 : vector<8x256xf32>
    %c1_22 = arith.constant 1 : index
    %c0_23 = arith.constant 0 : index
    %c0_24 = arith.constant 0 : index
    %90 = vector.load %arg2[%c1_22, %c0_23, %c0_24] : memref<9x8x256xf32, #tpu.memory_space<vmem>>, vector<1x8x256xf32>
    %91 = vector.shape_cast %90 : vector<1x8x256xf32> to vector<8x256xf32>
    %c16_i32 = arith.constant 16 : i32
    %92 = tpu.dynamic_rotate %1 by %c16_i32 dim 1 : vector<8x256xf32>, i32 -> vector<8x256xf32>
    %93 = arith.mulf %92, %91 : vector<8x256xf32>
    %c16_i32_25 = arith.constant 16 : i32
    %94 = tpu.dynamic_rotate %3 by %c16_i32_25 dim 1 : vector<8x256xf32>, i32 -> vector<8x256xf32>
    %95 = arith.mulf %94, %91 : vector<8x256xf32>
    %c16_i32_26 = arith.constant 16 : i32
    %96 = tpu.dynamic_rotate %5 by %c16_i32_26 dim 1 : vector<8x256xf32>, i32 -> vector<8x256xf32>
    %97 = arith.mulf %96, %91 : vector<8x256xf32>
    %c16_i32_27 = arith.constant 16 : i32
    %98 = tpu.dynamic_rotate %7 by %c16_i32_27 dim 1 : vector<8x256xf32>, i32 -> vector<8x256xf32>
    %99 = arith.mulf %98, %91 : vector<8x256xf32>
    %c16 = arith.constant 16 : index
    %100 = memref.load %arg3[%c16] : memref<144xf32, #tpu.memory_space<smem>>
    %101 = vector.broadcast %100 : f32 to vector<8x256xf32>
    %102 = arith.mulf %101, %93 : vector<8x256xf32>
    %103 = arith.addf %77, %102 : vector<8x256xf32>
    %c17 = arith.constant 17 : index
    %104 = memref.load %arg3[%c17] : memref<144xf32, #tpu.memory_space<smem>>
    %105 = vector.broadcast %104 : f32 to vector<8x256xf32>
    %106 = arith.mulf %105, %93 : vector<8x256xf32>
    %107 = arith.addf %81, %106 : vector<8x256xf32>
    %c18 = arith.constant 18 : index
    %108 = memref.load %arg3[%c18] : memref<144xf32, #tpu.memory_space<smem>>
    %109 = vector.broadcast %108 : f32 to vector<8x256xf32>
    %110 = arith.mulf %109, %93 : vector<8x256xf32>
    %111 = arith.addf %85, %110 : vector<8x256xf32>
    %c19 = arith.constant 19 : index
    %112 = memref.load %arg3[%c19] : memref<144xf32, #tpu.memory_space<smem>>
    %113 = vector.broadcast %112 : f32 to vector<8x256xf32>
    %114 = arith.mulf %113, %93 : vector<8x256xf32>
    %115 = arith.addf %89, %114 : vector<8x256xf32>
    %c20 = arith.constant 20 : index
    %116 = memref.load %arg3[%c20] : memref<144xf32, #tpu.memory_space<smem>>
    %117 = vector.broadcast %116 : f32 to vector<8x256xf32>
    %118 = arith.mulf %117, %95 : vector<8x256xf32>
    %119 = arith.addf %103, %118 : vector<8x256xf32>
    %c21 = arith.constant 21 : index
    %120 = memref.load %arg3[%c21] : memref<144xf32, #tpu.memory_space<smem>>
    %121 = vector.broadcast %120 : f32 to vector<8x256xf32>
    %122 = arith.mulf %121, %95 : vector<8x256xf32>
    %123 = arith.addf %107, %122 : vector<8x256xf32>
    %c22 = arith.constant 22 : index
    %124 = memref.load %arg3[%c22] : memref<144xf32, #tpu.memory_space<smem>>
    %125 = vector.broadcast %124 : f32 to vector<8x256xf32>
    %126 = arith.mulf %125, %95 : vector<8x256xf32>
    %127 = arith.addf %111, %126 : vector<8x256xf32>
    %c23 = arith.constant 23 : index
    %128 = memref.load %arg3[%c23] : memref<144xf32, #tpu.memory_space<smem>>
    %129 = vector.broadcast %128 : f32 to vector<8x256xf32>
    %130 = arith.mulf %129, %95 : vector<8x256xf32>
    %131 = arith.addf %115, %130 : vector<8x256xf32>
    %c24 = arith.constant 24 : index
    %132 = memref.load %arg3[%c24] : memref<144xf32, #tpu.memory_space<smem>>
    %133 = vector.broadcast %132 : f32 to vector<8x256xf32>
    %134 = arith.mulf %133, %97 : vector<8x256xf32>
    %135 = arith.addf %119, %134 : vector<8x256xf32>
    %c25 = arith.constant 25 : index
    %136 = memref.load %arg3[%c25] : memref<144xf32, #tpu.memory_space<smem>>
    %137 = vector.broadcast %136 : f32 to vector<8x256xf32>
    %138 = arith.mulf %137, %97 : vector<8x256xf32>
    %139 = arith.addf %123, %138 : vector<8x256xf32>
    %c26 = arith.constant 26 : index
    %140 = memref.load %arg3[%c26] : memref<144xf32, #tpu.memory_space<smem>>
    %141 = vector.broadcast %140 : f32 to vector<8x256xf32>
    %142 = arith.mulf %141, %97 : vector<8x256xf32>
    %143 = arith.addf %127, %142 : vector<8x256xf32>
    %c27 = arith.constant 27 : index
    %144 = memref.load %arg3[%c27] : memref<144xf32, #tpu.memory_space<smem>>
    %145 = vector.broadcast %144 : f32 to vector<8x256xf32>
    %146 = arith.mulf %145, %97 : vector<8x256xf32>
    %147 = arith.addf %131, %146 : vector<8x256xf32>
    %c28 = arith.constant 28 : index
    %148 = memref.load %arg3[%c28] : memref<144xf32, #tpu.memory_space<smem>>
    %149 = vector.broadcast %148 : f32 to vector<8x256xf32>
    %150 = arith.mulf %149, %99 : vector<8x256xf32>
    %151 = arith.addf %135, %150 : vector<8x256xf32>
    %c29 = arith.constant 29 : index
    %152 = memref.load %arg3[%c29] : memref<144xf32, #tpu.memory_space<smem>>
    %153 = vector.broadcast %152 : f32 to vector<8x256xf32>
    %154 = arith.mulf %153, %99 : vector<8x256xf32>
    %155 = arith.addf %139, %154 : vector<8x256xf32>
    %c30 = arith.constant 30 : index
    %156 = memref.load %arg3[%c30] : memref<144xf32, #tpu.memory_space<smem>>
    %157 = vector.broadcast %156 : f32 to vector<8x256xf32>
    %158 = arith.mulf %157, %99 : vector<8x256xf32>
    %159 = arith.addf %143, %158 : vector<8x256xf32>
    %c31 = arith.constant 31 : index
    %160 = memref.load %arg3[%c31] : memref<144xf32, #tpu.memory_space<smem>>
    %161 = vector.broadcast %160 : f32 to vector<8x256xf32>
    %162 = arith.mulf %161, %99 : vector<8x256xf32>
    %163 = arith.addf %147, %162 : vector<8x256xf32>
    %c2_28 = arith.constant 2 : index
    %c0_29 = arith.constant 0 : index
    %c0_30 = arith.constant 0 : index
    %164 = vector.load %arg2[%c2_28, %c0_29, %c0_30] : memref<9x8x256xf32, #tpu.memory_space<vmem>>, vector<1x8x256xf32>
    %165 = vector.shape_cast %164 : vector<1x8x256xf32> to vector<8x256xf32>
    %c15_i32 = arith.constant 15 : i32
    %166 = tpu.dynamic_rotate %1 by %c15_i32 dim 1 : vector<8x256xf32>, i32 -> vector<8x256xf32>
    %167 = arith.mulf %166, %165 : vector<8x256xf32>
    %c15_i32_31 = arith.constant 15 : i32
    %168 = tpu.dynamic_rotate %3 by %c15_i32_31 dim 1 : vector<8x256xf32>, i32 -> vector<8x256xf32>
    %169 = arith.mulf %168, %165 : vector<8x256xf32>
    %c15_i32_32 = arith.constant 15 : i32
    %170 = tpu.dynamic_rotate %5 by %c15_i32_32 dim 1 : vector<8x256xf32>, i32 -> vector<8x256xf32>
    %171 = arith.mulf %170, %165 : vector<8x256xf32>
    %c15_i32_33 = arith.constant 15 : i32
    %172 = tpu.dynamic_rotate %7 by %c15_i32_33 dim 1 : vector<8x256xf32>, i32 -> vector<8x256xf32>
    %173 = arith.mulf %172, %165 : vector<8x256xf32>
    %c32 = arith.constant 32 : index
    %174 = memref.load %arg3[%c32] : memref<144xf32, #tpu.memory_space<smem>>
    %175 = vector.broadcast %174 : f32 to vector<8x256xf32>
    %176 = arith.mulf %175, %167 : vector<8x256xf32>
    %177 = arith.addf %151, %176 : vector<8x256xf32>
    %c33 = arith.constant 33 : index
    %178 = memref.load %arg3[%c33] : memref<144xf32, #tpu.memory_space<smem>>
    %179 = vector.broadcast %178 : f32 to vector<8x256xf32>
    %180 = arith.mulf %179, %167 : vector<8x256xf32>
    %181 = arith.addf %155, %180 : vector<8x256xf32>
    %c34 = arith.constant 34 : index
    %182 = memref.load %arg3[%c34] : memref<144xf32, #tpu.memory_space<smem>>
    %183 = vector.broadcast %182 : f32 to vector<8x256xf32>
    %184 = arith.mulf %183, %167 : vector<8x256xf32>
    %185 = arith.addf %159, %184 : vector<8x256xf32>
    %c35 = arith.constant 35 : index
    %186 = memref.load %arg3[%c35] : memref<144xf32, #tpu.memory_space<smem>>
    %187 = vector.broadcast %186 : f32 to vector<8x256xf32>
    %188 = arith.mulf %187, %167 : vector<8x256xf32>
    %189 = arith.addf %163, %188 : vector<8x256xf32>
    %c36 = arith.constant 36 : index
    %190 = memref.load %arg3[%c36] : memref<144xf32, #tpu.memory_space<smem>>
    %191 = vector.broadcast %190 : f32 to vector<8x256xf32>
    %192 = arith.mulf %191, %169 : vector<8x256xf32>
    %193 = arith.addf %177, %192 : vector<8x256xf32>
    %c37 = arith.constant 37 : index
    %194 = memref.load %arg3[%c37] : memref<144xf32, #tpu.memory_space<smem>>
    %195 = vector.broadcast %194 : f32 to vector<8x256xf32>
    %196 = arith.mulf %195, %169 : vector<8x256xf32>
    %197 = arith.addf %181, %196 : vector<8x256xf32>
    %c38 = arith.constant 38 : index
    %198 = memref.load %arg3[%c38] : memref<144xf32, #tpu.memory_space<smem>>
    %199 = vector.broadcast %198 : f32 to vector<8x256xf32>
    %200 = arith.mulf %199, %169 : vector<8x256xf32>
    %201 = arith.addf %185, %200 : vector<8x256xf32>
    %c39 = arith.constant 39 : index
    %202 = memref.load %arg3[%c39] : memref<144xf32, #tpu.memory_space<smem>>
    %203 = vector.broadcast %202 : f32 to vector<8x256xf32>
    %204 = arith.mulf %203, %169 : vector<8x256xf32>
    %205 = arith.addf %189, %204 : vector<8x256xf32>
    %c40 = arith.constant 40 : index
    %206 = memref.load %arg3[%c40] : memref<144xf32, #tpu.memory_space<smem>>
    %207 = vector.broadcast %206 : f32 to vector<8x256xf32>
    %208 = arith.mulf %207, %171 : vector<8x256xf32>
    %209 = arith.addf %193, %208 : vector<8x256xf32>
    %c41 = arith.constant 41 : index
    %210 = memref.load %arg3[%c41] : memref<144xf32, #tpu.memory_space<smem>>
    %211 = vector.broadcast %210 : f32 to vector<8x256xf32>
    %212 = arith.mulf %211, %171 : vector<8x256xf32>
    %213 = arith.addf %197, %212 : vector<8x256xf32>
    %c42 = arith.constant 42 : index
    %214 = memref.load %arg3[%c42] : memref<144xf32, #tpu.memory_space<smem>>
    %215 = vector.broadcast %214 : f32 to vector<8x256xf32>
    %216 = arith.mulf %215, %171 : vector<8x256xf32>
    %217 = arith.addf %201, %216 : vector<8x256xf32>
    %c43 = arith.constant 43 : index
    %218 = memref.load %arg3[%c43] : memref<144xf32, #tpu.memory_space<smem>>
    %219 = vector.broadcast %218 : f32 to vector<8x256xf32>
    %220 = arith.mulf %219, %171 : vector<8x256xf32>
    %221 = arith.addf %205, %220 : vector<8x256xf32>
    %c44 = arith.constant 44 : index
    %222 = memref.load %arg3[%c44] : memref<144xf32, #tpu.memory_space<smem>>
    %223 = vector.broadcast %222 : f32 to vector<8x256xf32>
    %224 = arith.mulf %223, %173 : vector<8x256xf32>
    %225 = arith.addf %209, %224 : vector<8x256xf32>
    %c45 = arith.constant 45 : index
    %226 = memref.load %arg3[%c45] : memref<144xf32, #tpu.memory_space<smem>>
    %227 = vector.broadcast %226 : f32 to vector<8x256xf32>
    %228 = arith.mulf %227, %173 : vector<8x256xf32>
    %229 = arith.addf %213, %228 : vector<8x256xf32>
    %c46 = arith.constant 46 : index
    %230 = memref.load %arg3[%c46] : memref<144xf32, #tpu.memory_space<smem>>
    %231 = vector.broadcast %230 : f32 to vector<8x256xf32>
    %232 = arith.mulf %231, %173 : vector<8x256xf32>
    %233 = arith.addf %217, %232 : vector<8x256xf32>
    %c47 = arith.constant 47 : index
    %234 = memref.load %arg3[%c47] : memref<144xf32, #tpu.memory_space<smem>>
    %235 = vector.broadcast %234 : f32 to vector<8x256xf32>
    %236 = arith.mulf %235, %173 : vector<8x256xf32>
    %237 = arith.addf %221, %236 : vector<8x256xf32>
    %c3_34 = arith.constant 3 : index
    %c0_35 = arith.constant 0 : index
    %c0_36 = arith.constant 0 : index
    %238 = vector.load %arg2[%c3_34, %c0_35, %c0_36] : memref<9x8x256xf32, #tpu.memory_space<vmem>>, vector<1x8x256xf32>
    %239 = vector.shape_cast %238 : vector<1x8x256xf32> to vector<8x256xf32>
    %c1_i32 = arith.constant 1 : i32
    %240 = tpu.dynamic_rotate %1 by %c1_i32 dim 1 : vector<8x256xf32>, i32 -> vector<8x256xf32>
    %241 = arith.mulf %240, %239 : vector<8x256xf32>
    %c1_i32_37 = arith.constant 1 : i32
    %242 = tpu.dynamic_rotate %3 by %c1_i32_37 dim 1 : vector<8x256xf32>, i32 -> vector<8x256xf32>
    %243 = arith.mulf %242, %239 : vector<8x256xf32>
    %c1_i32_38 = arith.constant 1 : i32
    %244 = tpu.dynamic_rotate %5 by %c1_i32_38 dim 1 : vector<8x256xf32>, i32 -> vector<8x256xf32>
    %245 = arith.mulf %244, %239 : vector<8x256xf32>
    %c1_i32_39 = arith.constant 1 : i32
    %246 = tpu.dynamic_rotate %7 by %c1_i32_39 dim 1 : vector<8x256xf32>, i32 -> vector<8x256xf32>
    %247 = arith.mulf %246, %239 : vector<8x256xf32>
    %c48 = arith.constant 48 : index
    %248 = memref.load %arg3[%c48] : memref<144xf32, #tpu.memory_space<smem>>
    %249 = vector.broadcast %248 : f32 to vector<8x256xf32>
    %250 = arith.mulf %249, %241 : vector<8x256xf32>
    %251 = arith.addf %225, %250 : vector<8x256xf32>
    %c49 = arith.constant 49 : index
    %252 = memref.load %arg3[%c49] : memref<144xf32, #tpu.memory_space<smem>>
    %253 = vector.broadcast %252 : f32 to vector<8x256xf32>
    %254 = arith.mulf %253, %241 : vector<8x256xf32>
    %255 = arith.addf %229, %254 : vector<8x256xf32>
    %c50 = arith.constant 50 : index
    %256 = memref.load %arg3[%c50] : memref<144xf32, #tpu.memory_space<smem>>
    %257 = vector.broadcast %256 : f32 to vector<8x256xf32>
    %258 = arith.mulf %257, %241 : vector<8x256xf32>
    %259 = arith.addf %233, %258 : vector<8x256xf32>
    %c51 = arith.constant 51 : index
    %260 = memref.load %arg3[%c51] : memref<144xf32, #tpu.memory_space<smem>>
    %261 = vector.broadcast %260 : f32 to vector<8x256xf32>
    %262 = arith.mulf %261, %241 : vector<8x256xf32>
    %263 = arith.addf %237, %262 : vector<8x256xf32>
    %c52 = arith.constant 52 : index
    %264 = memref.load %arg3[%c52] : memref<144xf32, #tpu.memory_space<smem>>
    %265 = vector.broadcast %264 : f32 to vector<8x256xf32>
    %266 = arith.mulf %265, %243 : vector<8x256xf32>
    %267 = arith.addf %251, %266 : vector<8x256xf32>
    %c53 = arith.constant 53 : index
    %268 = memref.load %arg3[%c53] : memref<144xf32, #tpu.memory_space<smem>>
    %269 = vector.broadcast %268 : f32 to vector<8x256xf32>
    %270 = arith.mulf %269, %243 : vector<8x256xf32>
    %271 = arith.addf %255, %270 : vector<8x256xf32>
    %c54 = arith.constant 54 : index
    %272 = memref.load %arg3[%c54] : memref<144xf32, #tpu.memory_space<smem>>
    %273 = vector.broadcast %272 : f32 to vector<8x256xf32>
    %274 = arith.mulf %273, %243 : vector<8x256xf32>
    %275 = arith.addf %259, %274 : vector<8x256xf32>
    %c55 = arith.constant 55 : index
    %276 = memref.load %arg3[%c55] : memref<144xf32, #tpu.memory_space<smem>>
    %277 = vector.broadcast %276 : f32 to vector<8x256xf32>
    %278 = arith.mulf %277, %243 : vector<8x256xf32>
    %279 = arith.addf %263, %278 : vector<8x256xf32>
    %c56 = arith.constant 56 : index
    %280 = memref.load %arg3[%c56] : memref<144xf32, #tpu.memory_space<smem>>
    %281 = vector.broadcast %280 : f32 to vector<8x256xf32>
    %282 = arith.mulf %281, %245 : vector<8x256xf32>
    %283 = arith.addf %267, %282 : vector<8x256xf32>
    %c57 = arith.constant 57 : index
    %284 = memref.load %arg3[%c57] : memref<144xf32, #tpu.memory_space<smem>>
    %285 = vector.broadcast %284 : f32 to vector<8x256xf32>
    %286 = arith.mulf %285, %245 : vector<8x256xf32>
    %287 = arith.addf %271, %286 : vector<8x256xf32>
    %c58 = arith.constant 58 : index
    %288 = memref.load %arg3[%c58] : memref<144xf32, #tpu.memory_space<smem>>
    %289 = vector.broadcast %288 : f32 to vector<8x256xf32>
    %290 = arith.mulf %289, %245 : vector<8x256xf32>
    %291 = arith.addf %275, %290 : vector<8x256xf32>
    %c59 = arith.constant 59 : index
    %292 = memref.load %arg3[%c59] : memref<144xf32, #tpu.memory_space<smem>>
    %293 = vector.broadcast %292 : f32 to vector<8x256xf32>
    %294 = arith.mulf %293, %245 : vector<8x256xf32>
    %295 = arith.addf %279, %294 : vector<8x256xf32>
    %c60 = arith.constant 60 : index
    %296 = memref.load %arg3[%c60] : memref<144xf32, #tpu.memory_space<smem>>
    %297 = vector.broadcast %296 : f32 to vector<8x256xf32>
    %298 = arith.mulf %297, %247 : vector<8x256xf32>
    %299 = arith.addf %283, %298 : vector<8x256xf32>
    %c61 = arith.constant 61 : index
    %300 = memref.load %arg3[%c61] : memref<144xf32, #tpu.memory_space<smem>>
    %301 = vector.broadcast %300 : f32 to vector<8x256xf32>
    %302 = arith.mulf %301, %247 : vector<8x256xf32>
    %303 = arith.addf %287, %302 : vector<8x256xf32>
    %c62 = arith.constant 62 : index
    %304 = memref.load %arg3[%c62] : memref<144xf32, #tpu.memory_space<smem>>
    %305 = vector.broadcast %304 : f32 to vector<8x256xf32>
    %306 = arith.mulf %305, %247 : vector<8x256xf32>
    %307 = arith.addf %291, %306 : vector<8x256xf32>
    %c63 = arith.constant 63 : index
    %308 = memref.load %arg3[%c63] : memref<144xf32, #tpu.memory_space<smem>>
    %309 = vector.broadcast %308 : f32 to vector<8x256xf32>
    %310 = arith.mulf %309, %247 : vector<8x256xf32>
    %311 = arith.addf %295, %310 : vector<8x256xf32>
    %c64 = arith.constant 64 : index
    %312 = memref.load %arg3[%c64] : memref<144xf32, #tpu.memory_space<smem>>
    %313 = vector.broadcast %312 : f32 to vector<8x256xf32>
    %314 = arith.mulf %313, %1 : vector<8x256xf32>
    %315 = arith.addf %299, %314 : vector<8x256xf32>
    %c65 = arith.constant 65 : index
    %316 = memref.load %arg3[%c65] : memref<144xf32, #tpu.memory_space<smem>>
    %317 = vector.broadcast %316 : f32 to vector<8x256xf32>
    %318 = arith.mulf %317, %1 : vector<8x256xf32>
    %319 = arith.addf %303, %318 : vector<8x256xf32>
    %c66 = arith.constant 66 : index
    %320 = memref.load %arg3[%c66] : memref<144xf32, #tpu.memory_space<smem>>
    %321 = vector.broadcast %320 : f32 to vector<8x256xf32>
    %322 = arith.mulf %321, %1 : vector<8x256xf32>
    %323 = arith.addf %307, %322 : vector<8x256xf32>
    %c67 = arith.constant 67 : index
    %324 = memref.load %arg3[%c67] : memref<144xf32, #tpu.memory_space<smem>>
    %325 = vector.broadcast %324 : f32 to vector<8x256xf32>
    %326 = arith.mulf %325, %1 : vector<8x256xf32>
    %327 = arith.addf %311, %326 : vector<8x256xf32>
    %c68 = arith.constant 68 : index
    %328 = memref.load %arg3[%c68] : memref<144xf32, #tpu.memory_space<smem>>
    %329 = vector.broadcast %328 : f32 to vector<8x256xf32>
    %330 = arith.mulf %329, %3 : vector<8x256xf32>
    %331 = arith.addf %315, %330 : vector<8x256xf32>
    %c69 = arith.constant 69 : index
    %332 = memref.load %arg3[%c69] : memref<144xf32, #tpu.memory_space<smem>>
    %333 = vector.broadcast %332 : f32 to vector<8x256xf32>
    %334 = arith.mulf %333, %3 : vector<8x256xf32>
    %335 = arith.addf %319, %334 : vector<8x256xf32>
    %c70 = arith.constant 70 : index
    %336 = memref.load %arg3[%c70] : memref<144xf32, #tpu.memory_space<smem>>
    %337 = vector.broadcast %336 : f32 to vector<8x256xf32>
    %338 = arith.mulf %337, %3 : vector<8x256xf32>
    %339 = arith.addf %323, %338 : vector<8x256xf32>
    %c71 = arith.constant 71 : index
    %340 = memref.load %arg3[%c71] : memref<144xf32, #tpu.memory_space<smem>>
    %341 = vector.broadcast %340 : f32 to vector<8x256xf32>
    %342 = arith.mulf %341, %3 : vector<8x256xf32>
    %343 = arith.addf %327, %342 : vector<8x256xf32>
    %c72 = arith.constant 72 : index
    %344 = memref.load %arg3[%c72] : memref<144xf32, #tpu.memory_space<smem>>
    %345 = vector.broadcast %344 : f32 to vector<8x256xf32>
    %346 = arith.mulf %345, %5 : vector<8x256xf32>
    %347 = arith.addf %331, %346 : vector<8x256xf32>
    %c73 = arith.constant 73 : index
    %348 = memref.load %arg3[%c73] : memref<144xf32, #tpu.memory_space<smem>>
    %349 = vector.broadcast %348 : f32 to vector<8x256xf32>
    %350 = arith.mulf %349, %5 : vector<8x256xf32>
    %351 = arith.addf %335, %350 : vector<8x256xf32>
    %c74 = arith.constant 74 : index
    %352 = memref.load %arg3[%c74] : memref<144xf32, #tpu.memory_space<smem>>
    %353 = vector.broadcast %352 : f32 to vector<8x256xf32>
    %354 = arith.mulf %353, %5 : vector<8x256xf32>
    %355 = arith.addf %339, %354 : vector<8x256xf32>
    %c75 = arith.constant 75 : index
    %356 = memref.load %arg3[%c75] : memref<144xf32, #tpu.memory_space<smem>>
    %357 = vector.broadcast %356 : f32 to vector<8x256xf32>
    %358 = arith.mulf %357, %5 : vector<8x256xf32>
    %359 = arith.addf %343, %358 : vector<8x256xf32>
    %c76 = arith.constant 76 : index
    %360 = memref.load %arg3[%c76] : memref<144xf32, #tpu.memory_space<smem>>
    %361 = vector.broadcast %360 : f32 to vector<8x256xf32>
    %362 = arith.mulf %361, %7 : vector<8x256xf32>
    %363 = arith.addf %347, %362 : vector<8x256xf32>
    %c77 = arith.constant 77 : index
    %364 = memref.load %arg3[%c77] : memref<144xf32, #tpu.memory_space<smem>>
    %365 = vector.broadcast %364 : f32 to vector<8x256xf32>
    %366 = arith.mulf %365, %7 : vector<8x256xf32>
    %367 = arith.addf %351, %366 : vector<8x256xf32>
    %c78 = arith.constant 78 : index
    %368 = memref.load %arg3[%c78] : memref<144xf32, #tpu.memory_space<smem>>
    %369 = vector.broadcast %368 : f32 to vector<8x256xf32>
    %370 = arith.mulf %369, %7 : vector<8x256xf32>
    %371 = arith.addf %355, %370 : vector<8x256xf32>
    %c79 = arith.constant 79 : index
    %372 = memref.load %arg3[%c79] : memref<144xf32, #tpu.memory_space<smem>>
    %373 = vector.broadcast %372 : f32 to vector<8x256xf32>
    %374 = arith.mulf %373, %7 : vector<8x256xf32>
    %375 = arith.addf %359, %374 : vector<8x256xf32>
    %c5_40 = arith.constant 5 : index
    %c0_41 = arith.constant 0 : index
    %c0_42 = arith.constant 0 : index
    %376 = vector.load %arg2[%c5_40, %c0_41, %c0_42] : memref<9x8x256xf32, #tpu.memory_space<vmem>>, vector<1x8x256xf32>
    %377 = vector.shape_cast %376 : vector<1x8x256xf32> to vector<8x256xf32>
    %c255_i32 = arith.constant 255 : i32
    %378 = tpu.dynamic_rotate %1 by %c255_i32 dim 1 : vector<8x256xf32>, i32 -> vector<8x256xf32>
    %379 = arith.mulf %378, %377 : vector<8x256xf32>
    %c255_i32_43 = arith.constant 255 : i32
    %380 = tpu.dynamic_rotate %3 by %c255_i32_43 dim 1 : vector<8x256xf32>, i32 -> vector<8x256xf32>
    %381 = arith.mulf %380, %377 : vector<8x256xf32>
    %c255_i32_44 = arith.constant 255 : i32
    %382 = tpu.dynamic_rotate %5 by %c255_i32_44 dim 1 : vector<8x256xf32>, i32 -> vector<8x256xf32>
    %383 = arith.mulf %382, %377 : vector<8x256xf32>
    %c255_i32_45 = arith.constant 255 : i32
    %384 = tpu.dynamic_rotate %7 by %c255_i32_45 dim 1 : vector<8x256xf32>, i32 -> vector<8x256xf32>
    %385 = arith.mulf %384, %377 : vector<8x256xf32>
    %c80 = arith.constant 80 : index
    %386 = memref.load %arg3[%c80] : memref<144xf32, #tpu.memory_space<smem>>
    %387 = vector.broadcast %386 : f32 to vector<8x256xf32>
    %388 = arith.mulf %387, %379 : vector<8x256xf32>
    %389 = arith.addf %363, %388 : vector<8x256xf32>
    %c81 = arith.constant 81 : index
    %390 = memref.load %arg3[%c81] : memref<144xf32, #tpu.memory_space<smem>>
    %391 = vector.broadcast %390 : f32 to vector<8x256xf32>
    %392 = arith.mulf %391, %379 : vector<8x256xf32>
    %393 = arith.addf %367, %392 : vector<8x256xf32>
    %c82 = arith.constant 82 : index
    %394 = memref.load %arg3[%c82] : memref<144xf32, #tpu.memory_space<smem>>
    %395 = vector.broadcast %394 : f32 to vector<8x256xf32>
    %396 = arith.mulf %395, %379 : vector<8x256xf32>
    %397 = arith.addf %371, %396 : vector<8x256xf32>
    %c83 = arith.constant 83 : index
    %398 = memref.load %arg3[%c83] : memref<144xf32, #tpu.memory_space<smem>>
    %399 = vector.broadcast %398 : f32 to vector<8x256xf32>
    %400 = arith.mulf %399, %379 : vector<8x256xf32>
    %401 = arith.addf %375, %400 : vector<8x256xf32>
    %c84 = arith.constant 84 : index
    %402 = memref.load %arg3[%c84] : memref<144xf32, #tpu.memory_space<smem>>
    %403 = vector.broadcast %402 : f32 to vector<8x256xf32>
    %404 = arith.mulf %403, %381 : vector<8x256xf32>
    %405 = arith.addf %389, %404 : vector<8x256xf32>
    %c85 = arith.constant 85 : index
    %406 = memref.load %arg3[%c85] : memref<144xf32, #tpu.memory_space<smem>>
    %407 = vector.broadcast %406 : f32 to vector<8x256xf32>
    %408 = arith.mulf %407, %381 : vector<8x256xf32>
    %409 = arith.addf %393, %408 : vector<8x256xf32>
    %c86 = arith.constant 86 : index
    %410 = memref.load %arg3[%c86] : memref<144xf32, #tpu.memory_space<smem>>
    %411 = vector.broadcast %410 : f32 to vector<8x256xf32>
    %412 = arith.mulf %411, %381 : vector<8x256xf32>
    %413 = arith.addf %397, %412 : vector<8x256xf32>
    %c87 = arith.constant 87 : index
    %414 = memref.load %arg3[%c87] : memref<144xf32, #tpu.memory_space<smem>>
    %415 = vector.broadcast %414 : f32 to vector<8x256xf32>
    %416 = arith.mulf %415, %381 : vector<8x256xf32>
    %417 = arith.addf %401, %416 : vector<8x256xf32>
    %c88 = arith.constant 88 : index
    %418 = memref.load %arg3[%c88] : memref<144xf32, #tpu.memory_space<smem>>
    %419 = vector.broadcast %418 : f32 to vector<8x256xf32>
    %420 = arith.mulf %419, %383 : vector<8x256xf32>
    %421 = arith.addf %405, %420 : vector<8x256xf32>
    %c89 = arith.constant 89 : index
    %422 = memref.load %arg3[%c89] : memref<144xf32, #tpu.memory_space<smem>>
    %423 = vector.broadcast %422 : f32 to vector<8x256xf32>
    %424 = arith.mulf %423, %383 : vector<8x256xf32>
    %425 = arith.addf %409, %424 : vector<8x256xf32>
    %c90 = arith.constant 90 : index
    %426 = memref.load %arg3[%c90] : memref<144xf32, #tpu.memory_space<smem>>
    %427 = vector.broadcast %426 : f32 to vector<8x256xf32>
    %428 = arith.mulf %427, %383 : vector<8x256xf32>
    %429 = arith.addf %413, %428 : vector<8x256xf32>
    %c91 = arith.constant 91 : index
    %430 = memref.load %arg3[%c91] : memref<144xf32, #tpu.memory_space<smem>>
    %431 = vector.broadcast %430 : f32 to vector<8x256xf32>
    %432 = arith.mulf %431, %383 : vector<8x256xf32>
    %433 = arith.addf %417, %432 : vector<8x256xf32>
    %c92 = arith.constant 92 : index
    %434 = memref.load %arg3[%c92] : memref<144xf32, #tpu.memory_space<smem>>
    %435 = vector.broadcast %434 : f32 to vector<8x256xf32>
    %436 = arith.mulf %435, %385 : vector<8x256xf32>
    %437 = arith.addf %421, %436 : vector<8x256xf32>
    %c93 = arith.constant 93 : index
    %438 = memref.load %arg3[%c93] : memref<144xf32, #tpu.memory_space<smem>>
    %439 = vector.broadcast %438 : f32 to vector<8x256xf32>
    %440 = arith.mulf %439, %385 : vector<8x256xf32>
    %441 = arith.addf %425, %440 : vector<8x256xf32>
    %c94 = arith.constant 94 : index
    %442 = memref.load %arg3[%c94] : memref<144xf32, #tpu.memory_space<smem>>
    %443 = vector.broadcast %442 : f32 to vector<8x256xf32>
    %444 = arith.mulf %443, %385 : vector<8x256xf32>
    %445 = arith.addf %429, %444 : vector<8x256xf32>
    %c95 = arith.constant 95 : index
    %446 = memref.load %arg3[%c95] : memref<144xf32, #tpu.memory_space<smem>>
    %447 = vector.broadcast %446 : f32 to vector<8x256xf32>
    %448 = arith.mulf %447, %385 : vector<8x256xf32>
    %449 = arith.addf %433, %448 : vector<8x256xf32>
    %c6_46 = arith.constant 6 : index
    %c0_47 = arith.constant 0 : index
    %c0_48 = arith.constant 0 : index
    %450 = vector.load %arg2[%c6_46, %c0_47, %c0_48] : memref<9x8x256xf32, #tpu.memory_space<vmem>>, vector<1x8x256xf32>
    %451 = vector.shape_cast %450 : vector<1x8x256xf32> to vector<8x256xf32>
    %c241_i32 = arith.constant 241 : i32
    %452 = tpu.dynamic_rotate %1 by %c241_i32 dim 1 : vector<8x256xf32>, i32 -> vector<8x256xf32>
    %453 = arith.mulf %452, %451 : vector<8x256xf32>
    %c241_i32_49 = arith.constant 241 : i32
    %454 = tpu.dynamic_rotate %3 by %c241_i32_49 dim 1 : vector<8x256xf32>, i32 -> vector<8x256xf32>
    %455 = arith.mulf %454, %451 : vector<8x256xf32>
    %c241_i32_50 = arith.constant 241 : i32
    %456 = tpu.dynamic_rotate %5 by %c241_i32_50 dim 1 : vector<8x256xf32>, i32 -> vector<8x256xf32>
    %457 = arith.mulf %456, %451 : vector<8x256xf32>
    %c241_i32_51 = arith.constant 241 : i32
    %458 = tpu.dynamic_rotate %7 by %c241_i32_51 dim 1 : vector<8x256xf32>, i32 -> vector<8x256xf32>
    %459 = arith.mulf %458, %451 : vector<8x256xf32>
    %c96 = arith.constant 96 : index
    %460 = memref.load %arg3[%c96] : memref<144xf32, #tpu.memory_space<smem>>
    %461 = vector.broadcast %460 : f32 to vector<8x256xf32>
    %462 = arith.mulf %461, %453 : vector<8x256xf32>
    %463 = arith.addf %437, %462 : vector<8x256xf32>
    %c97 = arith.constant 97 : index
    %464 = memref.load %arg3[%c97] : memref<144xf32, #tpu.memory_space<smem>>
    %465 = vector.broadcast %464 : f32 to vector<8x256xf32>
    %466 = arith.mulf %465, %453 : vector<8x256xf32>
    %467 = arith.addf %441, %466 : vector<8x256xf32>
    %c98 = arith.constant 98 : index
    %468 = memref.load %arg3[%c98] : memref<144xf32, #tpu.memory_space<smem>>
    %469 = vector.broadcast %468 : f32 to vector<8x256xf32>
    %470 = arith.mulf %469, %453 : vector<8x256xf32>
    %471 = arith.addf %445, %470 : vector<8x256xf32>
    %c99 = arith.constant 99 : index
    %472 = memref.load %arg3[%c99] : memref<144xf32, #tpu.memory_space<smem>>
    %473 = vector.broadcast %472 : f32 to vector<8x256xf32>
    %474 = arith.mulf %473, %453 : vector<8x256xf32>
    %475 = arith.addf %449, %474 : vector<8x256xf32>
    %c100 = arith.constant 100 : index
    %476 = memref.load %arg3[%c100] : memref<144xf32, #tpu.memory_space<smem>>
    %477 = vector.broadcast %476 : f32 to vector<8x256xf32>
    %478 = arith.mulf %477, %455 : vector<8x256xf32>
    %479 = arith.addf %463, %478 : vector<8x256xf32>
    %c101 = arith.constant 101 : index
    %480 = memref.load %arg3[%c101] : memref<144xf32, #tpu.memory_space<smem>>
    %481 = vector.broadcast %480 : f32 to vector<8x256xf32>
    %482 = arith.mulf %481, %455 : vector<8x256xf32>
    %483 = arith.addf %467, %482 : vector<8x256xf32>
    %c102 = arith.constant 102 : index
    %484 = memref.load %arg3[%c102] : memref<144xf32, #tpu.memory_space<smem>>
    %485 = vector.broadcast %484 : f32 to vector<8x256xf32>
    %486 = arith.mulf %485, %455 : vector<8x256xf32>
    %487 = arith.addf %471, %486 : vector<8x256xf32>
    %c103 = arith.constant 103 : index
    %488 = memref.load %arg3[%c103] : memref<144xf32, #tpu.memory_space<smem>>
    %489 = vector.broadcast %488 : f32 to vector<8x256xf32>
    %490 = arith.mulf %489, %455 : vector<8x256xf32>
    %491 = arith.addf %475, %490 : vector<8x256xf32>
    %c104 = arith.constant 104 : index
    %492 = memref.load %arg3[%c104] : memref<144xf32, #tpu.memory_space<smem>>
    %493 = vector.broadcast %492 : f32 to vector<8x256xf32>
    %494 = arith.mulf %493, %457 : vector<8x256xf32>
    %495 = arith.addf %479, %494 : vector<8x256xf32>
    %c105 = arith.constant 105 : index
    %496 = memref.load %arg3[%c105] : memref<144xf32, #tpu.memory_space<smem>>
    %497 = vector.broadcast %496 : f32 to vector<8x256xf32>
    %498 = arith.mulf %497, %457 : vector<8x256xf32>
    %499 = arith.addf %483, %498 : vector<8x256xf32>
    %c106 = arith.constant 106 : index
    %500 = memref.load %arg3[%c106] : memref<144xf32, #tpu.memory_space<smem>>
    %501 = vector.broadcast %500 : f32 to vector<8x256xf32>
    %502 = arith.mulf %501, %457 : vector<8x256xf32>
    %503 = arith.addf %487, %502 : vector<8x256xf32>
    %c107 = arith.constant 107 : index
    %504 = memref.load %arg3[%c107] : memref<144xf32, #tpu.memory_space<smem>>
    %505 = vector.broadcast %504 : f32 to vector<8x256xf32>
    %506 = arith.mulf %505, %457 : vector<8x256xf32>
    %507 = arith.addf %491, %506 : vector<8x256xf32>
    %c108 = arith.constant 108 : index
    %508 = memref.load %arg3[%c108] : memref<144xf32, #tpu.memory_space<smem>>
    %509 = vector.broadcast %508 : f32 to vector<8x256xf32>
    %510 = arith.mulf %509, %459 : vector<8x256xf32>
    %511 = arith.addf %495, %510 : vector<8x256xf32>
    %c109 = arith.constant 109 : index
    %512 = memref.load %arg3[%c109] : memref<144xf32, #tpu.memory_space<smem>>
    %513 = vector.broadcast %512 : f32 to vector<8x256xf32>
    %514 = arith.mulf %513, %459 : vector<8x256xf32>
    %515 = arith.addf %499, %514 : vector<8x256xf32>
    %c110 = arith.constant 110 : index
    %516 = memref.load %arg3[%c110] : memref<144xf32, #tpu.memory_space<smem>>
    %517 = vector.broadcast %516 : f32 to vector<8x256xf32>
    %518 = arith.mulf %517, %459 : vector<8x256xf32>
    %519 = arith.addf %503, %518 : vector<8x256xf32>
    %c111 = arith.constant 111 : index
    %520 = memref.load %arg3[%c111] : memref<144xf32, #tpu.memory_space<smem>>
    %521 = vector.broadcast %520 : f32 to vector<8x256xf32>
    %522 = arith.mulf %521, %459 : vector<8x256xf32>
    %523 = arith.addf %507, %522 : vector<8x256xf32>
    %c7_52 = arith.constant 7 : index
    %c0_53 = arith.constant 0 : index
    %c0_54 = arith.constant 0 : index
    %524 = vector.load %arg2[%c7_52, %c0_53, %c0_54] : memref<9x8x256xf32, #tpu.memory_space<vmem>>, vector<1x8x256xf32>
    %525 = vector.shape_cast %524 : vector<1x8x256xf32> to vector<8x256xf32>
    %c240_i32 = arith.constant 240 : i32
    %526 = tpu.dynamic_rotate %1 by %c240_i32 dim 1 : vector<8x256xf32>, i32 -> vector<8x256xf32>
    %527 = arith.mulf %526, %525 : vector<8x256xf32>
    %c240_i32_55 = arith.constant 240 : i32
    %528 = tpu.dynamic_rotate %3 by %c240_i32_55 dim 1 : vector<8x256xf32>, i32 -> vector<8x256xf32>
    %529 = arith.mulf %528, %525 : vector<8x256xf32>
    %c240_i32_56 = arith.constant 240 : i32
    %530 = tpu.dynamic_rotate %5 by %c240_i32_56 dim 1 : vector<8x256xf32>, i32 -> vector<8x256xf32>
    %531 = arith.mulf %530, %525 : vector<8x256xf32>
    %c240_i32_57 = arith.constant 240 : i32
    %532 = tpu.dynamic_rotate %7 by %c240_i32_57 dim 1 : vector<8x256xf32>, i32 -> vector<8x256xf32>
    %533 = arith.mulf %532, %525 : vector<8x256xf32>
    %c112 = arith.constant 112 : index
    %534 = memref.load %arg3[%c112] : memref<144xf32, #tpu.memory_space<smem>>
    %535 = vector.broadcast %534 : f32 to vector<8x256xf32>
    %536 = arith.mulf %535, %527 : vector<8x256xf32>
    %537 = arith.addf %511, %536 : vector<8x256xf32>
    %c113 = arith.constant 113 : index
    %538 = memref.load %arg3[%c113] : memref<144xf32, #tpu.memory_space<smem>>
    %539 = vector.broadcast %538 : f32 to vector<8x256xf32>
    %540 = arith.mulf %539, %527 : vector<8x256xf32>
    %541 = arith.addf %515, %540 : vector<8x256xf32>
    %c114 = arith.constant 114 : index
    %542 = memref.load %arg3[%c114] : memref<144xf32, #tpu.memory_space<smem>>
    %543 = vector.broadcast %542 : f32 to vector<8x256xf32>
    %544 = arith.mulf %543, %527 : vector<8x256xf32>
    %545 = arith.addf %519, %544 : vector<8x256xf32>
    %c115 = arith.constant 115 : index
    %546 = memref.load %arg3[%c115] : memref<144xf32, #tpu.memory_space<smem>>
    %547 = vector.broadcast %546 : f32 to vector<8x256xf32>
    %548 = arith.mulf %547, %527 : vector<8x256xf32>
    %549 = arith.addf %523, %548 : vector<8x256xf32>
    %c116 = arith.constant 116 : index
    %550 = memref.load %arg3[%c116] : memref<144xf32, #tpu.memory_space<smem>>
    %551 = vector.broadcast %550 : f32 to vector<8x256xf32>
    %552 = arith.mulf %551, %529 : vector<8x256xf32>
    %553 = arith.addf %537, %552 : vector<8x256xf32>
    %c117 = arith.constant 117 : index
    %554 = memref.load %arg3[%c117] : memref<144xf32, #tpu.memory_space<smem>>
    %555 = vector.broadcast %554 : f32 to vector<8x256xf32>
    %556 = arith.mulf %555, %529 : vector<8x256xf32>
    %557 = arith.addf %541, %556 : vector<8x256xf32>
    %c118 = arith.constant 118 : index
    %558 = memref.load %arg3[%c118] : memref<144xf32, #tpu.memory_space<smem>>
    %559 = vector.broadcast %558 : f32 to vector<8x256xf32>
    %560 = arith.mulf %559, %529 : vector<8x256xf32>
    %561 = arith.addf %545, %560 : vector<8x256xf32>
    %c119 = arith.constant 119 : index
    %562 = memref.load %arg3[%c119] : memref<144xf32, #tpu.memory_space<smem>>
    %563 = vector.broadcast %562 : f32 to vector<8x256xf32>
    %564 = arith.mulf %563, %529 : vector<8x256xf32>
    %565 = arith.addf %549, %564 : vector<8x256xf32>
    %c120 = arith.constant 120 : index
    %566 = memref.load %arg3[%c120] : memref<144xf32, #tpu.memory_space<smem>>
    %567 = vector.broadcast %566 : f32 to vector<8x256xf32>
    %568 = arith.mulf %567, %531 : vector<8x256xf32>
    %569 = arith.addf %553, %568 : vector<8x256xf32>
    %c121 = arith.constant 121 : index
    %570 = memref.load %arg3[%c121] : memref<144xf32, #tpu.memory_space<smem>>
    %571 = vector.broadcast %570 : f32 to vector<8x256xf32>
    %572 = arith.mulf %571, %531 : vector<8x256xf32>
    %573 = arith.addf %557, %572 : vector<8x256xf32>
    %c122 = arith.constant 122 : index
    %574 = memref.load %arg3[%c122] : memref<144xf32, #tpu.memory_space<smem>>
    %575 = vector.broadcast %574 : f32 to vector<8x256xf32>
    %576 = arith.mulf %575, %531 : vector<8x256xf32>
    %577 = arith.addf %561, %576 : vector<8x256xf32>
    %c123 = arith.constant 123 : index
    %578 = memref.load %arg3[%c123] : memref<144xf32, #tpu.memory_space<smem>>
    %579 = vector.broadcast %578 : f32 to vector<8x256xf32>
    %580 = arith.mulf %579, %531 : vector<8x256xf32>
    %581 = arith.addf %565, %580 : vector<8x256xf32>
    %c124 = arith.constant 124 : index
    %582 = memref.load %arg3[%c124] : memref<144xf32, #tpu.memory_space<smem>>
    %583 = vector.broadcast %582 : f32 to vector<8x256xf32>
    %584 = arith.mulf %583, %533 : vector<8x256xf32>
    %585 = arith.addf %569, %584 : vector<8x256xf32>
    %c125 = arith.constant 125 : index
    %586 = memref.load %arg3[%c125] : memref<144xf32, #tpu.memory_space<smem>>
    %587 = vector.broadcast %586 : f32 to vector<8x256xf32>
    %588 = arith.mulf %587, %533 : vector<8x256xf32>
    %589 = arith.addf %573, %588 : vector<8x256xf32>
    %c126 = arith.constant 126 : index
    %590 = memref.load %arg3[%c126] : memref<144xf32, #tpu.memory_space<smem>>
    %591 = vector.broadcast %590 : f32 to vector<8x256xf32>
    %592 = arith.mulf %591, %533 : vector<8x256xf32>
    %593 = arith.addf %577, %592 : vector<8x256xf32>
    %c127 = arith.constant 127 : index
    %594 = memref.load %arg3[%c127] : memref<144xf32, #tpu.memory_space<smem>>
    %595 = vector.broadcast %594 : f32 to vector<8x256xf32>
    %596 = arith.mulf %595, %533 : vector<8x256xf32>
    %597 = arith.addf %581, %596 : vector<8x256xf32>
    %c8_58 = arith.constant 8 : index
    %c0_59 = arith.constant 0 : index
    %c0_60 = arith.constant 0 : index
    %598 = vector.load %arg2[%c8_58, %c0_59, %c0_60] : memref<9x8x256xf32, #tpu.memory_space<vmem>>, vector<1x8x256xf32>
    %599 = vector.shape_cast %598 : vector<1x8x256xf32> to vector<8x256xf32>
    %c239_i32 = arith.constant 239 : i32
    %600 = tpu.dynamic_rotate %1 by %c239_i32 dim 1 : vector<8x256xf32>, i32 -> vector<8x256xf32>
    %601 = arith.mulf %600, %599 : vector<8x256xf32>
    %c239_i32_61 = arith.constant 239 : i32
    %602 = tpu.dynamic_rotate %3 by %c239_i32_61 dim 1 : vector<8x256xf32>, i32 -> vector<8x256xf32>
    %603 = arith.mulf %602, %599 : vector<8x256xf32>
    %c239_i32_62 = arith.constant 239 : i32
    %604 = tpu.dynamic_rotate %5 by %c239_i32_62 dim 1 : vector<8x256xf32>, i32 -> vector<8x256xf32>
    %605 = arith.mulf %604, %599 : vector<8x256xf32>
    %c239_i32_63 = arith.constant 239 : i32
    %606 = tpu.dynamic_rotate %7 by %c239_i32_63 dim 1 : vector<8x256xf32>, i32 -> vector<8x256xf32>
    %607 = arith.mulf %606, %599 : vector<8x256xf32>
    %c128 = arith.constant 128 : index
    %608 = memref.load %arg3[%c128] : memref<144xf32, #tpu.memory_space<smem>>
    %609 = vector.broadcast %608 : f32 to vector<8x256xf32>
    %610 = arith.mulf %609, %601 : vector<8x256xf32>
    %611 = arith.addf %585, %610 : vector<8x256xf32>
    %c129 = arith.constant 129 : index
    %612 = memref.load %arg3[%c129] : memref<144xf32, #tpu.memory_space<smem>>
    %613 = vector.broadcast %612 : f32 to vector<8x256xf32>
    %614 = arith.mulf %613, %601 : vector<8x256xf32>
    %615 = arith.addf %589, %614 : vector<8x256xf32>
    %c130 = arith.constant 130 : index
    %616 = memref.load %arg3[%c130] : memref<144xf32, #tpu.memory_space<smem>>
    %617 = vector.broadcast %616 : f32 to vector<8x256xf32>
    %618 = arith.mulf %617, %601 : vector<8x256xf32>
    %619 = arith.addf %593, %618 : vector<8x256xf32>
    %c131 = arith.constant 131 : index
    %620 = memref.load %arg3[%c131] : memref<144xf32, #tpu.memory_space<smem>>
    %621 = vector.broadcast %620 : f32 to vector<8x256xf32>
    %622 = arith.mulf %621, %601 : vector<8x256xf32>
    %623 = arith.addf %597, %622 : vector<8x256xf32>
    %c132 = arith.constant 132 : index
    %624 = memref.load %arg3[%c132] : memref<144xf32, #tpu.memory_space<smem>>
    %625 = vector.broadcast %624 : f32 to vector<8x256xf32>
    %626 = arith.mulf %625, %603 : vector<8x256xf32>
    %627 = arith.addf %611, %626 : vector<8x256xf32>
    %c133 = arith.constant 133 : index
    %628 = memref.load %arg3[%c133] : memref<144xf32, #tpu.memory_space<smem>>
    %629 = vector.broadcast %628 : f32 to vector<8x256xf32>
    %630 = arith.mulf %629, %603 : vector<8x256xf32>
    %631 = arith.addf %615, %630 : vector<8x256xf32>
    %c134 = arith.constant 134 : index
    %632 = memref.load %arg3[%c134] : memref<144xf32, #tpu.memory_space<smem>>
    %633 = vector.broadcast %632 : f32 to vector<8x256xf32>
    %634 = arith.mulf %633, %603 : vector<8x256xf32>
    %635 = arith.addf %619, %634 : vector<8x256xf32>
    %c135 = arith.constant 135 : index
    %636 = memref.load %arg3[%c135] : memref<144xf32, #tpu.memory_space<smem>>
    %637 = vector.broadcast %636 : f32 to vector<8x256xf32>
    %638 = arith.mulf %637, %603 : vector<8x256xf32>
    %639 = arith.addf %623, %638 : vector<8x256xf32>
    %c136 = arith.constant 136 : index
    %640 = memref.load %arg3[%c136] : memref<144xf32, #tpu.memory_space<smem>>
    %641 = vector.broadcast %640 : f32 to vector<8x256xf32>
    %642 = arith.mulf %641, %605 : vector<8x256xf32>
    %643 = arith.addf %627, %642 : vector<8x256xf32>
    %c137 = arith.constant 137 : index
    %644 = memref.load %arg3[%c137] : memref<144xf32, #tpu.memory_space<smem>>
    %645 = vector.broadcast %644 : f32 to vector<8x256xf32>
    %646 = arith.mulf %645, %605 : vector<8x256xf32>
    %647 = arith.addf %631, %646 : vector<8x256xf32>
    %c138 = arith.constant 138 : index
    %648 = memref.load %arg3[%c138] : memref<144xf32, #tpu.memory_space<smem>>
    %649 = vector.broadcast %648 : f32 to vector<8x256xf32>
    %650 = arith.mulf %649, %605 : vector<8x256xf32>
    %651 = arith.addf %635, %650 : vector<8x256xf32>
    %c139 = arith.constant 139 : index
    %652 = memref.load %arg3[%c139] : memref<144xf32, #tpu.memory_space<smem>>
    %653 = vector.broadcast %652 : f32 to vector<8x256xf32>
    %654 = arith.mulf %653, %605 : vector<8x256xf32>
    %655 = arith.addf %639, %654 : vector<8x256xf32>
    %c140 = arith.constant 140 : index
    %656 = memref.load %arg3[%c140] : memref<144xf32, #tpu.memory_space<smem>>
    %657 = vector.broadcast %656 : f32 to vector<8x256xf32>
    %658 = arith.mulf %657, %607 : vector<8x256xf32>
    %659 = arith.addf %643, %658 : vector<8x256xf32>
    %c141 = arith.constant 141 : index
    %660 = memref.load %arg3[%c141] : memref<144xf32, #tpu.memory_space<smem>>
    %661 = vector.broadcast %660 : f32 to vector<8x256xf32>
    %662 = arith.mulf %661, %607 : vector<8x256xf32>
    %663 = arith.addf %647, %662 : vector<8x256xf32>
    %c142 = arith.constant 142 : index
    %664 = memref.load %arg3[%c142] : memref<144xf32, #tpu.memory_space<smem>>
    %665 = vector.broadcast %664 : f32 to vector<8x256xf32>
    %666 = arith.mulf %665, %607 : vector<8x256xf32>
    %667 = arith.addf %651, %666 : vector<8x256xf32>
    %c143 = arith.constant 143 : index
    %668 = memref.load %arg3[%c143] : memref<144xf32, #tpu.memory_space<smem>>
    %669 = vector.broadcast %668 : f32 to vector<8x256xf32>
    %670 = arith.mulf %669, %607 : vector<8x256xf32>
    %671 = arith.addf %655, %670 : vector<8x256xf32>
    %cst = arith.constant 0.000000e+00 : f32
    %672 = vector.broadcast %cst : f32 to vector<8x256xf32>
    %673 = arith.maximumf %659, %672 : vector<8x256xf32>
    %cst_64 = arith.constant 0.000000e+00 : f32
    %674 = vector.broadcast %cst_64 : f32 to vector<8x256xf32>
    %675 = arith.maximumf %663, %674 : vector<8x256xf32>
    %cst_65 = arith.constant 0.000000e+00 : f32
    %676 = vector.broadcast %cst_65 : f32 to vector<8x256xf32>
    %677 = arith.maximumf %667, %676 : vector<8x256xf32>
    %cst_66 = arith.constant 0.000000e+00 : f32
    %678 = vector.broadcast %cst_66 : f32 to vector<8x256xf32>
    %679 = arith.maximumf %671, %678 : vector<8x256xf32>
    %c0_67 = arith.constant 0 : index
    %680 = memref.load %arg6[%c0_67] : memref<4xf32, #tpu.memory_space<smem>>
    %681 = vector.broadcast %680 : f32 to vector<8x256xf32>
    %c1_68 = arith.constant 1 : index
    %682 = memref.load %arg6[%c1_68] : memref<4xf32, #tpu.memory_space<smem>>
    %683 = vector.broadcast %682 : f32 to vector<8x256xf32>
    %c2_69 = arith.constant 2 : index
    %684 = memref.load %arg6[%c2_69] : memref<4xf32, #tpu.memory_space<smem>>
    %685 = vector.broadcast %684 : f32 to vector<8x256xf32>
    %c3_70 = arith.constant 3 : index
    %686 = memref.load %arg6[%c3_70] : memref<4xf32, #tpu.memory_space<smem>>
    %687 = vector.broadcast %686 : f32 to vector<8x256xf32>
    %c0_71 = arith.constant 0 : index
    %c0_72 = arith.constant 0 : index
    %c0_73 = arith.constant 0 : index
    %688 = vector.load %arg2[%c0_71, %c0_72, %c0_73] : memref<9x8x256xf32, #tpu.memory_space<vmem>>, vector<1x8x256xf32>
    %689 = vector.shape_cast %688 : vector<1x8x256xf32> to vector<8x256xf32>
    %c17_i32_74 = arith.constant 17 : i32
    %690 = tpu.dynamic_rotate %673 by %c17_i32_74 dim 1 : vector<8x256xf32>, i32 -> vector<8x256xf32>
    %691 = arith.mulf %690, %689 : vector<8x256xf32>
    %c17_i32_75 = arith.constant 17 : i32
    %692 = tpu.dynamic_rotate %675 by %c17_i32_75 dim 1 : vector<8x256xf32>, i32 -> vector<8x256xf32>
    %693 = arith.mulf %692, %689 : vector<8x256xf32>
    %c17_i32_76 = arith.constant 17 : i32
    %694 = tpu.dynamic_rotate %677 by %c17_i32_76 dim 1 : vector<8x256xf32>, i32 -> vector<8x256xf32>
    %695 = arith.mulf %694, %689 : vector<8x256xf32>
    %c17_i32_77 = arith.constant 17 : i32
    %696 = tpu.dynamic_rotate %679 by %c17_i32_77 dim 1 : vector<8x256xf32>, i32 -> vector<8x256xf32>
    %697 = arith.mulf %696, %689 : vector<8x256xf32>
    %c0_78 = arith.constant 0 : index
    %698 = memref.load %arg5[%c0_78] : memref<144xf32, #tpu.memory_space<smem>>
    %699 = vector.broadcast %698 : f32 to vector<8x256xf32>
    %700 = arith.mulf %699, %691 : vector<8x256xf32>
    %701 = arith.addf %681, %700 : vector<8x256xf32>
    %c1_79 = arith.constant 1 : index
    %702 = memref.load %arg5[%c1_79] : memref<144xf32, #tpu.memory_space<smem>>
    %703 = vector.broadcast %702 : f32 to vector<8x256xf32>
    %704 = arith.mulf %703, %691 : vector<8x256xf32>
    %705 = arith.addf %683, %704 : vector<8x256xf32>
    %c2_80 = arith.constant 2 : index
    %706 = memref.load %arg5[%c2_80] : memref<144xf32, #tpu.memory_space<smem>>
    %707 = vector.broadcast %706 : f32 to vector<8x256xf32>
    %708 = arith.mulf %707, %691 : vector<8x256xf32>
    %709 = arith.addf %685, %708 : vector<8x256xf32>
    %c3_81 = arith.constant 3 : index
    %710 = memref.load %arg5[%c3_81] : memref<144xf32, #tpu.memory_space<smem>>
    %711 = vector.broadcast %710 : f32 to vector<8x256xf32>
    %712 = arith.mulf %711, %691 : vector<8x256xf32>
    %713 = arith.addf %687, %712 : vector<8x256xf32>
    %c4_82 = arith.constant 4 : index
    %714 = memref.load %arg5[%c4_82] : memref<144xf32, #tpu.memory_space<smem>>
    %715 = vector.broadcast %714 : f32 to vector<8x256xf32>
    %716 = arith.mulf %715, %693 : vector<8x256xf32>
    %717 = arith.addf %701, %716 : vector<8x256xf32>
    %c5_83 = arith.constant 5 : index
    %718 = memref.load %arg5[%c5_83] : memref<144xf32, #tpu.memory_space<smem>>
    %719 = vector.broadcast %718 : f32 to vector<8x256xf32>
    %720 = arith.mulf %719, %693 : vector<8x256xf32>
    %721 = arith.addf %705, %720 : vector<8x256xf32>
    %c6_84 = arith.constant 6 : index
    %722 = memref.load %arg5[%c6_84] : memref<144xf32, #tpu.memory_space<smem>>
    %723 = vector.broadcast %722 : f32 to vector<8x256xf32>
    %724 = arith.mulf %723, %693 : vector<8x256xf32>
    %725 = arith.addf %709, %724 : vector<8x256xf32>
    %c7_85 = arith.constant 7 : index
    %726 = memref.load %arg5[%c7_85] : memref<144xf32, #tpu.memory_space<smem>>
    %727 = vector.broadcast %726 : f32 to vector<8x256xf32>
    %728 = arith.mulf %727, %693 : vector<8x256xf32>
    %729 = arith.addf %713, %728 : vector<8x256xf32>
    %c8_86 = arith.constant 8 : index
    %730 = memref.load %arg5[%c8_86] : memref<144xf32, #tpu.memory_space<smem>>
    %731 = vector.broadcast %730 : f32 to vector<8x256xf32>
    %732 = arith.mulf %731, %695 : vector<8x256xf32>
    %733 = arith.addf %717, %732 : vector<8x256xf32>
    %c9_87 = arith.constant 9 : index
    %734 = memref.load %arg5[%c9_87] : memref<144xf32, #tpu.memory_space<smem>>
    %735 = vector.broadcast %734 : f32 to vector<8x256xf32>
    %736 = arith.mulf %735, %695 : vector<8x256xf32>
    %737 = arith.addf %721, %736 : vector<8x256xf32>
    %c10_88 = arith.constant 10 : index
    %738 = memref.load %arg5[%c10_88] : memref<144xf32, #tpu.memory_space<smem>>
    %739 = vector.broadcast %738 : f32 to vector<8x256xf32>
    %740 = arith.mulf %739, %695 : vector<8x256xf32>
    %741 = arith.addf %725, %740 : vector<8x256xf32>
    %c11_89 = arith.constant 11 : index
    %742 = memref.load %arg5[%c11_89] : memref<144xf32, #tpu.memory_space<smem>>
    %743 = vector.broadcast %742 : f32 to vector<8x256xf32>
    %744 = arith.mulf %743, %695 : vector<8x256xf32>
    %745 = arith.addf %729, %744 : vector<8x256xf32>
    %c12_90 = arith.constant 12 : index
    %746 = memref.load %arg5[%c12_90] : memref<144xf32, #tpu.memory_space<smem>>
    %747 = vector.broadcast %746 : f32 to vector<8x256xf32>
    %748 = arith.mulf %747, %697 : vector<8x256xf32>
    %749 = arith.addf %733, %748 : vector<8x256xf32>
    %c13_91 = arith.constant 13 : index
    %750 = memref.load %arg5[%c13_91] : memref<144xf32, #tpu.memory_space<smem>>
    %751 = vector.broadcast %750 : f32 to vector<8x256xf32>
    %752 = arith.mulf %751, %697 : vector<8x256xf32>
    %753 = arith.addf %737, %752 : vector<8x256xf32>
    %c14_92 = arith.constant 14 : index
    %754 = memref.load %arg5[%c14_92] : memref<144xf32, #tpu.memory_space<smem>>
    %755 = vector.broadcast %754 : f32 to vector<8x256xf32>
    %756 = arith.mulf %755, %697 : vector<8x256xf32>
    %757 = arith.addf %741, %756 : vector<8x256xf32>
    %c15_93 = arith.constant 15 : index
    %758 = memref.load %arg5[%c15_93] : memref<144xf32, #tpu.memory_space<smem>>
    %759 = vector.broadcast %758 : f32 to vector<8x256xf32>
    %760 = arith.mulf %759, %697 : vector<8x256xf32>
    %761 = arith.addf %745, %760 : vector<8x256xf32>
    %c1_94 = arith.constant 1 : index
    %c0_95 = arith.constant 0 : index
    %c0_96 = arith.constant 0 : index
    %762 = vector.load %arg2[%c1_94, %c0_95, %c0_96] : memref<9x8x256xf32, #tpu.memory_space<vmem>>, vector<1x8x256xf32>
    %763 = vector.shape_cast %762 : vector<1x8x256xf32> to vector<8x256xf32>
    %c16_i32_97 = arith.constant 16 : i32
    %764 = tpu.dynamic_rotate %673 by %c16_i32_97 dim 1 : vector<8x256xf32>, i32 -> vector<8x256xf32>
    %765 = arith.mulf %764, %763 : vector<8x256xf32>
    %c16_i32_98 = arith.constant 16 : i32
    %766 = tpu.dynamic_rotate %675 by %c16_i32_98 dim 1 : vector<8x256xf32>, i32 -> vector<8x256xf32>
    %767 = arith.mulf %766, %763 : vector<8x256xf32>
    %c16_i32_99 = arith.constant 16 : i32
    %768 = tpu.dynamic_rotate %677 by %c16_i32_99 dim 1 : vector<8x256xf32>, i32 -> vector<8x256xf32>
    %769 = arith.mulf %768, %763 : vector<8x256xf32>
    %c16_i32_100 = arith.constant 16 : i32
    %770 = tpu.dynamic_rotate %679 by %c16_i32_100 dim 1 : vector<8x256xf32>, i32 -> vector<8x256xf32>
    %771 = arith.mulf %770, %763 : vector<8x256xf32>
    %c16_101 = arith.constant 16 : index
    %772 = memref.load %arg5[%c16_101] : memref<144xf32, #tpu.memory_space<smem>>
    %773 = vector.broadcast %772 : f32 to vector<8x256xf32>
    %774 = arith.mulf %773, %765 : vector<8x256xf32>
    %775 = arith.addf %749, %774 : vector<8x256xf32>
    %c17_102 = arith.constant 17 : index
    %776 = memref.load %arg5[%c17_102] : memref<144xf32, #tpu.memory_space<smem>>
    %777 = vector.broadcast %776 : f32 to vector<8x256xf32>
    %778 = arith.mulf %777, %765 : vector<8x256xf32>
    %779 = arith.addf %753, %778 : vector<8x256xf32>
    %c18_103 = arith.constant 18 : index
    %780 = memref.load %arg5[%c18_103] : memref<144xf32, #tpu.memory_space<smem>>
    %781 = vector.broadcast %780 : f32 to vector<8x256xf32>
    %782 = arith.mulf %781, %765 : vector<8x256xf32>
    %783 = arith.addf %757, %782 : vector<8x256xf32>
    %c19_104 = arith.constant 19 : index
    %784 = memref.load %arg5[%c19_104] : memref<144xf32, #tpu.memory_space<smem>>
    %785 = vector.broadcast %784 : f32 to vector<8x256xf32>
    %786 = arith.mulf %785, %765 : vector<8x256xf32>
    %787 = arith.addf %761, %786 : vector<8x256xf32>
    %c20_105 = arith.constant 20 : index
    %788 = memref.load %arg5[%c20_105] : memref<144xf32, #tpu.memory_space<smem>>
    %789 = vector.broadcast %788 : f32 to vector<8x256xf32>
    %790 = arith.mulf %789, %767 : vector<8x256xf32>
    %791 = arith.addf %775, %790 : vector<8x256xf32>
    %c21_106 = arith.constant 21 : index
    %792 = memref.load %arg5[%c21_106] : memref<144xf32, #tpu.memory_space<smem>>
    %793 = vector.broadcast %792 : f32 to vector<8x256xf32>
    %794 = arith.mulf %793, %767 : vector<8x256xf32>
    %795 = arith.addf %779, %794 : vector<8x256xf32>
    %c22_107 = arith.constant 22 : index
    %796 = memref.load %arg5[%c22_107] : memref<144xf32, #tpu.memory_space<smem>>
    %797 = vector.broadcast %796 : f32 to vector<8x256xf32>
    %798 = arith.mulf %797, %767 : vector<8x256xf32>
    %799 = arith.addf %783, %798 : vector<8x256xf32>
    %c23_108 = arith.constant 23 : index
    %800 = memref.load %arg5[%c23_108] : memref<144xf32, #tpu.memory_space<smem>>
    %801 = vector.broadcast %800 : f32 to vector<8x256xf32>
    %802 = arith.mulf %801, %767 : vector<8x256xf32>
    %803 = arith.addf %787, %802 : vector<8x256xf32>
    %c24_109 = arith.constant 24 : index
    %804 = memref.load %arg5[%c24_109] : memref<144xf32, #tpu.memory_space<smem>>
    %805 = vector.broadcast %804 : f32 to vector<8x256xf32>
    %806 = arith.mulf %805, %769 : vector<8x256xf32>
    %807 = arith.addf %791, %806 : vector<8x256xf32>
    %c25_110 = arith.constant 25 : index
    %808 = memref.load %arg5[%c25_110] : memref<144xf32, #tpu.memory_space<smem>>
    %809 = vector.broadcast %808 : f32 to vector<8x256xf32>
    %810 = arith.mulf %809, %769 : vector<8x256xf32>
    %811 = arith.addf %795, %810 : vector<8x256xf32>
    %c26_111 = arith.constant 26 : index
    %812 = memref.load %arg5[%c26_111] : memref<144xf32, #tpu.memory_space<smem>>
    %813 = vector.broadcast %812 : f32 to vector<8x256xf32>
    %814 = arith.mulf %813, %769 : vector<8x256xf32>
    %815 = arith.addf %799, %814 : vector<8x256xf32>
    %c27_112 = arith.constant 27 : index
    %816 = memref.load %arg5[%c27_112] : memref<144xf32, #tpu.memory_space<smem>>
    %817 = vector.broadcast %816 : f32 to vector<8x256xf32>
    %818 = arith.mulf %817, %769 : vector<8x256xf32>
    %819 = arith.addf %803, %818 : vector<8x256xf32>
    %c28_113 = arith.constant 28 : index
    %820 = memref.load %arg5[%c28_113] : memref<144xf32, #tpu.memory_space<smem>>
    %821 = vector.broadcast %820 : f32 to vector<8x256xf32>
    %822 = arith.mulf %821, %771 : vector<8x256xf32>
    %823 = arith.addf %807, %822 : vector<8x256xf32>
    %c29_114 = arith.constant 29 : index
    %824 = memref.load %arg5[%c29_114] : memref<144xf32, #tpu.memory_space<smem>>
    %825 = vector.broadcast %824 : f32 to vector<8x256xf32>
    %826 = arith.mulf %825, %771 : vector<8x256xf32>
    %827 = arith.addf %811, %826 : vector<8x256xf32>
    %c30_115 = arith.constant 30 : index
    %828 = memref.load %arg5[%c30_115] : memref<144xf32, #tpu.memory_space<smem>>
    %829 = vector.broadcast %828 : f32 to vector<8x256xf32>
    %830 = arith.mulf %829, %771 : vector<8x256xf32>
    %831 = arith.addf %815, %830 : vector<8x256xf32>
    %c31_116 = arith.constant 31 : index
    %832 = memref.load %arg5[%c31_116] : memref<144xf32, #tpu.memory_space<smem>>
    %833 = vector.broadcast %832 : f32 to vector<8x256xf32>
    %834 = arith.mulf %833, %771 : vector<8x256xf32>
    %835 = arith.addf %819, %834 : vector<8x256xf32>
    %c2_117 = arith.constant 2 : index
    %c0_118 = arith.constant 0 : index
    %c0_119 = arith.constant 0 : index
    %836 = vector.load %arg2[%c2_117, %c0_118, %c0_119] : memref<9x8x256xf32, #tpu.memory_space<vmem>>, vector<1x8x256xf32>
    %837 = vector.shape_cast %836 : vector<1x8x256xf32> to vector<8x256xf32>
    %c15_i32_120 = arith.constant 15 : i32
    %838 = tpu.dynamic_rotate %673 by %c15_i32_120 dim 1 : vector<8x256xf32>, i32 -> vector<8x256xf32>
    %839 = arith.mulf %838, %837 : vector<8x256xf32>
    %c15_i32_121 = arith.constant 15 : i32
    %840 = tpu.dynamic_rotate %675 by %c15_i32_121 dim 1 : vector<8x256xf32>, i32 -> vector<8x256xf32>
    %841 = arith.mulf %840, %837 : vector<8x256xf32>
    %c15_i32_122 = arith.constant 15 : i32
    %842 = tpu.dynamic_rotate %677 by %c15_i32_122 dim 1 : vector<8x256xf32>, i32 -> vector<8x256xf32>
    %843 = arith.mulf %842, %837 : vector<8x256xf32>
    %c15_i32_123 = arith.constant 15 : i32
    %844 = tpu.dynamic_rotate %679 by %c15_i32_123 dim 1 : vector<8x256xf32>, i32 -> vector<8x256xf32>
    %845 = arith.mulf %844, %837 : vector<8x256xf32>
    %c32_124 = arith.constant 32 : index
    %846 = memref.load %arg5[%c32_124] : memref<144xf32, #tpu.memory_space<smem>>
    %847 = vector.broadcast %846 : f32 to vector<8x256xf32>
    %848 = arith.mulf %847, %839 : vector<8x256xf32>
    %849 = arith.addf %823, %848 : vector<8x256xf32>
    %c33_125 = arith.constant 33 : index
    %850 = memref.load %arg5[%c33_125] : memref<144xf32, #tpu.memory_space<smem>>
    %851 = vector.broadcast %850 : f32 to vector<8x256xf32>
    %852 = arith.mulf %851, %839 : vector<8x256xf32>
    %853 = arith.addf %827, %852 : vector<8x256xf32>
    %c34_126 = arith.constant 34 : index
    %854 = memref.load %arg5[%c34_126] : memref<144xf32, #tpu.memory_space<smem>>
    %855 = vector.broadcast %854 : f32 to vector<8x256xf32>
    %856 = arith.mulf %855, %839 : vector<8x256xf32>
    %857 = arith.addf %831, %856 : vector<8x256xf32>
    %c35_127 = arith.constant 35 : index
    %858 = memref.load %arg5[%c35_127] : memref<144xf32, #tpu.memory_space<smem>>
    %859 = vector.broadcast %858 : f32 to vector<8x256xf32>
    %860 = arith.mulf %859, %839 : vector<8x256xf32>
    %861 = arith.addf %835, %860 : vector<8x256xf32>
    %c36_128 = arith.constant 36 : index
    %862 = memref.load %arg5[%c36_128] : memref<144xf32, #tpu.memory_space<smem>>
    %863 = vector.broadcast %862 : f32 to vector<8x256xf32>
    %864 = arith.mulf %863, %841 : vector<8x256xf32>
    %865 = arith.addf %849, %864 : vector<8x256xf32>
    %c37_129 = arith.constant 37 : index
    %866 = memref.load %arg5[%c37_129] : memref<144xf32, #tpu.memory_space<smem>>
    %867 = vector.broadcast %866 : f32 to vector<8x256xf32>
    %868 = arith.mulf %867, %841 : vector<8x256xf32>
    %869 = arith.addf %853, %868 : vector<8x256xf32>
    %c38_130 = arith.constant 38 : index
    %870 = memref.load %arg5[%c38_130] : memref<144xf32, #tpu.memory_space<smem>>
    %871 = vector.broadcast %870 : f32 to vector<8x256xf32>
    %872 = arith.mulf %871, %841 : vector<8x256xf32>
    %873 = arith.addf %857, %872 : vector<8x256xf32>
    %c39_131 = arith.constant 39 : index
    %874 = memref.load %arg5[%c39_131] : memref<144xf32, #tpu.memory_space<smem>>
    %875 = vector.broadcast %874 : f32 to vector<8x256xf32>
    %876 = arith.mulf %875, %841 : vector<8x256xf32>
    %877 = arith.addf %861, %876 : vector<8x256xf32>
    %c40_132 = arith.constant 40 : index
    %878 = memref.load %arg5[%c40_132] : memref<144xf32, #tpu.memory_space<smem>>
    %879 = vector.broadcast %878 : f32 to vector<8x256xf32>
    %880 = arith.mulf %879, %843 : vector<8x256xf32>
    %881 = arith.addf %865, %880 : vector<8x256xf32>
    %c41_133 = arith.constant 41 : index
    %882 = memref.load %arg5[%c41_133] : memref<144xf32, #tpu.memory_space<smem>>
    %883 = vector.broadcast %882 : f32 to vector<8x256xf32>
    %884 = arith.mulf %883, %843 : vector<8x256xf32>
    %885 = arith.addf %869, %884 : vector<8x256xf32>
    %c42_134 = arith.constant 42 : index
    %886 = memref.load %arg5[%c42_134] : memref<144xf32, #tpu.memory_space<smem>>
    %887 = vector.broadcast %886 : f32 to vector<8x256xf32>
    %888 = arith.mulf %887, %843 : vector<8x256xf32>
    %889 = arith.addf %873, %888 : vector<8x256xf32>
    %c43_135 = arith.constant 43 : index
    %890 = memref.load %arg5[%c43_135] : memref<144xf32, #tpu.memory_space<smem>>
    %891 = vector.broadcast %890 : f32 to vector<8x256xf32>
    %892 = arith.mulf %891, %843 : vector<8x256xf32>
    %893 = arith.addf %877, %892 : vector<8x256xf32>
    %c44_136 = arith.constant 44 : index
    %894 = memref.load %arg5[%c44_136] : memref<144xf32, #tpu.memory_space<smem>>
    %895 = vector.broadcast %894 : f32 to vector<8x256xf32>
    %896 = arith.mulf %895, %845 : vector<8x256xf32>
    %897 = arith.addf %881, %896 : vector<8x256xf32>
    %c45_137 = arith.constant 45 : index
    %898 = memref.load %arg5[%c45_137] : memref<144xf32, #tpu.memory_space<smem>>
    %899 = vector.broadcast %898 : f32 to vector<8x256xf32>
    %900 = arith.mulf %899, %845 : vector<8x256xf32>
    %901 = arith.addf %885, %900 : vector<8x256xf32>
    %c46_138 = arith.constant 46 : index
    %902 = memref.load %arg5[%c46_138] : memref<144xf32, #tpu.memory_space<smem>>
    %903 = vector.broadcast %902 : f32 to vector<8x256xf32>
    %904 = arith.mulf %903, %845 : vector<8x256xf32>
    %905 = arith.addf %889, %904 : vector<8x256xf32>
    %c47_139 = arith.constant 47 : index
    %906 = memref.load %arg5[%c47_139] : memref<144xf32, #tpu.memory_space<smem>>
    %907 = vector.broadcast %906 : f32 to vector<8x256xf32>
    %908 = arith.mulf %907, %845 : vector<8x256xf32>
    %909 = arith.addf %893, %908 : vector<8x256xf32>
    %c3_140 = arith.constant 3 : index
    %c0_141 = arith.constant 0 : index
    %c0_142 = arith.constant 0 : index
    %910 = vector.load %arg2[%c3_140, %c0_141, %c0_142] : memref<9x8x256xf32, #tpu.memory_space<vmem>>, vector<1x8x256xf32>
    %911 = vector.shape_cast %910 : vector<1x8x256xf32> to vector<8x256xf32>
    %c1_i32_143 = arith.constant 1 : i32
    %912 = tpu.dynamic_rotate %673 by %c1_i32_143 dim 1 : vector<8x256xf32>, i32 -> vector<8x256xf32>
    %913 = arith.mulf %912, %911 : vector<8x256xf32>
    %c1_i32_144 = arith.constant 1 : i32
    %914 = tpu.dynamic_rotate %675 by %c1_i32_144 dim 1 : vector<8x256xf32>, i32 -> vector<8x256xf32>
    %915 = arith.mulf %914, %911 : vector<8x256xf32>
    %c1_i32_145 = arith.constant 1 : i32
    %916 = tpu.dynamic_rotate %677 by %c1_i32_145 dim 1 : vector<8x256xf32>, i32 -> vector<8x256xf32>
    %917 = arith.mulf %916, %911 : vector<8x256xf32>
    %c1_i32_146 = arith.constant 1 : i32
    %918 = tpu.dynamic_rotate %679 by %c1_i32_146 dim 1 : vector<8x256xf32>, i32 -> vector<8x256xf32>
    %919 = arith.mulf %918, %911 : vector<8x256xf32>
    %c48_147 = arith.constant 48 : index
    %920 = memref.load %arg5[%c48_147] : memref<144xf32, #tpu.memory_space<smem>>
    %921 = vector.broadcast %920 : f32 to vector<8x256xf32>
    %922 = arith.mulf %921, %913 : vector<8x256xf32>
    %923 = arith.addf %897, %922 : vector<8x256xf32>
    %c49_148 = arith.constant 49 : index
    %924 = memref.load %arg5[%c49_148] : memref<144xf32, #tpu.memory_space<smem>>
    %925 = vector.broadcast %924 : f32 to vector<8x256xf32>
    %926 = arith.mulf %925, %913 : vector<8x256xf32>
    %927 = arith.addf %901, %926 : vector<8x256xf32>
    %c50_149 = arith.constant 50 : index
    %928 = memref.load %arg5[%c50_149] : memref<144xf32, #tpu.memory_space<smem>>
    %929 = vector.broadcast %928 : f32 to vector<8x256xf32>
    %930 = arith.mulf %929, %913 : vector<8x256xf32>
    %931 = arith.addf %905, %930 : vector<8x256xf32>
    %c51_150 = arith.constant 51 : index
    %932 = memref.load %arg5[%c51_150] : memref<144xf32, #tpu.memory_space<smem>>
    %933 = vector.broadcast %932 : f32 to vector<8x256xf32>
    %934 = arith.mulf %933, %913 : vector<8x256xf32>
    %935 = arith.addf %909, %934 : vector<8x256xf32>
    %c52_151 = arith.constant 52 : index
    %936 = memref.load %arg5[%c52_151] : memref<144xf32, #tpu.memory_space<smem>>
    %937 = vector.broadcast %936 : f32 to vector<8x256xf32>
    %938 = arith.mulf %937, %915 : vector<8x256xf32>
    %939 = arith.addf %923, %938 : vector<8x256xf32>
    %c53_152 = arith.constant 53 : index
    %940 = memref.load %arg5[%c53_152] : memref<144xf32, #tpu.memory_space<smem>>
    %941 = vector.broadcast %940 : f32 to vector<8x256xf32>
    %942 = arith.mulf %941, %915 : vector<8x256xf32>
    %943 = arith.addf %927, %942 : vector<8x256xf32>
    %c54_153 = arith.constant 54 : index
    %944 = memref.load %arg5[%c54_153] : memref<144xf32, #tpu.memory_space<smem>>
    %945 = vector.broadcast %944 : f32 to vector<8x256xf32>
    %946 = arith.mulf %945, %915 : vector<8x256xf32>
    %947 = arith.addf %931, %946 : vector<8x256xf32>
    %c55_154 = arith.constant 55 : index
    %948 = memref.load %arg5[%c55_154] : memref<144xf32, #tpu.memory_space<smem>>
    %949 = vector.broadcast %948 : f32 to vector<8x256xf32>
    %950 = arith.mulf %949, %915 : vector<8x256xf32>
    %951 = arith.addf %935, %950 : vector<8x256xf32>
    %c56_155 = arith.constant 56 : index
    %952 = memref.load %arg5[%c56_155] : memref<144xf32, #tpu.memory_space<smem>>
    %953 = vector.broadcast %952 : f32 to vector<8x256xf32>
    %954 = arith.mulf %953, %917 : vector<8x256xf32>
    %955 = arith.addf %939, %954 : vector<8x256xf32>
    %c57_156 = arith.constant 57 : index
    %956 = memref.load %arg5[%c57_156] : memref<144xf32, #tpu.memory_space<smem>>
    %957 = vector.broadcast %956 : f32 to vector<8x256xf32>
    %958 = arith.mulf %957, %917 : vector<8x256xf32>
    %959 = arith.addf %943, %958 : vector<8x256xf32>
    %c58_157 = arith.constant 58 : index
    %960 = memref.load %arg5[%c58_157] : memref<144xf32, #tpu.memory_space<smem>>
    %961 = vector.broadcast %960 : f32 to vector<8x256xf32>
    %962 = arith.mulf %961, %917 : vector<8x256xf32>
    %963 = arith.addf %947, %962 : vector<8x256xf32>
    %c59_158 = arith.constant 59 : index
    %964 = memref.load %arg5[%c59_158] : memref<144xf32, #tpu.memory_space<smem>>
    %965 = vector.broadcast %964 : f32 to vector<8x256xf32>
    %966 = arith.mulf %965, %917 : vector<8x256xf32>
    %967 = arith.addf %951, %966 : vector<8x256xf32>
    %c60_159 = arith.constant 60 : index
    %968 = memref.load %arg5[%c60_159] : memref<144xf32, #tpu.memory_space<smem>>
    %969 = vector.broadcast %968 : f32 to vector<8x256xf32>
    %970 = arith.mulf %969, %919 : vector<8x256xf32>
    %971 = arith.addf %955, %970 : vector<8x256xf32>
    %c61_160 = arith.constant 61 : index
    %972 = memref.load %arg5[%c61_160] : memref<144xf32, #tpu.memory_space<smem>>
    %973 = vector.broadcast %972 : f32 to vector<8x256xf32>
    %974 = arith.mulf %973, %919 : vector<8x256xf32>
    %975 = arith.addf %959, %974 : vector<8x256xf32>
    %c62_161 = arith.constant 62 : index
    %976 = memref.load %arg5[%c62_161] : memref<144xf32, #tpu.memory_space<smem>>
    %977 = vector.broadcast %976 : f32 to vector<8x256xf32>
    %978 = arith.mulf %977, %919 : vector<8x256xf32>
    %979 = arith.addf %963, %978 : vector<8x256xf32>
    %c63_162 = arith.constant 63 : index
    %980 = memref.load %arg5[%c63_162] : memref<144xf32, #tpu.memory_space<smem>>
    %981 = vector.broadcast %980 : f32 to vector<8x256xf32>
    %982 = arith.mulf %981, %919 : vector<8x256xf32>
    %983 = arith.addf %967, %982 : vector<8x256xf32>
    %c64_163 = arith.constant 64 : index
    %984 = memref.load %arg5[%c64_163] : memref<144xf32, #tpu.memory_space<smem>>
    %985 = vector.broadcast %984 : f32 to vector<8x256xf32>
    %986 = arith.mulf %985, %673 : vector<8x256xf32>
    %987 = arith.addf %971, %986 : vector<8x256xf32>
    %c65_164 = arith.constant 65 : index
    %988 = memref.load %arg5[%c65_164] : memref<144xf32, #tpu.memory_space<smem>>
    %989 = vector.broadcast %988 : f32 to vector<8x256xf32>
    %990 = arith.mulf %989, %673 : vector<8x256xf32>
    %991 = arith.addf %975, %990 : vector<8x256xf32>
    %c66_165 = arith.constant 66 : index
    %992 = memref.load %arg5[%c66_165] : memref<144xf32, #tpu.memory_space<smem>>
    %993 = vector.broadcast %992 : f32 to vector<8x256xf32>
    %994 = arith.mulf %993, %673 : vector<8x256xf32>
    %995 = arith.addf %979, %994 : vector<8x256xf32>
    %c67_166 = arith.constant 67 : index
    %996 = memref.load %arg5[%c67_166] : memref<144xf32, #tpu.memory_space<smem>>
    %997 = vector.broadcast %996 : f32 to vector<8x256xf32>
    %998 = arith.mulf %997, %673 : vector<8x256xf32>
    %999 = arith.addf %983, %998 : vector<8x256xf32>
    %c68_167 = arith.constant 68 : index
    %1000 = memref.load %arg5[%c68_167] : memref<144xf32, #tpu.memory_space<smem>>
    %1001 = vector.broadcast %1000 : f32 to vector<8x256xf32>
    %1002 = arith.mulf %1001, %675 : vector<8x256xf32>
    %1003 = arith.addf %987, %1002 : vector<8x256xf32>
    %c69_168 = arith.constant 69 : index
    %1004 = memref.load %arg5[%c69_168] : memref<144xf32, #tpu.memory_space<smem>>
    %1005 = vector.broadcast %1004 : f32 to vector<8x256xf32>
    %1006 = arith.mulf %1005, %675 : vector<8x256xf32>
    %1007 = arith.addf %991, %1006 : vector<8x256xf32>
    %c70_169 = arith.constant 70 : index
    %1008 = memref.load %arg5[%c70_169] : memref<144xf32, #tpu.memory_space<smem>>
    %1009 = vector.broadcast %1008 : f32 to vector<8x256xf32>
    %1010 = arith.mulf %1009, %675 : vector<8x256xf32>
    %1011 = arith.addf %995, %1010 : vector<8x256xf32>
    %c71_170 = arith.constant 71 : index
    %1012 = memref.load %arg5[%c71_170] : memref<144xf32, #tpu.memory_space<smem>>
    %1013 = vector.broadcast %1012 : f32 to vector<8x256xf32>
    %1014 = arith.mulf %1013, %675 : vector<8x256xf32>
    %1015 = arith.addf %999, %1014 : vector<8x256xf32>
    %c72_171 = arith.constant 72 : index
    %1016 = memref.load %arg5[%c72_171] : memref<144xf32, #tpu.memory_space<smem>>
    %1017 = vector.broadcast %1016 : f32 to vector<8x256xf32>
    %1018 = arith.mulf %1017, %677 : vector<8x256xf32>
    %1019 = arith.addf %1003, %1018 : vector<8x256xf32>
    %c73_172 = arith.constant 73 : index
    %1020 = memref.load %arg5[%c73_172] : memref<144xf32, #tpu.memory_space<smem>>
    %1021 = vector.broadcast %1020 : f32 to vector<8x256xf32>
    %1022 = arith.mulf %1021, %677 : vector<8x256xf32>
    %1023 = arith.addf %1007, %1022 : vector<8x256xf32>
    %c74_173 = arith.constant 74 : index
    %1024 = memref.load %arg5[%c74_173] : memref<144xf32, #tpu.memory_space<smem>>
    %1025 = vector.broadcast %1024 : f32 to vector<8x256xf32>
    %1026 = arith.mulf %1025, %677 : vector<8x256xf32>
    %1027 = arith.addf %1011, %1026 : vector<8x256xf32>
    %c75_174 = arith.constant 75 : index
    %1028 = memref.load %arg5[%c75_174] : memref<144xf32, #tpu.memory_space<smem>>
    %1029 = vector.broadcast %1028 : f32 to vector<8x256xf32>
    %1030 = arith.mulf %1029, %677 : vector<8x256xf32>
    %1031 = arith.addf %1015, %1030 : vector<8x256xf32>
    %c76_175 = arith.constant 76 : index
    %1032 = memref.load %arg5[%c76_175] : memref<144xf32, #tpu.memory_space<smem>>
    %1033 = vector.broadcast %1032 : f32 to vector<8x256xf32>
    %1034 = arith.mulf %1033, %679 : vector<8x256xf32>
    %1035 = arith.addf %1019, %1034 : vector<8x256xf32>
    %c77_176 = arith.constant 77 : index
    %1036 = memref.load %arg5[%c77_176] : memref<144xf32, #tpu.memory_space<smem>>
    %1037 = vector.broadcast %1036 : f32 to vector<8x256xf32>
    %1038 = arith.mulf %1037, %679 : vector<8x256xf32>
    %1039 = arith.addf %1023, %1038 : vector<8x256xf32>
    %c78_177 = arith.constant 78 : index
    %1040 = memref.load %arg5[%c78_177] : memref<144xf32, #tpu.memory_space<smem>>
    %1041 = vector.broadcast %1040 : f32 to vector<8x256xf32>
    %1042 = arith.mulf %1041, %679 : vector<8x256xf32>
    %1043 = arith.addf %1027, %1042 : vector<8x256xf32>
    %c79_178 = arith.constant 79 : index
    %1044 = memref.load %arg5[%c79_178] : memref<144xf32, #tpu.memory_space<smem>>
    %1045 = vector.broadcast %1044 : f32 to vector<8x256xf32>
    %1046 = arith.mulf %1045, %679 : vector<8x256xf32>
    %1047 = arith.addf %1031, %1046 : vector<8x256xf32>
    %c5_179 = arith.constant 5 : index
    %c0_180 = arith.constant 0 : index
    %c0_181 = arith.constant 0 : index
    %1048 = vector.load %arg2[%c5_179, %c0_180, %c0_181] : memref<9x8x256xf32, #tpu.memory_space<vmem>>, vector<1x8x256xf32>
    %1049 = vector.shape_cast %1048 : vector<1x8x256xf32> to vector<8x256xf32>
    %c255_i32_182 = arith.constant 255 : i32
    %1050 = tpu.dynamic_rotate %673 by %c255_i32_182 dim 1 : vector<8x256xf32>, i32 -> vector<8x256xf32>
    %1051 = arith.mulf %1050, %1049 : vector<8x256xf32>
    %c255_i32_183 = arith.constant 255 : i32
    %1052 = tpu.dynamic_rotate %675 by %c255_i32_183 dim 1 : vector<8x256xf32>, i32 -> vector<8x256xf32>
    %1053 = arith.mulf %1052, %1049 : vector<8x256xf32>
    %c255_i32_184 = arith.constant 255 : i32
    %1054 = tpu.dynamic_rotate %677 by %c255_i32_184 dim 1 : vector<8x256xf32>, i32 -> vector<8x256xf32>
    %1055 = arith.mulf %1054, %1049 : vector<8x256xf32>
    %c255_i32_185 = arith.constant 255 : i32
    %1056 = tpu.dynamic_rotate %679 by %c255_i32_185 dim 1 : vector<8x256xf32>, i32 -> vector<8x256xf32>
    %1057 = arith.mulf %1056, %1049 : vector<8x256xf32>
    %c80_186 = arith.constant 80 : index
    %1058 = memref.load %arg5[%c80_186] : memref<144xf32, #tpu.memory_space<smem>>
    %1059 = vector.broadcast %1058 : f32 to vector<8x256xf32>
    %1060 = arith.mulf %1059, %1051 : vector<8x256xf32>
    %1061 = arith.addf %1035, %1060 : vector<8x256xf32>
    %c81_187 = arith.constant 81 : index
    %1062 = memref.load %arg5[%c81_187] : memref<144xf32, #tpu.memory_space<smem>>
    %1063 = vector.broadcast %1062 : f32 to vector<8x256xf32>
    %1064 = arith.mulf %1063, %1051 : vector<8x256xf32>
    %1065 = arith.addf %1039, %1064 : vector<8x256xf32>
    %c82_188 = arith.constant 82 : index
    %1066 = memref.load %arg5[%c82_188] : memref<144xf32, #tpu.memory_space<smem>>
    %1067 = vector.broadcast %1066 : f32 to vector<8x256xf32>
    %1068 = arith.mulf %1067, %1051 : vector<8x256xf32>
    %1069 = arith.addf %1043, %1068 : vector<8x256xf32>
    %c83_189 = arith.constant 83 : index
    %1070 = memref.load %arg5[%c83_189] : memref<144xf32, #tpu.memory_space<smem>>
    %1071 = vector.broadcast %1070 : f32 to vector<8x256xf32>
    %1072 = arith.mulf %1071, %1051 : vector<8x256xf32>
    %1073 = arith.addf %1047, %1072 : vector<8x256xf32>
    %c84_190 = arith.constant 84 : index
    %1074 = memref.load %arg5[%c84_190] : memref<144xf32, #tpu.memory_space<smem>>
    %1075 = vector.broadcast %1074 : f32 to vector<8x256xf32>
    %1076 = arith.mulf %1075, %1053 : vector<8x256xf32>
    %1077 = arith.addf %1061, %1076 : vector<8x256xf32>
    %c85_191 = arith.constant 85 : index
    %1078 = memref.load %arg5[%c85_191] : memref<144xf32, #tpu.memory_space<smem>>
    %1079 = vector.broadcast %1078 : f32 to vector<8x256xf32>
    %1080 = arith.mulf %1079, %1053 : vector<8x256xf32>
    %1081 = arith.addf %1065, %1080 : vector<8x256xf32>
    %c86_192 = arith.constant 86 : index
    %1082 = memref.load %arg5[%c86_192] : memref<144xf32, #tpu.memory_space<smem>>
    %1083 = vector.broadcast %1082 : f32 to vector<8x256xf32>
    %1084 = arith.mulf %1083, %1053 : vector<8x256xf32>
    %1085 = arith.addf %1069, %1084 : vector<8x256xf32>
    %c87_193 = arith.constant 87 : index
    %1086 = memref.load %arg5[%c87_193] : memref<144xf32, #tpu.memory_space<smem>>
    %1087 = vector.broadcast %1086 : f32 to vector<8x256xf32>
    %1088 = arith.mulf %1087, %1053 : vector<8x256xf32>
    %1089 = arith.addf %1073, %1088 : vector<8x256xf32>
    %c88_194 = arith.constant 88 : index
    %1090 = memref.load %arg5[%c88_194] : memref<144xf32, #tpu.memory_space<smem>>
    %1091 = vector.broadcast %1090 : f32 to vector<8x256xf32>
    %1092 = arith.mulf %1091, %1055 : vector<8x256xf32>
    %1093 = arith.addf %1077, %1092 : vector<8x256xf32>
    %c89_195 = arith.constant 89 : index
    %1094 = memref.load %arg5[%c89_195] : memref<144xf32, #tpu.memory_space<smem>>
    %1095 = vector.broadcast %1094 : f32 to vector<8x256xf32>
    %1096 = arith.mulf %1095, %1055 : vector<8x256xf32>
    %1097 = arith.addf %1081, %1096 : vector<8x256xf32>
    %c90_196 = arith.constant 90 : index
    %1098 = memref.load %arg5[%c90_196] : memref<144xf32, #tpu.memory_space<smem>>
    %1099 = vector.broadcast %1098 : f32 to vector<8x256xf32>
    %1100 = arith.mulf %1099, %1055 : vector<8x256xf32>
    %1101 = arith.addf %1085, %1100 : vector<8x256xf32>
    %c91_197 = arith.constant 91 : index
    %1102 = memref.load %arg5[%c91_197] : memref<144xf32, #tpu.memory_space<smem>>
    %1103 = vector.broadcast %1102 : f32 to vector<8x256xf32>
    %1104 = arith.mulf %1103, %1055 : vector<8x256xf32>
    %1105 = arith.addf %1089, %1104 : vector<8x256xf32>
    %c92_198 = arith.constant 92 : index
    %1106 = memref.load %arg5[%c92_198] : memref<144xf32, #tpu.memory_space<smem>>
    %1107 = vector.broadcast %1106 : f32 to vector<8x256xf32>
    %1108 = arith.mulf %1107, %1057 : vector<8x256xf32>
    %1109 = arith.addf %1093, %1108 : vector<8x256xf32>
    %c93_199 = arith.constant 93 : index
    %1110 = memref.load %arg5[%c93_199] : memref<144xf32, #tpu.memory_space<smem>>
    %1111 = vector.broadcast %1110 : f32 to vector<8x256xf32>
    %1112 = arith.mulf %1111, %1057 : vector<8x256xf32>
    %1113 = arith.addf %1097, %1112 : vector<8x256xf32>
    %c94_200 = arith.constant 94 : index
    %1114 = memref.load %arg5[%c94_200] : memref<144xf32, #tpu.memory_space<smem>>
    %1115 = vector.broadcast %1114 : f32 to vector<8x256xf32>
    %1116 = arith.mulf %1115, %1057 : vector<8x256xf32>
    %1117 = arith.addf %1101, %1116 : vector<8x256xf32>
    %c95_201 = arith.constant 95 : index
    %1118 = memref.load %arg5[%c95_201] : memref<144xf32, #tpu.memory_space<smem>>
    %1119 = vector.broadcast %1118 : f32 to vector<8x256xf32>
    %1120 = arith.mulf %1119, %1057 : vector<8x256xf32>
    %1121 = arith.addf %1105, %1120 : vector<8x256xf32>
    %c6_202 = arith.constant 6 : index
    %c0_203 = arith.constant 0 : index
    %c0_204 = arith.constant 0 : index
    %1122 = vector.load %arg2[%c6_202, %c0_203, %c0_204] : memref<9x8x256xf32, #tpu.memory_space<vmem>>, vector<1x8x256xf32>
    %1123 = vector.shape_cast %1122 : vector<1x8x256xf32> to vector<8x256xf32>
    %c241_i32_205 = arith.constant 241 : i32
    %1124 = tpu.dynamic_rotate %673 by %c241_i32_205 dim 1 : vector<8x256xf32>, i32 -> vector<8x256xf32>
    %1125 = arith.mulf %1124, %1123 : vector<8x256xf32>
    %c241_i32_206 = arith.constant 241 : i32
    %1126 = tpu.dynamic_rotate %675 by %c241_i32_206 dim 1 : vector<8x256xf32>, i32 -> vector<8x256xf32>
    %1127 = arith.mulf %1126, %1123 : vector<8x256xf32>
    %c241_i32_207 = arith.constant 241 : i32
    %1128 = tpu.dynamic_rotate %677 by %c241_i32_207 dim 1 : vector<8x256xf32>, i32 -> vector<8x256xf32>
    %1129 = arith.mulf %1128, %1123 : vector<8x256xf32>
    %c241_i32_208 = arith.constant 241 : i32
    %1130 = tpu.dynamic_rotate %679 by %c241_i32_208 dim 1 : vector<8x256xf32>, i32 -> vector<8x256xf32>
    %1131 = arith.mulf %1130, %1123 : vector<8x256xf32>
    %c96_209 = arith.constant 96 : index
    %1132 = memref.load %arg5[%c96_209] : memref<144xf32, #tpu.memory_space<smem>>
    %1133 = vector.broadcast %1132 : f32 to vector<8x256xf32>
    %1134 = arith.mulf %1133, %1125 : vector<8x256xf32>
    %1135 = arith.addf %1109, %1134 : vector<8x256xf32>
    %c97_210 = arith.constant 97 : index
    %1136 = memref.load %arg5[%c97_210] : memref<144xf32, #tpu.memory_space<smem>>
    %1137 = vector.broadcast %1136 : f32 to vector<8x256xf32>
    %1138 = arith.mulf %1137, %1125 : vector<8x256xf32>
    %1139 = arith.addf %1113, %1138 : vector<8x256xf32>
    %c98_211 = arith.constant 98 : index
    %1140 = memref.load %arg5[%c98_211] : memref<144xf32, #tpu.memory_space<smem>>
    %1141 = vector.broadcast %1140 : f32 to vector<8x256xf32>
    %1142 = arith.mulf %1141, %1125 : vector<8x256xf32>
    %1143 = arith.addf %1117, %1142 : vector<8x256xf32>
    %c99_212 = arith.constant 99 : index
    %1144 = memref.load %arg5[%c99_212] : memref<144xf32, #tpu.memory_space<smem>>
    %1145 = vector.broadcast %1144 : f32 to vector<8x256xf32>
    %1146 = arith.mulf %1145, %1125 : vector<8x256xf32>
    %1147 = arith.addf %1121, %1146 : vector<8x256xf32>
    %c100_213 = arith.constant 100 : index
    %1148 = memref.load %arg5[%c100_213] : memref<144xf32, #tpu.memory_space<smem>>
    %1149 = vector.broadcast %1148 : f32 to vector<8x256xf32>
    %1150 = arith.mulf %1149, %1127 : vector<8x256xf32>
    %1151 = arith.addf %1135, %1150 : vector<8x256xf32>
    %c101_214 = arith.constant 101 : index
    %1152 = memref.load %arg5[%c101_214] : memref<144xf32, #tpu.memory_space<smem>>
    %1153 = vector.broadcast %1152 : f32 to vector<8x256xf32>
    %1154 = arith.mulf %1153, %1127 : vector<8x256xf32>
    %1155 = arith.addf %1139, %1154 : vector<8x256xf32>
    %c102_215 = arith.constant 102 : index
    %1156 = memref.load %arg5[%c102_215] : memref<144xf32, #tpu.memory_space<smem>>
    %1157 = vector.broadcast %1156 : f32 to vector<8x256xf32>
    %1158 = arith.mulf %1157, %1127 : vector<8x256xf32>
    %1159 = arith.addf %1143, %1158 : vector<8x256xf32>
    %c103_216 = arith.constant 103 : index
    %1160 = memref.load %arg5[%c103_216] : memref<144xf32, #tpu.memory_space<smem>>
    %1161 = vector.broadcast %1160 : f32 to vector<8x256xf32>
    %1162 = arith.mulf %1161, %1127 : vector<8x256xf32>
    %1163 = arith.addf %1147, %1162 : vector<8x256xf32>
    %c104_217 = arith.constant 104 : index
    %1164 = memref.load %arg5[%c104_217] : memref<144xf32, #tpu.memory_space<smem>>
    %1165 = vector.broadcast %1164 : f32 to vector<8x256xf32>
    %1166 = arith.mulf %1165, %1129 : vector<8x256xf32>
    %1167 = arith.addf %1151, %1166 : vector<8x256xf32>
    %c105_218 = arith.constant 105 : index
    %1168 = memref.load %arg5[%c105_218] : memref<144xf32, #tpu.memory_space<smem>>
    %1169 = vector.broadcast %1168 : f32 to vector<8x256xf32>
    %1170 = arith.mulf %1169, %1129 : vector<8x256xf32>
    %1171 = arith.addf %1155, %1170 : vector<8x256xf32>
    %c106_219 = arith.constant 106 : index
    %1172 = memref.load %arg5[%c106_219] : memref<144xf32, #tpu.memory_space<smem>>
    %1173 = vector.broadcast %1172 : f32 to vector<8x256xf32>
    %1174 = arith.mulf %1173, %1129 : vector<8x256xf32>
    %1175 = arith.addf %1159, %1174 : vector<8x256xf32>
    %c107_220 = arith.constant 107 : index
    %1176 = memref.load %arg5[%c107_220] : memref<144xf32, #tpu.memory_space<smem>>
    %1177 = vector.broadcast %1176 : f32 to vector<8x256xf32>
    %1178 = arith.mulf %1177, %1129 : vector<8x256xf32>
    %1179 = arith.addf %1163, %1178 : vector<8x256xf32>
    %c108_221 = arith.constant 108 : index
    %1180 = memref.load %arg5[%c108_221] : memref<144xf32, #tpu.memory_space<smem>>
    %1181 = vector.broadcast %1180 : f32 to vector<8x256xf32>
    %1182 = arith.mulf %1181, %1131 : vector<8x256xf32>
    %1183 = arith.addf %1167, %1182 : vector<8x256xf32>
    %c109_222 = arith.constant 109 : index
    %1184 = memref.load %arg5[%c109_222] : memref<144xf32, #tpu.memory_space<smem>>
    %1185 = vector.broadcast %1184 : f32 to vector<8x256xf32>
    %1186 = arith.mulf %1185, %1131 : vector<8x256xf32>
    %1187 = arith.addf %1171, %1186 : vector<8x256xf32>
    %c110_223 = arith.constant 110 : index
    %1188 = memref.load %arg5[%c110_223] : memref<144xf32, #tpu.memory_space<smem>>
    %1189 = vector.broadcast %1188 : f32 to vector<8x256xf32>
    %1190 = arith.mulf %1189, %1131 : vector<8x256xf32>
    %1191 = arith.addf %1175, %1190 : vector<8x256xf32>
    %c111_224 = arith.constant 111 : index
    %1192 = memref.load %arg5[%c111_224] : memref<144xf32, #tpu.memory_space<smem>>
    %1193 = vector.broadcast %1192 : f32 to vector<8x256xf32>
    %1194 = arith.mulf %1193, %1131 : vector<8x256xf32>
    %1195 = arith.addf %1179, %1194 : vector<8x256xf32>
    %c7_225 = arith.constant 7 : index
    %c0_226 = arith.constant 0 : index
    %c0_227 = arith.constant 0 : index
    %1196 = vector.load %arg2[%c7_225, %c0_226, %c0_227] : memref<9x8x256xf32, #tpu.memory_space<vmem>>, vector<1x8x256xf32>
    %1197 = vector.shape_cast %1196 : vector<1x8x256xf32> to vector<8x256xf32>
    %c240_i32_228 = arith.constant 240 : i32
    %1198 = tpu.dynamic_rotate %673 by %c240_i32_228 dim 1 : vector<8x256xf32>, i32 -> vector<8x256xf32>
    %1199 = arith.mulf %1198, %1197 : vector<8x256xf32>
    %c240_i32_229 = arith.constant 240 : i32
    %1200 = tpu.dynamic_rotate %675 by %c240_i32_229 dim 1 : vector<8x256xf32>, i32 -> vector<8x256xf32>
    %1201 = arith.mulf %1200, %1197 : vector<8x256xf32>
    %c240_i32_230 = arith.constant 240 : i32
    %1202 = tpu.dynamic_rotate %677 by %c240_i32_230 dim 1 : vector<8x256xf32>, i32 -> vector<8x256xf32>
    %1203 = arith.mulf %1202, %1197 : vector<8x256xf32>
    %c240_i32_231 = arith.constant 240 : i32
    %1204 = tpu.dynamic_rotate %679 by %c240_i32_231 dim 1 : vector<8x256xf32>, i32 -> vector<8x256xf32>
    %1205 = arith.mulf %1204, %1197 : vector<8x256xf32>
    %c112_232 = arith.constant 112 : index
    %1206 = memref.load %arg5[%c112_232] : memref<144xf32, #tpu.memory_space<smem>>
    %1207 = vector.broadcast %1206 : f32 to vector<8x256xf32>
    %1208 = arith.mulf %1207, %1199 : vector<8x256xf32>
    %1209 = arith.addf %1183, %1208 : vector<8x256xf32>
    %c113_233 = arith.constant 113 : index
    %1210 = memref.load %arg5[%c113_233] : memref<144xf32, #tpu.memory_space<smem>>
    %1211 = vector.broadcast %1210 : f32 to vector<8x256xf32>
    %1212 = arith.mulf %1211, %1199 : vector<8x256xf32>
    %1213 = arith.addf %1187, %1212 : vector<8x256xf32>
    %c114_234 = arith.constant 114 : index
    %1214 = memref.load %arg5[%c114_234] : memref<144xf32, #tpu.memory_space<smem>>
    %1215 = vector.broadcast %1214 : f32 to vector<8x256xf32>
    %1216 = arith.mulf %1215, %1199 : vector<8x256xf32>
    %1217 = arith.addf %1191, %1216 : vector<8x256xf32>
    %c115_235 = arith.constant 115 : index
    %1218 = memref.load %arg5[%c115_235] : memref<144xf32, #tpu.memory_space<smem>>
    %1219 = vector.broadcast %1218 : f32 to vector<8x256xf32>
    %1220 = arith.mulf %1219, %1199 : vector<8x256xf32>
    %1221 = arith.addf %1195, %1220 : vector<8x256xf32>
    %c116_236 = arith.constant 116 : index
    %1222 = memref.load %arg5[%c116_236] : memref<144xf32, #tpu.memory_space<smem>>
    %1223 = vector.broadcast %1222 : f32 to vector<8x256xf32>
    %1224 = arith.mulf %1223, %1201 : vector<8x256xf32>
    %1225 = arith.addf %1209, %1224 : vector<8x256xf32>
    %c117_237 = arith.constant 117 : index
    %1226 = memref.load %arg5[%c117_237] : memref<144xf32, #tpu.memory_space<smem>>
    %1227 = vector.broadcast %1226 : f32 to vector<8x256xf32>
    %1228 = arith.mulf %1227, %1201 : vector<8x256xf32>
    %1229 = arith.addf %1213, %1228 : vector<8x256xf32>
    %c118_238 = arith.constant 118 : index
    %1230 = memref.load %arg5[%c118_238] : memref<144xf32, #tpu.memory_space<smem>>
    %1231 = vector.broadcast %1230 : f32 to vector<8x256xf32>
    %1232 = arith.mulf %1231, %1201 : vector<8x256xf32>
    %1233 = arith.addf %1217, %1232 : vector<8x256xf32>
    %c119_239 = arith.constant 119 : index
    %1234 = memref.load %arg5[%c119_239] : memref<144xf32, #tpu.memory_space<smem>>
    %1235 = vector.broadcast %1234 : f32 to vector<8x256xf32>
    %1236 = arith.mulf %1235, %1201 : vector<8x256xf32>
    %1237 = arith.addf %1221, %1236 : vector<8x256xf32>
    %c120_240 = arith.constant 120 : index
    %1238 = memref.load %arg5[%c120_240] : memref<144xf32, #tpu.memory_space<smem>>
    %1239 = vector.broadcast %1238 : f32 to vector<8x256xf32>
    %1240 = arith.mulf %1239, %1203 : vector<8x256xf32>
    %1241 = arith.addf %1225, %1240 : vector<8x256xf32>
    %c121_241 = arith.constant 121 : index
    %1242 = memref.load %arg5[%c121_241] : memref<144xf32, #tpu.memory_space<smem>>
    %1243 = vector.broadcast %1242 : f32 to vector<8x256xf32>
    %1244 = arith.mulf %1243, %1203 : vector<8x256xf32>
    %1245 = arith.addf %1229, %1244 : vector<8x256xf32>
    %c122_242 = arith.constant 122 : index
    %1246 = memref.load %arg5[%c122_242] : memref<144xf32, #tpu.memory_space<smem>>
    %1247 = vector.broadcast %1246 : f32 to vector<8x256xf32>
    %1248 = arith.mulf %1247, %1203 : vector<8x256xf32>
    %1249 = arith.addf %1233, %1248 : vector<8x256xf32>
    %c123_243 = arith.constant 123 : index
    %1250 = memref.load %arg5[%c123_243] : memref<144xf32, #tpu.memory_space<smem>>
    %1251 = vector.broadcast %1250 : f32 to vector<8x256xf32>
    %1252 = arith.mulf %1251, %1203 : vector<8x256xf32>
    %1253 = arith.addf %1237, %1252 : vector<8x256xf32>
    %c124_244 = arith.constant 124 : index
    %1254 = memref.load %arg5[%c124_244] : memref<144xf32, #tpu.memory_space<smem>>
    %1255 = vector.broadcast %1254 : f32 to vector<8x256xf32>
    %1256 = arith.mulf %1255, %1205 : vector<8x256xf32>
    %1257 = arith.addf %1241, %1256 : vector<8x256xf32>
    %c125_245 = arith.constant 125 : index
    %1258 = memref.load %arg5[%c125_245] : memref<144xf32, #tpu.memory_space<smem>>
    %1259 = vector.broadcast %1258 : f32 to vector<8x256xf32>
    %1260 = arith.mulf %1259, %1205 : vector<8x256xf32>
    %1261 = arith.addf %1245, %1260 : vector<8x256xf32>
    %c126_246 = arith.constant 126 : index
    %1262 = memref.load %arg5[%c126_246] : memref<144xf32, #tpu.memory_space<smem>>
    %1263 = vector.broadcast %1262 : f32 to vector<8x256xf32>
    %1264 = arith.mulf %1263, %1205 : vector<8x256xf32>
    %1265 = arith.addf %1249, %1264 : vector<8x256xf32>
    %c127_247 = arith.constant 127 : index
    %1266 = memref.load %arg5[%c127_247] : memref<144xf32, #tpu.memory_space<smem>>
    %1267 = vector.broadcast %1266 : f32 to vector<8x256xf32>
    %1268 = arith.mulf %1267, %1205 : vector<8x256xf32>
    %1269 = arith.addf %1253, %1268 : vector<8x256xf32>
    %c8_248 = arith.constant 8 : index
    %c0_249 = arith.constant 0 : index
    %c0_250 = arith.constant 0 : index
    %1270 = vector.load %arg2[%c8_248, %c0_249, %c0_250] : memref<9x8x256xf32, #tpu.memory_space<vmem>>, vector<1x8x256xf32>
    %1271 = vector.shape_cast %1270 : vector<1x8x256xf32> to vector<8x256xf32>
    %c239_i32_251 = arith.constant 239 : i32
    %1272 = tpu.dynamic_rotate %673 by %c239_i32_251 dim 1 : vector<8x256xf32>, i32 -> vector<8x256xf32>
    %1273 = arith.mulf %1272, %1271 : vector<8x256xf32>
    %c239_i32_252 = arith.constant 239 : i32
    %1274 = tpu.dynamic_rotate %675 by %c239_i32_252 dim 1 : vector<8x256xf32>, i32 -> vector<8x256xf32>
    %1275 = arith.mulf %1274, %1271 : vector<8x256xf32>
    %c239_i32_253 = arith.constant 239 : i32
    %1276 = tpu.dynamic_rotate %677 by %c239_i32_253 dim 1 : vector<8x256xf32>, i32 -> vector<8x256xf32>
    %1277 = arith.mulf %1276, %1271 : vector<8x256xf32>
    %c239_i32_254 = arith.constant 239 : i32
    %1278 = tpu.dynamic_rotate %679 by %c239_i32_254 dim 1 : vector<8x256xf32>, i32 -> vector<8x256xf32>
    %1279 = arith.mulf %1278, %1271 : vector<8x256xf32>
    %c128_255 = arith.constant 128 : index
    %1280 = memref.load %arg5[%c128_255] : memref<144xf32, #tpu.memory_space<smem>>
    %1281 = vector.broadcast %1280 : f32 to vector<8x256xf32>
    %1282 = arith.mulf %1281, %1273 : vector<8x256xf32>
    %1283 = arith.addf %1257, %1282 : vector<8x256xf32>
    %c129_256 = arith.constant 129 : index
    %1284 = memref.load %arg5[%c129_256] : memref<144xf32, #tpu.memory_space<smem>>
    %1285 = vector.broadcast %1284 : f32 to vector<8x256xf32>
    %1286 = arith.mulf %1285, %1273 : vector<8x256xf32>
    %1287 = arith.addf %1261, %1286 : vector<8x256xf32>
    %c130_257 = arith.constant 130 : index
    %1288 = memref.load %arg5[%c130_257] : memref<144xf32, #tpu.memory_space<smem>>
    %1289 = vector.broadcast %1288 : f32 to vector<8x256xf32>
    %1290 = arith.mulf %1289, %1273 : vector<8x256xf32>
    %1291 = arith.addf %1265, %1290 : vector<8x256xf32>
    %c131_258 = arith.constant 131 : index
    %1292 = memref.load %arg5[%c131_258] : memref<144xf32, #tpu.memory_space<smem>>
    %1293 = vector.broadcast %1292 : f32 to vector<8x256xf32>
    %1294 = arith.mulf %1293, %1273 : vector<8x256xf32>
    %1295 = arith.addf %1269, %1294 : vector<8x256xf32>
    %c132_259 = arith.constant 132 : index
    %1296 = memref.load %arg5[%c132_259] : memref<144xf32, #tpu.memory_space<smem>>
    %1297 = vector.broadcast %1296 : f32 to vector<8x256xf32>
    %1298 = arith.mulf %1297, %1275 : vector<8x256xf32>
    %1299 = arith.addf %1283, %1298 : vector<8x256xf32>
    %c133_260 = arith.constant 133 : index
    %1300 = memref.load %arg5[%c133_260] : memref<144xf32, #tpu.memory_space<smem>>
    %1301 = vector.broadcast %1300 : f32 to vector<8x256xf32>
    %1302 = arith.mulf %1301, %1275 : vector<8x256xf32>
    %1303 = arith.addf %1287, %1302 : vector<8x256xf32>
    %c134_261 = arith.constant 134 : index
    %1304 = memref.load %arg5[%c134_261] : memref<144xf32, #tpu.memory_space<smem>>
    %1305 = vector.broadcast %1304 : f32 to vector<8x256xf32>
    %1306 = arith.mulf %1305, %1275 : vector<8x256xf32>
    %1307 = arith.addf %1291, %1306 : vector<8x256xf32>
    %c135_262 = arith.constant 135 : index
    %1308 = memref.load %arg5[%c135_262] : memref<144xf32, #tpu.memory_space<smem>>
    %1309 = vector.broadcast %1308 : f32 to vector<8x256xf32>
    %1310 = arith.mulf %1309, %1275 : vector<8x256xf32>
    %1311 = arith.addf %1295, %1310 : vector<8x256xf32>
    %c136_263 = arith.constant 136 : index
    %1312 = memref.load %arg5[%c136_263] : memref<144xf32, #tpu.memory_space<smem>>
    %1313 = vector.broadcast %1312 : f32 to vector<8x256xf32>
    %1314 = arith.mulf %1313, %1277 : vector<8x256xf32>
    %1315 = arith.addf %1299, %1314 : vector<8x256xf32>
    %c137_264 = arith.constant 137 : index
    %1316 = memref.load %arg5[%c137_264] : memref<144xf32, #tpu.memory_space<smem>>
    %1317 = vector.broadcast %1316 : f32 to vector<8x256xf32>
    %1318 = arith.mulf %1317, %1277 : vector<8x256xf32>
    %1319 = arith.addf %1303, %1318 : vector<8x256xf32>
    %c138_265 = arith.constant 138 : index
    %1320 = memref.load %arg5[%c138_265] : memref<144xf32, #tpu.memory_space<smem>>
    %1321 = vector.broadcast %1320 : f32 to vector<8x256xf32>
    %1322 = arith.mulf %1321, %1277 : vector<8x256xf32>
    %1323 = arith.addf %1307, %1322 : vector<8x256xf32>
    %c139_266 = arith.constant 139 : index
    %1324 = memref.load %arg5[%c139_266] : memref<144xf32, #tpu.memory_space<smem>>
    %1325 = vector.broadcast %1324 : f32 to vector<8x256xf32>
    %1326 = arith.mulf %1325, %1277 : vector<8x256xf32>
    %1327 = arith.addf %1311, %1326 : vector<8x256xf32>
    %c140_267 = arith.constant 140 : index
    %1328 = memref.load %arg5[%c140_267] : memref<144xf32, #tpu.memory_space<smem>>
    %1329 = vector.broadcast %1328 : f32 to vector<8x256xf32>
    %1330 = arith.mulf %1329, %1279 : vector<8x256xf32>
    %1331 = arith.addf %1315, %1330 : vector<8x256xf32>
    %c141_268 = arith.constant 141 : index
    %1332 = memref.load %arg5[%c141_268] : memref<144xf32, #tpu.memory_space<smem>>
    %1333 = vector.broadcast %1332 : f32 to vector<8x256xf32>
    %1334 = arith.mulf %1333, %1279 : vector<8x256xf32>
    %1335 = arith.addf %1319, %1334 : vector<8x256xf32>
    %c142_269 = arith.constant 142 : index
    %1336 = memref.load %arg5[%c142_269] : memref<144xf32, #tpu.memory_space<smem>>
    %1337 = vector.broadcast %1336 : f32 to vector<8x256xf32>
    %1338 = arith.mulf %1337, %1279 : vector<8x256xf32>
    %1339 = arith.addf %1323, %1338 : vector<8x256xf32>
    %c143_270 = arith.constant 143 : index
    %1340 = memref.load %arg5[%c143_270] : memref<144xf32, #tpu.memory_space<smem>>
    %1341 = vector.broadcast %1340 : f32 to vector<8x256xf32>
    %1342 = arith.mulf %1341, %1279 : vector<8x256xf32>
    %1343 = arith.addf %1327, %1342 : vector<8x256xf32>
    %c0_271 = arith.constant 0 : index
    %c0_272 = arith.constant 0 : index
    %c0_273 = arith.constant 0 : index
    %1344 = vector.load %arg1[%c0_271, %c0_272, %c0_273] : memref<4x8x256xf32, #tpu.memory_space<vmem>>, vector<1x8x256xf32>
    %1345 = vector.shape_cast %1344 : vector<1x8x256xf32> to vector<8x256xf32>
    %1346 = arith.addf %1345, %1331 : vector<8x256xf32>
    %cst_274 = arith.constant 0.000000e+00 : f32
    %1347 = vector.broadcast %cst_274 : f32 to vector<8x256xf32>
    %1348 = arith.maximumf %1346, %1347 : vector<8x256xf32>
    %c0_275 = arith.constant 0 : index
    %c0_276 = arith.constant 0 : index
    %c0_277 = arith.constant 0 : index
    %1349 = vector.load %arg7[%c0_275, %c0_276, %c0_277] : memref<4x8x256xf32, #tpu.memory_space<vmem>>, vector<1x8x256xf32>
    %1350 = vector.shape_cast %1349 : vector<1x8x256xf32> to vector<8x256xf32>
    %1351 = vector.shape_cast %1348 : vector<8x256xf32> to vector<1x8x256xf32>
    tpu.vector_store %arg7[%c0_275, %c0_276, %c0_277], %1351 {strides = array<i32>} : memref<4x8x256xf32, #tpu.memory_space<vmem>>, vector<1x8x256xf32>,
    %c1_278 = arith.constant 1 : index
    %c0_279 = arith.constant 0 : index
    %c0_280 = arith.constant 0 : index
    %1352 = vector.load %arg1[%c1_278, %c0_279, %c0_280] : memref<4x8x256xf32, #tpu.memory_space<vmem>>, vector<1x8x256xf32>
    %1353 = vector.shape_cast %1352 : vector<1x8x256xf32> to vector<8x256xf32>
    %1354 = arith.addf %1353, %1335 : vector<8x256xf32>
    %cst_281 = arith.constant 0.000000e+00 : f32
    %1355 = vector.broadcast %cst_281 : f32 to vector<8x256xf32>
    %1356 = arith.maximumf %1354, %1355 : vector<8x256xf32>
    %c1_282 = arith.constant 1 : index
    %c0_283 = arith.constant 0 : index
    %c0_284 = arith.constant 0 : index
    %1357 = vector.load %arg7[%c1_282, %c0_283, %c0_284] : memref<4x8x256xf32, #tpu.memory_space<vmem>>, vector<1x8x256xf32>
    %1358 = vector.shape_cast %1357 : vector<1x8x256xf32> to vector<8x256xf32>
    %1359 = vector.shape_cast %1356 : vector<8x256xf32> to vector<1x8x256xf32>
    tpu.vector_store %arg7[%c1_282, %c0_283, %c0_284], %1359 {strides = array<i32>} : memref<4x8x256xf32, #tpu.memory_space<vmem>>, vector<1x8x256xf32>,
    %c2_285 = arith.constant 2 : index
    %c0_286 = arith.constant 0 : index
    %c0_287 = arith.constant 0 : index
    %1360 = vector.load %arg1[%c2_285, %c0_286, %c0_287] : memref<4x8x256xf32, #tpu.memory_space<vmem>>, vector<1x8x256xf32>
    %1361 = vector.shape_cast %1360 : vector<1x8x256xf32> to vector<8x256xf32>
    %1362 = arith.addf %1361, %1339 : vector<8x256xf32>
    %cst_288 = arith.constant 0.000000e+00 : f32
    %1363 = vector.broadcast %cst_288 : f32 to vector<8x256xf32>
    %1364 = arith.maximumf %1362, %1363 : vector<8x256xf32>
    %c2_289 = arith.constant 2 : index
    %c0_290 = arith.constant 0 : index
    %c0_291 = arith.constant 0 : index
    %1365 = vector.load %arg7[%c2_289, %c0_290, %c0_291] : memref<4x8x256xf32, #tpu.memory_space<vmem>>, vector<1x8x256xf32>
    %1366 = vector.shape_cast %1365 : vector<1x8x256xf32> to vector<8x256xf32>
    %1367 = vector.shape_cast %1364 : vector<8x256xf32> to vector<1x8x256xf32>
    tpu.vector_store %arg7[%c2_289, %c0_290, %c0_291], %1367 {strides = array<i32>} : memref<4x8x256xf32, #tpu.memory_space<vmem>>, vector<1x8x256xf32>,
    %c3_292 = arith.constant 3 : index
    %c0_293 = arith.constant 0 : index
    %c0_294 = arith.constant 0 : index
    %1368 = vector.load %arg1[%c3_292, %c0_293, %c0_294] : memref<4x8x256xf32, #tpu.memory_space<vmem>>, vector<1x8x256xf32>
    %1369 = vector.shape_cast %1368 : vector<1x8x256xf32> to vector<8x256xf32>
    %1370 = arith.addf %1369, %1343 : vector<8x256xf32>
    %cst_295 = arith.constant 0.000000e+00 : f32
    %1371 = vector.broadcast %cst_295 : f32 to vector<8x256xf32>
    %1372 = arith.maximumf %1370, %1371 : vector<8x256xf32>
    %c3_296 = arith.constant 3 : index
    %c0_297 = arith.constant 0 : index
    %c0_298 = arith.constant 0 : index
    %1373 = vector.load %arg7[%c3_296, %c0_297, %c0_298] : memref<4x8x256xf32, #tpu.memory_space<vmem>>, vector<1x8x256xf32>
    %1374 = vector.shape_cast %1373 : vector<1x8x256xf32> to vector<8x256xf32>
    %1375 = vector.shape_cast %1372 : vector<8x256xf32> to vector<1x8x256xf32>
    tpu.vector_store %arg7[%c3_296, %c0_297, %c0_298], %1375 {strides = array<i32>} : memref<4x8x256xf32, #tpu.memory_space<vmem>>, vector<1x8x256xf32>,
    return
  }
  func.func @transform_0(%arg0: i32) -> (i32, i32, i32) {
    %c0_i32 = arith.constant 0 : i32
    %c0_i32_0 = arith.constant 0 : i32
    %c0_i32_1 = arith.constant 0 : i32
    return %c0_i32, %arg0, %c0_i32_0 : i32, i32, i32
  }
  func.func @transform_1(%arg0: i32) -> (i32, i32, i32) {
    %c0_i32 = arith.constant 0 : i32
    %c0_i32_0 = arith.constant 0 : i32
    %c0_i32_1 = arith.constant 0 : i32
    %c0_i32_2 = arith.constant 0 : i32
    return %c0_i32, %c0_i32_0, %c0_i32_1 : i32, i32, i32
  }
  func.func @transform_2(%arg0: i32) -> i32 {
    %c0_i32 = arith.constant 0 : i32
    %c0_i32_0 = arith.constant 0 : i32
    return %c0_i32 : i32
  }
  func.func @transform_3(%arg0: i32) -> i32 {
    %c0_i32 = arith.constant 0 : i32
    %c0_i32_0 = arith.constant 0 : i32
    return %c0_i32 : i32
  }
  func.func @transform_4(%arg0: i32) -> i32 {
    %c0_i32 = arith.constant 0 : i32
    %c0_i32_0 = arith.constant 0 : i32
    return %c0_i32 : i32
  }
  func.func @transform_5(%arg0: i32) -> i32 {
    %c0_i32 = arith.constant 0 : i32
    %c0_i32_0 = arith.constant 0 : i32
    return %c0_i32 : i32
  }
  func.func @transform_6(%arg0: i32) -> (i32, i32, i32) {
    %c0_i32 = arith.constant 0 : i32
    %c0_i32_0 = arith.constant 0 : i32
    %c0_i32_1 = arith.constant 0 : i32
    return %c0_i32, %arg0, %c0_i32_0 : i32, i32, i32
  }
}

</mosaic_0001>

<llo_original>
// kernel: resblock_pallas.1
$region0: #{resblock_pallas.1}
  #allocation0 [shape = 'u32[]', space=smem, size = 0x4, offset = 0x4, fixed_abs, tag = 'smem constant byte address 0x4 - core index']
  #allocation1 [shape = 'u32[144,128]{1,0:T(1,128)}', space=vmem, size = 0x12000, scoped, tag = 'internal scratch']
  %s0 = inlined_call_operand.vmem [shape: f32[4,8,256], index: 0, kind: input, shape index: {}]
  %s1 = inlined_call_operand.vmem [shape: f32[9,8,256], index: 1, kind: input, shape index: {}]
  %s2 = inlined_call_operand.vmem [shape: f32[144], index: 2, kind: input, shape index: {}]
  %s3 = inlined_call_operand.vmem [shape: f32[4], index: 3, kind: input, shape index: {}]
  %s4 = inlined_call_operand.vmem [shape: f32[144], index: 4, kind: input, shape index: {}]
  %s5 = inlined_call_operand.vmem [shape: f32[4], index: 5, kind: input, shape index: {}]
  %s6 = inlined_call_operand.vmem [shape: f32[4,8,256], index: 6, kind: output, shape index: {}]
  %s7 = sld [smem:[#allocation0]]
  $region50: #{resblock_pallas.1} parent=0
    _
  %s9 = ssub.s32 1, %s7
  %s10 = scalar_select 0, %s9, %s7
  $region1: #{resblock_pallas.1} parent=0
    #allocation2 [shape = 'u8[1024]{0}', space=smem, size = 0x400, scoped, tag = 'input window, operand 2, single buffered']
    #allocation3 [shape = 's32[1]{0}', space=sflag, size = 0x4, scoped, tag = 'scoped memory for resblock_pallas.1']
    #allocation4 [shape = 'u8[512]{0}', space=smem, size = 0x200, scoped, tag = 'input window, operand 3, single buffered']
    #allocation5 [shape = 's32[1]{0}', space=sflag, size = 0x4, scoped, tag = 'scoped memory for resblock_pallas.1']
    #allocation6 [shape = 'u8[1024]{0}', space=smem, size = 0x400, scoped, tag = 'input window, operand 4, single buffered']
    #allocation7 [shape = 'u8[512]{0}', space=smem, size = 0x200, scoped, tag = 'input window, operand 5, single buffered']
    #allocation8 [shape = 's32[1]{0}', space=sflag, size = 0x4, scoped, tag = 'scoped memory for resblock_pallas.1']
    %11 = vsyncpa [#allocation3], 0
    %12 = vsyncpa [#allocation5], 0
    %13 = vsyncpa [#allocation8], 0
    // Predicated region
    $region2: #{resblock_pallas.1} parent=1 // pred_check
      _
    $region3: #{resblock_pallas.1} parent=1 // pred_check_branch
      %15 = sbr.rel (0) target = $region5
    $region4: #{resblock_pallas.1} parent=1 // pred_region
      _
    $region5: #{resblock_pallas.1} parent=1 // pred_fallthru
      _
    // Predicated region
    $region6: #{resblock_pallas.1} parent=1 // pred_check
      _
    $region7: #{resblock_pallas.1} parent=1 // pred_check_branch
      %17 = sbr.rel (0) target = $region9
    $region8: #{resblock_pallas.1} parent=1 // pred_region
      _
    $region9: #{resblock_pallas.1} parent=1 // pred_fallthru
      _
    // Predicated region
    $region10: #{resblock_pallas.1} parent=1 // pred_check
      _
    $region11: #{resblock_pallas.1} parent=1 // pred_check_branch
      %19 = sbr.rel (0) target = $region13
    $region12: #{resblock_pallas.1} parent=1 // pred_region
      %s21 = ssub.s32 32, 32
      %22 = vsyncadd [#allocation3], %s21
      %s24 = sshll.u32 %s2, 4
      %s25 = int_to_ptr.vmem [resolvable:$true] %s24
      %27 = dma.vmem_to_smem %s25, 32, [#allocation2], [#allocation3]
    $region13: #{resblock_pallas.1} parent=1 // pred_fallthru
      _
    // Predicated region
    $region14: #{resblock_pallas.1} parent=1 // pred_check
      _
    $region15: #{resblock_pallas.1} parent=1 // pred_check_branch
      %29 = sbr.rel (0) target = $region17
    $region16: #{resblock_pallas.1} parent=1 // pred_region
      %s31 = ssub.s32 16, 16
      %32 = vsyncadd [#allocation5], %s31
      %s34 = sshll.u32 %s3, 4
      %s35 = int_to_ptr.vmem [resolvable:$true] %s34
      %37 = dma.vmem_to_smem %s35, 16, [#allocation4], [#allocation5]
    $region17: #{resblock_pallas.1} parent=1 // pred_fallthru
      _
    // Predicated region
    $region18: #{resblock_pallas.1} parent=1 // pred_check
      _
    $region19: #{resblock_pallas.1} parent=1 // pred_check_branch
      %39 = sbr.rel (0) target = $region21
    $region20: #{resblock_pallas.1} parent=1 // pred_region
      %s41 = ssub.s32 32, 32
      %42 = vsyncadd [#allocation5], %s41
      %s44 = sshll.u32 %s4, 4
      %s45 = int_to_ptr.vmem [resolvable:$true] %s44
      %47 = dma.vmem_to_smem %s45, 32, [#allocation6], [#allocation5]
    $region21: #{resblock_pallas.1} parent=1 // pred_fallthru
      _
    // Predicated region
    $region22: #{resblock_pallas.1} parent=1 // pred_check
      _
    $region23: #{resblock_pallas.1} parent=1 // pred_check_branch
      %49 = sbr.rel (0) target = $region25
    $region24: #{resblock_pallas.1} parent=1 // pred_region
      %s51 = ssub.s32 16, 16
      %52 = vsyncadd [#allocation8], %s51
      %s54 = sshll.u32 %s5, 4
      %s55 = int_to_ptr.vmem [resolvable:$true] %s54
      %57 = dma.vmem_to_smem %s55, 16, [#allocation7], [#allocation8]
    $region25: #{resblock_pallas.1} parent=1 // pred_fallthru
      _
    // Predicated region
    $region26: #{resblock_pallas.1} parent=1 // pred_check
      _
    $region27: #{resblock_pallas.1} parent=1 // pred_check_branch
      %59 = sbr.rel (0) target = $region29
    $region28: #{resblock_pallas.1} parent=1 // pred_region
      %60 = dma.done [#allocation3], 32
    $region29: #{resblock_pallas.1} parent=1 // pred_fallthru
      _
    // Predicated region
    $region30: #{resblock_pallas.1} parent=1 // pred_check
      _
    $region31: #{resblock_pallas.1} parent=1 // pred_check_branch
      %62 = sbr.rel (0) target = $region33
    $region32: #{resblock_pallas.1} parent=1 // pred_region
      %63 = dma.done [#allocation5], 16
    $region33: #{resblock_pallas.1} parent=1 // pred_fallthru
      _
    // Predicated region
    $region34: #{resblock_pallas.1} parent=1 // pred_check
      _
    $region35: #{resblock_pallas.1} parent=1 // pred_check_branch
      %65 = sbr.rel (0) target = $region37
    $region36: #{resblock_pallas.1} parent=1 // pred_region
      %66 = dma.done [#allocation5], 32
    $region37: #{resblock_pallas.1} parent=1 // pred_fallthru
      _
    // Predicated region
    $region38: #{resblock_pallas.1} parent=1 // pred_check
      _
    $region39: #{resblock_pallas.1} parent=1 // pred_check_branch
      %68 = sbr.rel (0) target = $region41
    $region40: #{resblock_pallas.1} parent=1 // pred_region
      %69 = dma.done [#allocation8], 16
    $region41: #{resblock_pallas.1} parent=1 // pred_fallthru
      _
    %70 = sfence
    %v71 = vld [vmem:[%s0] sm:$0xff]
    %v72 = vld [vmem:[%s0 + $0x8] sm:$0xff]
    %s73 = scalar_lea.vmem %s0, 16
    %v74 = vld [vmem:[%s73] sm:$0xff]
    %v75 = vld [vmem:[%s73 + $0x8] sm:$0xff]
    %s76 = scalar_lea.vmem %s0, 32
    %v77 = vld [vmem:[%s76] sm:$0xff]
    %v78 = vld [vmem:[%s76 + $0x8] sm:$0xff]
    %s79 = scalar_lea.vmem %s0, 48
    %v80 = vld [vmem:[%s79] sm:$0xff]
    %v81 = vld [vmem:[%s79 + $0x8] sm:$0xff]
    %s82 = sld [smem:[#allocation4]]
    %v83 = vstv %s82
    %s84 = sld [smem:[#allocation4 + $0x1]]
    %v85 = vstv %s84
    %s86 = sld [smem:[#allocation4 + $0x2]]
    %v87 = vstv %s86
    %s88 = sld [smem:[#allocation4 + $0x3]]
    %v89 = vstv %s88
    %v90 = vld [vmem:[%s1] sm:$0xff]
    %v91 = vld [vmem:[%s1 + $0x8] sm:$0xff]
    %92 = vrot.lane.b32.xlu0 %v71, 17
    %v93 = vpop.permute.xlu0 %92
    %94 = vrot.lane.b32.xlu0 %v72, 17
    %v95 = vpop.permute.xlu0 %94
    %v96 = vlaneseq
    %v97 = vand.u32 %v96, 127
    %vm98 = vcmp.lt.s32.totalorder %v97, 17
    %v99 = vsel %vm98, %v93, %v95
    %v100 = vsel %vm98, %v95, %v93
    %v101 = vmul.f32 %v100, %v90
    %v102 = vmul.f32 %v99, %v91
    %103 = vrot.lane.b32.xlu0 %v74, 17
    %v104 = vpop.permute.xlu0 %103
    %105 = vrot.lane.b32.xlu0 %v75, 17
    %v106 = vpop.permute.xlu0 %105
    %v107 = vsel %vm98, %v104, %v106
    %v108 = vsel %vm98, %v106, %v104
    %v109 = vmul.f32 %v108, %v90
    %v110 = vmul.f32 %v107, %v91
    %111 = vrot.lane.b32.xlu0 %v77, 17
    %v112 = vpop.permute.xlu0 %111
    %113 = vrot.lane.b32.xlu0 %v78, 17
    %v114 = vpop.permute.xlu0 %113
    %v115 = vsel %vm98, %v112, %v114
    %v116 = vsel %vm98, %v114, %v112
    %v117 = vmul.f32 %v116, %v90
    %v118 = vmul.f32 %v115, %v91
    %119 = vrot.lane.b32.xlu0 %v80, 17
    %v120 = vpop.permute.xlu0 %119
    %121 = vrot.lane.b32.xlu0 %v81, 17
    %v122 = vpop.permute.xlu0 %121
    %v123 = vsel %vm98, %v120, %v122
    %v124 = vsel %vm98, %v122, %v120
    %v125 = vmul.f32 %v124, %v90
    %v126 = vmul.f32 %v123, %v91
    %s127 = sld [smem:[#allocation2]]
    %v128 = vstv %s127
    %v129 = vmul.f32 %v128, %v101
    %v130 = vmul.f32 %v128, %v102
    %v131 = vadd.f32 %v83, %v129
    %v132 = vadd.f32 %v83, %v130
    %s133 = sld [smem:[#allocation2 + $0x1]]
    %v134 = vstv %s133
    %v135 = vmul.f32 %v134, %v101
    %v136 = vmul.f32 %v134, %v102
    %v137 = vadd.f32 %v85, %v135
    %v138 = vadd.f32 %v85, %v136
    %s139 = sld [smem:[#allocation2 + $0x2]]
    %v140 = vstv %s139
    %v141 = vmul.f32 %v140, %v101
    %v142 = vmul.f32 %v140, %v102
    %v143 = vadd.f32 %v87, %v141
    %v144 = vadd.f32 %v87, %v142
    %s145 = sld [smem:[#allocation2 + $0x3]]
    %v146 = vstv %s145
    %v147 = vmul.f32 %v146, %v101
    %v148 = vmul.f32 %v146, %v102
    %v149 = vadd.f32 %v89, %v147
    %v150 = vadd.f32 %v89, %v148
    %s151 = sld [smem:[#allocation2 + $0x4]]
    %v152 = vstv %s151
    %v153 = vmul.f32 %v152, %v109
    %v154 = vmul.f32 %v152, %v110
    %v155 = vadd.f32 %v131, %v153
    %v156 = vadd.f32 %v132, %v154
    %s157 = sld [smem:[#allocation2 + $0x5]]
    %v158 = vstv %s157
    %v159 = vmul.f32 %v158, %v109
    %v160 = vmul.f32 %v158, %v110
    %v161 = vadd.f32 %v137, %v159
    %v162 = vadd.f32 %v138, %v160
    %s163 = sld [smem:[#allocation2 + $0x6]]
    %v164 = vstv %s163
    %v165 = vmul.f32 %v164, %v109
    %v166 = vmul.f32 %v164, %v110
    %v167 = vadd.f32 %v143, %v165
    %v168 = vadd.f32 %v144, %v166
    %s169 = sld [smem:[#allocation2 + $0x7]]
    %v170 = vstv %s169
    %v171 = vmul.f32 %v170, %v109
    %v172 = vmul.f32 %v170, %v110
    %v173 = vadd.f32 %v149, %v171
    %v174 = vadd.f32 %v150, %v172
    %s175 = sld [smem:[#allocation2 + $0x8]]
    %v176 = vstv %s175
    %v177 = vmul.f32 %v176, %v117
    %v178 = vmul.f32 %v176, %v118
    %v179 = vadd.f32 %v155, %v177
    %v180 = vadd.f32 %v156, %v178
    %s181 = sld [smem:[#allocation2 + $0x9]]
    %v182 = vstv %s181
    %v183 = vmul.f32 %v182, %v117
    %v184 = vmul.f32 %v182, %v118
    %v185 = vadd.f32 %v161, %v183
    %v186 = vadd.f32 %v162, %v184
    %s187 = sld [smem:[#allocation2 + $0xa]]
    %v188 = vstv %s187
    %v189 = vmul.f32 %v188, %v117
    %v190 = vmul.f32 %v188, %v118
    %v191 = vadd.f32 %v167, %v189
    %v192 = vadd.f32 %v168, %v190
    %s193 = sld [smem:[#allocation2 + $0xb]]
    %v194 = vstv %s193
    %v195 = vmul.f32 %v194, %v117
    %v196 = vmul.f32 %v194, %v118
    %v197 = vadd.f32 %v173, %v195
    %v198 = vadd.f32 %v174, %v196
    %s199 = sld [smem:[#allocation2 + $0xc]]
    %v200 = vstv %s199
    %v201 = vmul.f32 %v200, %v125
    %v202 = vmul.f32 %v200, %v126
    %v203 = vadd.f32 %v179, %v201
    %v204 = vadd.f32 %v180, %v202
    %s205 = sld [smem:[#allocation2 + $0xd]]
    %v206 = vstv %s205
    %v207 = vmul.f32 %v206, %v125
    %v208 = vmul.f32 %v206, %v126
    %v209 = vadd.f32 %v185, %v207
    %v210 = vadd.f32 %v186, %v208
    %s211 = sld [smem:[#allocation2 + $0xe]]
    %v212 = vstv %s211
    %v213 = vmul.f32 %v212, %v125
    %v214 = vmul.f32 %v212, %v126
    %v215 = vadd.f32 %v191, %v213
    %v216 = vadd.f32 %v192, %v214
    %s217 = sld [smem:[#allocation2 + $0xf]]
    %v218 = vstv %s217
    %v219 = vmul.f32 %v218, %v125
    %v220 = vmul.f32 %v218, %v126
    %v221 = vadd.f32 %v197, %v219
    %v222 = vadd.f32 %v198, %v220
    %s223 = scalar_lea.vmem %s1, 16
    %v224 = vld [vmem:[%s223] sm:$0xff]
    %v225 = vld [vmem:[%s223 + $0x8] sm:$0xff]
    %226 = vrot.lane.b32.xlu0 %v71, 16
    %v227 = vpop.permute.xlu0 %226
    %228 = vrot.lane.b32.xlu0 %v72, 16
    %v229 = vpop.permute.xlu0 %228
    %vm230 = vcmp.lt.s32.totalorder %v97, 16
    %v231 = vsel %vm230, %v227, %v229
    %v232 = vsel %vm230, %v229, %v227
    %v233 = vmul.f32 %v232, %v224
    %v234 = vmul.f32 %v231, %v225
    %235 = vrot.lane.b32.xlu0 %v74, 16
    %v236 = vpop.permute.xlu0 %235
    %237 = vrot.lane.b32.xlu0 %v75, 16
    %v238 = vpop.permute.xlu0 %237
    %v239 = vsel %vm230, %v236, %v238
    %v240 = vsel %vm230, %v238, %v236
    %v241 = vmul.f32 %v240, %v224
    %v242 = vmul.f32 %v239, %v225
    %243 = vrot.lane.b32.xlu0 %v77, 16
    %v244 = vpop.permute.xlu0 %243
    %245 = vrot.lane.b32.xlu0 %v78, 16
    %v246 = vpop.permute.xlu0 %245
    %v247 = vsel %vm230, %v244, %v246
    %v248 = vsel %vm230, %v246, %v244
    %v249 = vmul.f32 %v248, %v224
    %v250 = vmul.f32 %v247, %v225
    %251 = vrot.lane.b32.xlu0 %v80, 16
    %v252 = vpop.permute.xlu0 %251
    %253 = vrot.lane.b32.xlu0 %v81, 16
    %v254 = vpop.permute.xlu0 %253
    %v255 = vsel %vm230, %v252, %v254
    %v256 = vsel %vm230, %v254, %v252
    %v257 = vmul.f32 %v256, %v224
    %v258 = vmul.f32 %v255, %v225
    %s259 = sld [smem:[#allocation2 + $0x10]]
    %v260 = vstv %s259
    %v261 = vmul.f32 %v260, %v233
    %v262 = vmul.f32 %v260, %v234
    %v263 = vadd.f32 %v203, %v261
    %v264 = vadd.f32 %v204, %v262
    %s265 = sld [smem:[#allocation2 + $0x11]]
    %v266 = vstv %s265
    %v267 = vmul.f32 %v266, %v233
    %v268 = vmul.f32 %v266, %v234
    %v269 = vadd.f32 %v209, %v267
    %v270 = vadd.f32 %v210, %v268
    %s271 = sld [smem:[#allocation2 + $0x12]]
    %v272 = vstv %s271
    %v273 = vmul.f32 %v272, %v233
    %v274 = vmul.f32 %v272, %v234
    %v275 = vadd.f32 %v215, %v273
    %v276 = vadd.f32 %v216, %v274
    %s277 = sld [smem:[#allocation2 + $0x13]]
    %v278 = vstv %s277
    %v279 = vmul.f32 %v278, %v233
    %v280 = vmul.f32 %v278, %v234
    %v281 = vadd.f32 %v221, %v279
    %v282 = vadd.f32 %v222, %v280
    %s283 = sld [smem:[#allocation2 + $0x14]]
    %v284 = vstv %s283
    %v285 = vmul.f32 %v284, %v241
    %v286 = vmul.f32 %v284, %v242
    %v287 = vadd.f32 %v263, %v285
    %v288 = vadd.f32 %v264, %v286
    %s289 = sld [smem:[#allocation2 + $0x15]]
    %v290 = vstv %s289
    %v291 = vmul.f32 %v290, %v241
    %v292 = vmul.f32 %v290, %v242
    %v293 = vadd.f32 %v269, %v291
    %v294 = vadd.f32 %v270, %v292
    %s295 = sld [smem:[#allocation2 + $0x16]]
    %v296 = vstv %s295
    %v297 = vmul.f32 %v296, %v241
    %v298 = vmul.f32 %v296, %v242
    %v299 = vadd.f32 %v275, %v297
    %v300 = vadd.f32 %v276, %v298
    %s301 = sld [smem:[#allocation2 + $0x17]]
    %v302 = vstv %s301
    %v303 = vmul.f32 %v302, %v241
    %v304 = vmul.f32 %v302, %v242
    %v305 = vadd.f32 %v281, %v303
    %v306 = vadd.f32 %v282, %v304
    %s307 = sld [smem:[#allocation2 + $0x18]]
    %v308 = vstv %s307
    %v309 = vmul.f32 %v308, %v249
    %v310 = vmul.f32 %v308, %v250
    %v311 = vadd.f32 %v287, %v309
    %v312 = vadd.f32 %v288, %v310
    %s313 = sld [smem:[#allocation2 + $0x19]]
    %v314 = vstv %s313
    %v315 = vmul.f32 %v314, %v249
    %v316 = vmul.f32 %v314, %v250
    %v317 = vadd.f32 %v293, %v315
    %v318 = vadd.f32 %v294, %v316
    %s319 = sld [smem:[#allocation2 + $0x1a]]
    %v320 = vstv %s319
    %v321 = vmul.f32 %v320, %v249
    %v322 = vmul.f32 %v320, %v250
    %v323 = vadd.f32 %v299, %v321
    %v324 = vadd.f32 %v300, %v322
    %s325 = sld [smem:[#allocation2 + $0x1b]]
    %v326 = vstv %s325
    %v327 = vmul.f32 %v326, %v249
    %v328 = vmul.f32 %v326, %v250
    %v329 = vadd.f32 %v305, %v327
    %v330 = vadd.f32 %v306, %v328
    %s331 = sld [smem:[#allocation2 + $0x1c]]
    %v332 = vstv %s331
    %v333 = vmul.f32 %v332, %v257
    %v334 = vmul.f32 %v332, %v258
    %v335 = vadd.f32 %v311, %v333
    %v336 = vadd.f32 %v312, %v334
    %s337 = sld [smem:[#allocation2 + $0x1d]]
    %v338 = vstv %s337
    %v339 = vmul.f32 %v338, %v257
    %v340 = vmul.f32 %v338, %v258
    %v341 = vadd.f32 %v317, %v339
    %v342 = vadd.f32 %v318, %v340
    %s343 = sld [smem:[#allocation2 + $0x1e]]
    %v344 = vstv %s343
    %v345 = vmul.f32 %v344, %v257
    %v346 = vmul.f32 %v344, %v258
    %v347 = vadd.f32 %v323, %v345
    %v348 = vadd.f32 %v324, %v346
    %s349 = sld [smem:[#allocation2 + $0x1f]]
    %v350 = vstv %s349
    %v351 = vmul.f32 %v350, %v257
    %v352 = vmul.f32 %v350, %v258
    %v353 = vadd.f32 %v329, %v351
    %v354 = vadd.f32 %v330, %v352
    %s355 = scalar_lea.vmem %s1, 32
    %v356 = vld [vmem:[%s355] sm:$0xff]
    %v357 = vld [vmem:[%s355 + $0x8] sm:$0xff]
    %358 = vrot.lane.b32.xlu0 %v71, 15
    %v359 = vpop.permute.xlu0 %358
    %360 = vrot.lane.b32.xlu0 %v72, 15
    %v361 = vpop.permute.xlu0 %360
    %vm362 = vcmp.lt.s32.totalorder %v97, 15
    %v363 = vsel %vm362, %v359, %v361
    %v364 = vsel %vm362, %v361, %v359
    %v365 = vmul.f32 %v364, %v356
    %v366 = vmul.f32 %v363, %v357
    %367 = vrot.lane.b32.xlu0 %v74, 15
    %v368 = vpop.permute.xlu0 %367
    %369 = vrot.lane.b32.xlu0 %v75, 15
    %v370 = vpop.permute.xlu0 %369
    %v371 = vsel %vm362, %v368, %v370
    %v372 = vsel %vm362, %v370, %v368
    %v373 = vmul.f32 %v372, %v356
    %v374 = vmul.f32 %v371, %v357
    %375 = vrot.lane.b32.xlu0 %v77, 15
    %v376 = vpop.permute.xlu0 %375
    %377 = vrot.lane.b32.xlu0 %v78, 15
    %v378 = vpop.permute.xlu0 %377
    %v379 = vsel %vm362, %v376, %v378
    %v380 = vsel %vm362, %v378, %v376
    %v381 = vmul.f32 %v380, %v356
    %v382 = vmul.f32 %v379, %v357
    %383 = vrot.lane.b32.xlu0 %v80, 15
    %v384 = vpop.permute.xlu0 %383
    %385 = vrot.lane.b32.xlu0 %v81, 15
    %v386 = vpop.permute.xlu0 %385
    %v387 = vsel %vm362, %v384, %v386
    %v388 = vsel %vm362, %v386, %v384
    %v389 = vmul.f32 %v388, %v356
    %v390 = vmul.f32 %v387, %v357
    %s391 = sld [smem:[#allocation2 + $0x20]]
    %v392 = vstv %s391
    %v393 = vmul.f32 %v392, %v365
    %v394 = vmul.f32 %v392, %v366
    %v395 = vadd.f32 %v335, %v393
    %v396 = vadd.f32 %v336, %v394
    %s397 = sld [smem:[#allocation2 + $0x21]]
    %v398 = vstv %s397
    %v399 = vmul.f32 %v398, %v365
    %v400 = vmul.f32 %v398, %v366
    %v401 = vadd.f32 %v341, %v399
    %v402 = vadd.f32 %v342, %v400
    %s403 = sld [smem:[#allocation2 + $0x22]]
    %v404 = vstv %s403
    %v405 = vmul.f32 %v404, %v365
    %v406 = vmul.f32 %v404, %v366
    %v407 = vadd.f32 %v347, %v405
    %v408 = vadd.f32 %v348, %v406
    %s409 = sld [smem:[#allocation2 + $0x23]]
    %v410 = vstv %s409
    %v411 = vmul.f32 %v410, %v365
    %v412 = vmul.f32 %v410, %v366
    %v413 = vadd.f32 %v353, %v411
    %v414 = vadd.f32 %v354, %v412
    %s415 = sld [smem:[#allocation2 + $0x24]]
    %v416 = vstv %s415
    %v417 = vmul.f32 %v416, %v373
    %v418 = vmul.f32 %v416, %v374
    %v419 = vadd.f32 %v395, %v417
    %v420 = vadd.f32 %v396, %v418
    %s421 = sld [smem:[#allocation2 + $0x25]]
    %v422 = vstv %s421
    %v423 = vmul.f32 %v422, %v373
    %v424 = vmul.f32 %v422, %v374
    %v425 = vadd.f32 %v401, %v423
    %v426 = vadd.f32 %v402, %v424
    %s427 = sld [smem:[#allocation2 + $0x26]]
    %v428 = vstv %s427
    %v429 = vmul.f32 %v428, %v373
    %v430 = vmul.f32 %v428, %v374
    %v431 = vadd.f32 %v407, %v429
    %v432 = vadd.f32 %v408, %v430
    %s433 = sld [smem:[#allocation2 + $0x27]]
    %v434 = vstv %s433
    %v435 = vmul.f32 %v434, %v373
    %v436 = vmul.f32 %v434, %v374
    %v437 = vadd.f32 %v413, %v435
    %v438 = vadd.f32 %v414, %v436
    %s439 = sld [smem:[#allocation2 + $0x28]]
    %v440 = vstv %s439
    %v441 = vmul.f32 %v440, %v381
    %v442 = vmul.f32 %v440, %v382
    %v443 = vadd.f32 %v419, %v441
    %v444 = vadd.f32 %v420, %v442
    %s445 = sld [smem:[#allocation2 + $0x29]]
    %v446 = vstv %s445
    %v447 = vmul.f32 %v446, %v381
    %v448 = vmul.f32 %v446, %v382
    %v449 = vadd.f32 %v425, %v447
    %v450 = vadd.f32 %v426, %v448
    %s451 = sld [smem:[#allocation2 + $0x2a]]
    %v452 = vstv %s451
    %v453 = vmul.f32 %v452, %v381
    %v454 = vmul.f32 %v452, %v382
    %v455 = vadd.f32 %v431, %v453
    %v456 = vadd.f32 %v432, %v454
    %s457 = sld [smem:[#allocation2 + $0x2b]]
    %v458 = vstv %s457
    %v459 = vmul.f32 %v458, %v381
    %v460 = vmul.f32 %v458, %v382
    %v461 = vadd.f32 %v437, %v459
    %v462 = vadd.f32 %v438, %v460
    %s463 = sld [smem:[#allocation2 + $0x2c]]
    %v464 = vstv %s463
    %v465 = vmul.f32 %v464, %v389
    %v466 = vmul.f32 %v464, %v390
    %v467 = vadd.f32 %v443, %v465
    %v468 = vadd.f32 %v444, %v466
    %s469 = sld [smem:[#allocation2 + $0x2d]]
    %v470 = vstv %s469
    %v471 = vmul.f32 %v470, %v389
    %v472 = vmul.f32 %v470, %v390
    %v473 = vadd.f32 %v449, %v471
    %v474 = vadd.f32 %v450, %v472
    %s475 = sld [smem:[#allocation2 + $0x2e]]
    %v476 = vstv %s475
    %v477 = vmul.f32 %v476, %v389
    %v478 = vmul.f32 %v476, %v390
    %v479 = vadd.f32 %v455, %v477
    %v480 = vadd.f32 %v456, %v478
    %s481 = sld [smem:[#allocation2 + $0x2f]]
    %v482 = vstv %s481
    %v483 = vmul.f32 %v482, %v389
    %v484 = vmul.f32 %v482, %v390
    %v485 = vadd.f32 %v461, %v483
    %v486 = vadd.f32 %v462, %v484
    %s487 = scalar_lea.vmem %s1, 48
    %v488 = vld [vmem:[%s487] sm:$0xff]
    %v489 = vld [vmem:[%s487 + $0x8] sm:$0xff]
    %490 = vrot.lane.b32.xlu0 %v71, 1
    %v491 = vpop.permute.xlu0 %490
    %492 = vrot.lane.b32.xlu0 %v72, 1
    %v493 = vpop.permute.xlu0 %492
    %vm494 = vcmp.lt.s32.totalorder %v97, 1
    %v495 = vsel %vm494, %v491, %v493
    %v496 = vsel %vm494, %v493, %v491
    %v497 = vmul.f32 %v496, %v488
    %v498 = vmul.f32 %v495, %v489
    %499 = vrot.lane.b32.xlu0 %v74, 1
    %v500 = vpop.permute.xlu0 %499
    %501 = vrot.lane.b32.xlu0 %v75, 1
    %v502 = vpop.permute.xlu0 %501
    %v503 = vsel %vm494, %v500, %v502
    %v504 = vsel %vm494, %v502, %v500
    %v505 = vmul.f32 %v504, %v488
    %v506 = vmul.f32 %v503, %v489
    %507 = vrot.lane.b32.xlu0 %v77, 1
    %v508 = vpop.permute.xlu0 %507
    %509 = vrot.lane.b32.xlu0 %v78, 1
    %v510 = vpop.permute.xlu0 %509
    %v511 = vsel %vm494, %v508, %v510
    %v512 = vsel %vm494, %v510, %v508
    %v513 = vmul.f32 %v512, %v488
    %v514 = vmul.f32 %v511, %v489
    %515 = vrot.lane.b32.xlu0 %v80, 1
    %v516 = vpop.permute.xlu0 %515
    %517 = vrot.lane.b32.xlu0 %v81, 1
    %v518 = vpop.permute.xlu0 %517
    %v519 = vsel %vm494, %v516, %v518
    %v520 = vsel %vm494, %v518, %v516
    %v521 = vmul.f32 %v520, %v488
    %v522 = vmul.f32 %v519, %v489
    %s523 = sld [smem:[#allocation2 + $0x30]]
    %v524 = vstv %s523
    %v525 = vmul.f32 %v524, %v497
    %v526 = vmul.f32 %v524, %v498
    %v527 = vadd.f32 %v467, %v525
    %v528 = vadd.f32 %v468, %v526
    %s529 = sld [smem:[#allocation2 + $0x31]]
    %v530 = vstv %s529
    %v531 = vmul.f32 %v530, %v497
    %v532 = vmul.f32 %v530, %v498
    %v533 = vadd.f32 %v473, %v531
    %v534 = vadd.f32 %v474, %v532
    %s535 = sld [smem:[#allocation2 + $0x32]]
    %v536 = vstv %s535
    %v537 = vmul.f32 %v536, %v497
    %v538 = vmul.f32 %v536, %v498
    %v539 = vadd.f32 %v479, %v537
    %v540 = vadd.f32 %v480, %v538
    %s541 = sld [smem:[#allocation2 + $0x33]]
    %v542 = vstv %s541
    %v543 = vmul.f32 %v542, %v497
    %v544 = vmul.f32 %v542, %v498
    %v545 = vadd.f32 %v485, %v543
    %v546 = vadd.f32 %v486, %v544
    %s547 = sld [smem:[#allocation2 + $0x34]]
    %v548 = vstv %s547
    %v549 = vmul.f32 %v548, %v505
    %v550 = vmul.f32 %v548, %v506
    %v551 = vadd.f32 %v527, %v549
    %v552 = vadd.f32 %v528, %v550
    %s553 = sld [smem:[#allocation2 + $0x35]]
    %v554 = vstv %s553
    %v555 = vmul.f32 %v554, %v505
    %v556 = vmul.f32 %v554, %v506
    %v557 = vadd.f32 %v533, %v555
    %v558 = vadd.f32 %v534, %v556
    %s559 = sld [smem:[#allocation2 + $0x36]]
    %v560 = vstv %s559
    %v561 = vmul.f32 %v560, %v505
    %v562 = vmul.f32 %v560, %v506
    %v563 = vadd.f32 %v539, %v561
    %v564 = vadd.f32 %v540, %v562
    %s565 = sld [smem:[#allocation2 + $0x37]]
    %v566 = vstv %s565
    %v567 = vmul.f32 %v566, %v505
    %v568 = vmul.f32 %v566, %v506
    %v569 = vadd.f32 %v545, %v567
    %v570 = vadd.f32 %v546, %v568
    %s571 = sld [smem:[#allocation2 + $0x38]]
    %v572 = vstv %s571
    %v573 = vmul.f32 %v572, %v513
    %v574 = vmul.f32 %v572, %v514
    %v575 = vadd.f32 %v551, %v573
    %v576 = vadd.f32 %v552, %v574
    %s577 = sld [smem:[#allocation2 + $0x39]]
    %v578 = vstv %s577
    %v579 = vmul.f32 %v578, %v513
    %v580 = vmul.f32 %v578, %v514
    %v581 = vadd.f32 %v557, %v579
    %v582 = vadd.f32 %v558, %v580
    %s583 = sld [smem:[#allocation2 + $0x3a]]
    %v584 = vstv %s583
    %v585 = vmul.f32 %v584, %v513
    %v586 = vmul.f32 %v584, %v514
    %v587 = vadd.f32 %v563, %v585
    %v588 = vadd.f32 %v564, %v586
    %s589 = sld [smem:[#allocation2 + $0x3b]]
    %v590 = vstv %s589
    %v591 = vmul.f32 %v590, %v513
    %v592 = vmul.f32 %v590, %v514
    %v593 = vadd.f32 %v569, %v591
    %v594 = vadd.f32 %v570, %v592
    %s595 = sld [smem:[#allocation2 + $0x3c]]
    %v596 = vstv %s595
    %v597 = vmul.f32 %v596, %v521
    %v598 = vmul.f32 %v596, %v522
    %v599 = vadd.f32 %v575, %v597
    %v600 = vadd.f32 %v576, %v598
    %s601 = sld [smem:[#allocation2 + $0x3d]]
    %v602 = vstv %s601
    %v603 = vmul.f32 %v602, %v521
    %v604 = vmul.f32 %v602, %v522
    %v605 = vadd.f32 %v581, %v603
    %v606 = vadd.f32 %v582, %v604
    %s607 = sld [smem:[#allocation2 + $0x3e]]
    %v608 = vstv %s607
    %v609 = vmul.f32 %v608, %v521
    %v610 = vmul.f32 %v608, %v522
    %v611 = vadd.f32 %v587, %v609
    %v612 = vadd.f32 %v588, %v610
    %s613 = sld [smem:[#allocation2 + $0x3f]]
    %v614 = vstv %s613
    %v615 = vmul.f32 %v614, %v521
    %v616 = vmul.f32 %v614, %v522
    %v617 = vadd.f32 %v593, %v615
    %v618 = vadd.f32 %v594, %v616
    %s619 = sld [smem:[#allocation2 + $0x40]]
    %v620 = vstv %s619
    %v621 = vmul.f32 %v620, %v71
    %v622 = vmul.f32 %v620, %v72
    %v623 = vadd.f32 %v599, %v621
    %v624 = vadd.f32 %v600, %v622
    %s625 = sld [smem:[#allocation2 + $0x41]]
    %v626 = vstv %s625
    %v627 = vmul.f32 %v626, %v71
    %v628 = vmul.f32 %v626, %v72
    %v629 = vadd.f32 %v605, %v627
    %v630 = vadd.f32 %v606, %v628
    %s631 = sld [smem:[#allocation2 + $0x42]]
    %v632 = vstv %s631
    %v633 = vmul.f32 %v632, %v71
    %v634 = vmul.f32 %v632, %v72
    %v635 = vadd.f32 %v611, %v633
    %v636 = vadd.f32 %v612, %v634
    %s637 = sld [smem:[#allocation2 + $0x43]]
    %v638 = vstv %s637
    %v639 = vmul.f32 %v638, %v71
    %v640 = vmul.f32 %v638, %v72
    %v641 = vadd.f32 %v617, %v639
    %v642 = vadd.f32 %v618, %v640
    %s643 = sld [smem:[#allocation2 + $0x44]]
    %v644 = vstv %s643
    %v645 = vmul.f32 %v644, %v74
    %v646 = vmul.f32 %v644, %v75
    %v647 = vadd.f32 %v623, %v645
    %v648 = vadd.f32 %v624, %v646
    %s649 = sld [smem:[#allocation2 + $0x45]]
    %v650 = vstv %s649
    %v651 = vmul.f32 %v650, %v74
    %v652 = vmul.f32 %v650, %v75
    %v653 = vadd.f32 %v629, %v651
    %v654 = vadd.f32 %v630, %v652
    %s655 = sld [smem:[#allocation2 + $0x46]]
    %v656 = vstv %s655
    %v657 = vmul.f32 %v656, %v74
    %v658 = vmul.f32 %v656, %v75
    %v659 = vadd.f32 %v635, %v657
    %v660 = vadd.f32 %v636, %v658
    %s661 = sld [smem:[#allocation2 + $0x47]]
    %v662 = vstv %s661
    %v663 = vmul.f32 %v662, %v74
    %v664 = vmul.f32 %v662, %v75
    %v665 = vadd.f32 %v641, %v663
    %v666 = vadd.f32 %v642, %v664
    %s667 = sld [smem:[#allocation2 + $0x48]]
    %v668 = vstv %s667
    %v669 = vmul.f32 %v668, %v77
    %v670 = vmul.f32 %v668, %v78
    %v671 = vadd.f32 %v647, %v669
    %v672 = vadd.f32 %v648, %v670
    %s673 = sld [smem:[#allocation2 + $0x49]]
    %v674 = vstv %s673
    %v675 = vmul.f32 %v674, %v77
    %v676 = vmul.f32 %v674, %v78
    %v677 = vadd.f32 %v653, %v675
    %v678 = vadd.f32 %v654, %v676
    %s679 = sld [smem:[#allocation2 + $0x4a]]
    %v680 = vstv %s679
    %v681 = vmul.f32 %v680, %v77
    %v682 = vmul.f32 %v680, %v78
    %v683 = vadd.f32 %v659, %v681
    %v684 = vadd.f32 %v660, %v682
    %s685 = sld [smem:[#allocation2 + $0x4b]]
    %v686 = vstv %s685
    %v687 = vmul.f32 %v686, %v77
    %v688 = vmul.f32 %v686, %v78
    %v689 = vadd.f32 %v665, %v687
    %v690 = vadd.f32 %v666, %v688
    %s691 = sld [smem:[#allocation2 + $0x4c]]
    %v692 = vstv %s691
    %v693 = vmul.f32 %v692, %v80
    %v694 = vmul.f32 %v692, %v81
    %v695 = vadd.f32 %v671, %v693
    %v696 = vadd.f32 %v672, %v694
    %s697 = sld [smem:[#allocation2 + $0x4d]]
    %v698 = vstv %s697
    %v699 = vmul.f32 %v698, %v80
    %v700 = vmul.f32 %v698, %v81
    %v701 = vadd.f32 %v677, %v699
    %v702 = vadd.f32 %v678, %v700
    %s703 = sld [smem:[#allocation2 + $0x4e]]
    %v704 = vstv %s703
    %v705 = vmul.f32 %v704, %v80
    %v706 = vmul.f32 %v704, %v81
    %v707 = vadd.f32 %v683, %v705
    %v708 = vadd.f32 %v684, %v706
    %s709 = sld [smem:[#allocation2 + $0x4f]]
    %v710 = vstv %s709
    %v711 = vmul.f32 %v710, %v80
    %v712 = vmul.f32 %v710, %v81
    %v713 = vadd.f32 %v689, %v711
    %v714 = vadd.f32 %v690, %v712
    %s715 = scalar_lea.vmem %s1, 80
    %v716 = vld [vmem:[%s715] sm:$0xff]
    %v717 = vld [vmem:[%s715 + $0x8] sm:$0xff]
    %718 = vrot.lane.b32.xlu0 %v71, 127
    %v719 = vpop.permute.xlu0 %718
    %720 = vrot.lane.b32.xlu0 %v72, 127
    %v721 = vpop.permute.xlu0 %720
    %vm722 = vcmp.lt.s32.totalorder %v97, 127
    %v723 = vsel %vm722, %v719, %v721
    %v724 = vsel %vm722, %v721, %v719
    %v725 = vmul.f32 %v723, %v716
    %v726 = vmul.f32 %v724, %v717
    %727 = vrot.lane.b32.xlu0 %v74, 127
    %v728 = vpop.permute.xlu0 %727
    %729 = vrot.lane.b32.xlu0 %v75, 127
    %v730 = vpop.permute.xlu0 %729
    %v731 = vsel %vm722, %v728, %v730
    %v732 = vsel %vm722, %v730, %v728
    %v733 = vmul.f32 %v731, %v716
    %v734 = vmul.f32 %v732, %v717
    %735 = vrot.lane.b32.xlu0 %v77, 127
    %v736 = vpop.permute.xlu0 %735
    %737 = vrot.lane.b32.xlu0 %v78, 127
    %v738 = vpop.permute.xlu0 %737
    %v739 = vsel %vm722, %v736, %v738
    %v740 = vsel %vm722, %v738, %v736
    %v741 = vmul.f32 %v739, %v716
    %v742 = vmul.f32 %v740, %v717
    %743 = vrot.lane.b32.xlu0 %v80, 127
    %v744 = vpop.permute.xlu0 %743
    %745 = vrot.lane.b32.xlu0 %v81, 127
    %v746 = vpop.permute.xlu0 %745
    %v747 = vsel %vm722, %v744, %v746
    %v748 = vsel %vm722, %v746, %v744
    %v749 = vmul.f32 %v747, %v716
    %v750 = vmul.f32 %v748, %v717
    %s751 = sld [smem:[#allocation2 + $0x50]]
    %v752 = vstv %s751
    %v753 = vmul.f32 %v752, %v725
    %v754 = vmul.f32 %v752, %v726
    %v755 = vadd.f32 %v695, %v753
    %v756 = vadd.f32 %v696, %v754
    %s757 = sld [smem:[#allocation2 + $0x51]]
    %v758 = vstv %s757
    %v759 = vmul.f32 %v758, %v725
    %v760 = vmul.f32 %v758, %v726
    %v761 = vadd.f32 %v701, %v759
    %v762 = vadd.f32 %v702, %v760
    %s763 = sld [smem:[#allocation2 + $0x52]]
    %v764 = vstv %s763
    %v765 = vmul.f32 %v764, %v725
    %v766 = vmul.f32 %v764, %v726
    %v767 = vadd.f32 %v707, %v765
    %v768 = vadd.f32 %v708, %v766
    %s769 = sld [smem:[#allocation2 + $0x53]]
    %v770 = vstv %s769
    %v771 = vmul.f32 %v770, %v725
    %v772 = vmul.f32 %v770, %v726
    %v773 = vadd.f32 %v713, %v771
    %v774 = vadd.f32 %v714, %v772
    %s775 = sld [smem:[#allocation2 + $0x54]]
    %v776 = vstv %s775
    %v777 = vmul.f32 %v776, %v733
    %v778 = vmul.f32 %v776, %v734
    %v779 = vadd.f32 %v755, %v777
    %v780 = vadd.f32 %v756, %v778
    %s781 = sld [smem:[#allocation2 + $0x55]]
    %v782 = vstv %s781
    %v783 = vmul.f32 %v782, %v733
    %v784 = vmul.f32 %v782, %v734
    %v785 = vadd.f32 %v761, %v783
    %v786 = vadd.f32 %v762, %v784
    %s787 = sld [smem:[#allocation2 + $0x56]]
    %v788 = vstv %s787
    %v789 = vmul.f32 %v788, %v733
    %v790 = vmul.f32 %v788, %v734
    %v791 = vadd.f32 %v767, %v789
    %v792 = vadd.f32 %v768, %v790
    %s793 = sld [smem:[#allocation2 + $0x57]]
    %v794 = vstv %s793
    %v795 = vmul.f32 %v794, %v733
    %v796 = vmul.f32 %v794, %v734
    %v797 = vadd.f32 %v773, %v795
    %v798 = vadd.f32 %v774, %v796
    %s799 = sld [smem:[#allocation2 + $0x58]]
    %v800 = vstv %s799
    %v801 = vmul.f32 %v800, %v741
    %v802 = vmul.f32 %v800, %v742
    %v803 = vadd.f32 %v779, %v801
    %v804 = vadd.f32 %v780, %v802
    %s805 = sld [smem:[#allocation2 + $0x59]]
    %v806 = vstv %s805
    %v807 = vmul.f32 %v806, %v741
    %v808 = vmul.f32 %v806, %v742
    %v809 = vadd.f32 %v785, %v807
    %v810 = vadd.f32 %v786, %v808
    %s811 = sld [smem:[#allocation2 + $0x5a]]
    %v812 = vstv %s811
    %v813 = vmul.f32 %v812, %v741
    %v814 = vmul.f32 %v812, %v742
    %v815 = vadd.f32 %v791, %v813
    %v816 = vadd.f32 %v792, %v814
    %s817 = sld [smem:[#allocation2 + $0x5b]]
    %v818 = vstv %s817
    %v819 = vmul.f32 %v818, %v741
    %v820 = vmul.f32 %v818, %v742
    %v821 = vadd.f32 %v797, %v819
    %v822 = vadd.f32 %v798, %v820
    %s823 = sld [smem:[#allocation2 + $0x5c]]
    %v824 = vstv %s823
    %v825 = vmul.f32 %v824, %v749
    %v826 = vmul.f32 %v824, %v750
    %v827 = vadd.f32 %v803, %v825
    %v828 = vadd.f32 %v804, %v826
    %s829 = sld [smem:[#allocation2 + $0x5d]]
    %v830 = vstv %s829
    %v831 = vmul.f32 %v830, %v749
    %v832 = vmul.f32 %v830, %v750
    %v833 = vadd.f32 %v809, %v831
    %v834 = vadd.f32 %v810, %v832
    %s835 = sld [smem:[#allocation2 + $0x5e]]
    %v836 = vstv %s835
    %v837 = vmul.f32 %v836, %v749
    %v838 = vmul.f32 %v836, %v750
    %v839 = vadd.f32 %v815, %v837
    %v840 = vadd.f32 %v816, %v838
    %s841 = sld [smem:[#allocation2 + $0x5f]]
    %v842 = vstv %s841
    %v843 = vmul.f32 %v842, %v749
    %v844 = vmul.f32 %v842, %v750
    %v845 = vadd.f32 %v821, %v843
    %v846 = vadd.f32 %v822, %v844
    %s847 = scalar_lea.vmem %s1, 96
    %v848 = vld [vmem:[%s847] sm:$0xff]
    %v849 = vld [vmem:[%s847 + $0x8] sm:$0xff]
    %850 = vrot.lane.b32.xlu0 %v71, 113
    %v851 = vpop.permute.xlu0 %850
    %852 = vrot.lane.b32.xlu0 %v72, 113
    %v853 = vpop.permute.xlu0 %852
    %vm854 = vcmp.lt.s32.totalorder %v97, 113
    %v855 = vsel %vm854, %v851, %v853
    %v856 = vsel %vm854, %v853, %v851
    %v857 = vmul.f32 %v855, %v848
    %v858 = vmul.f32 %v856, %v849
    %859 = vrot.lane.b32.xlu0 %v74, 113
    %v860 = vpop.permute.xlu0 %859
    %861 = vrot.lane.b32.xlu0 %v75, 113
    %v862 = vpop.permute.xlu0 %861
    %v863 = vsel %vm854, %v860, %v862
    %v864 = vsel %vm854, %v862, %v860
    %v865 = vmul.f32 %v863, %v848
    %v866 = vmul.f32 %v864, %v849
    %867 = vrot.lane.b32.xlu0 %v77, 113
    %v868 = vpop.permute.xlu0 %867
    %869 = vrot.lane.b32.xlu0 %v78, 113
    %v870 = vpop.permute.xlu0 %869
    %v871 = vsel %vm854, %v868, %v870
    %v872 = vsel %vm854, %v870, %v868
    %v873 = vmul.f32 %v871, %v848
    %v874 = vmul.f32 %v872, %v849
    %875 = vrot.lane.b32.xlu0 %v80, 113
    %v876 = vpop.permute.xlu0 %875
    %877 = vrot.lane.b32.xlu0 %v81, 113
    %v878 = vpop.permute.xlu0 %877
    %v879 = vsel %vm854, %v876, %v878
    %v880 = vsel %vm854, %v878, %v876
    %v881 = vmul.f32 %v879, %v848
    %v882 = vmul.f32 %v880, %v849
    %s883 = sld [smem:[#allocation2 + $0x60]]
    %v884 = vstv %s883
    %v885 = vmul.f32 %v884, %v857
    %v886 = vmul.f32 %v884, %v858
    %v887 = vadd.f32 %v827, %v885
    %v888 = vadd.f32 %v828, %v886
    %s889 = sld [smem:[#allocation2 + $0x61]]
    %v890 = vstv %s889
    %v891 = vmul.f32 %v890, %v857
    %v892 = vmul.f32 %v890, %v858
    %v893 = vadd.f32 %v833, %v891
    %v894 = vadd.f32 %v834, %v892
    %s895 = sld [smem:[#allocation2 + $0x62]]
    %v896 = vstv %s895
    %v897 = vmul.f32 %v896, %v857
    %v898 = vmul.f32 %v896, %v858
    %v899 = vadd.f32 %v839, %v897
    %v900 = vadd.f32 %v840, %v898
    %s901 = sld [smem:[#allocation2 + $0x63]]
    %v902 = vstv %s901
    %v903 = vmul.f32 %v902, %v857
    %v904 = vmul.f32 %v902, %v858
    %v905 = vadd.f32 %v845, %v903
    %v906 = vadd.f32 %v846, %v904
    %s907 = sld [smem:[#allocation2 + $0x64]]
    %v908 = vstv %s907
    %v909 = vmul.f32 %v908, %v865
    %v910 = vmul.f32 %v908, %v866
    %v911 = vadd.f32 %v887, %v909
    %v912 = vadd.f32 %v888, %v910
    %s913 = sld [smem:[#allocation2 + $0x65]]
    %v914 = vstv %s913
    %v915 = vmul.f32 %v914, %v865
    %v916 = vmul.f32 %v914, %v866
    %v917 = vadd.f32 %v893, %v915
    %v918 = vadd.f32 %v894, %v916
    %s919 = sld [smem:[#allocation2 + $0x66]]
    %v920 = vstv %s919
    %v921 = vmul.f32 %v920, %v865
    %v922 = vmul.f32 %v920, %v866
    %v923 = vadd.f32 %v899, %v921
    %v924 = vadd.f32 %v900, %v922
    %s925 = sld [smem:[#allocation2 + $0x67]]
    %v926 = vstv %s925
    %v927 = vmul.f32 %v926, %v865
    %v928 = vmul.f32 %v926, %v866
    %v929 = vadd.f32 %v905, %v927
    %v930 = vadd.f32 %v906, %v928
    %s931 = sld [smem:[#allocation2 + $0x68]]
    %v932 = vstv %s931
    %v933 = vmul.f32 %v932, %v873
    %v934 = vmul.f32 %v932, %v874
    %v935 = vadd.f32 %v911, %v933
    %v936 = vadd.f32 %v912, %v934
    %s937 = sld [smem:[#allocation2 + $0x69]]
    %v938 = vstv %s937
    %v939 = vmul.f32 %v938, %v873
    %v940 = vmul.f32 %v938, %v874
    %v941 = vadd.f32 %v917, %v939
    %v942 = vadd.f32 %v918, %v940
    %s943 = sld [smem:[#allocation2 + $0x6a]]
    %v944 = vstv %s943
    %v945 = vmul.f32 %v944, %v873
    %v946 = vmul.f32 %v944, %v874
    %v947 = vadd.f32 %v923, %v945
    %v948 = vadd.f32 %v924, %v946
    %s949 = sld [smem:[#allocation2 + $0x6b]]
    %v950 = vstv %s949
    %v951 = vmul.f32 %v950, %v873
    %v952 = vmul.f32 %v950, %v874
    %v953 = vadd.f32 %v929, %v951
    %v954 = vadd.f32 %v930, %v952
    %s955 = sld [smem:[#allocation2 + $0x6c]]
    %v956 = vstv %s955
    %v957 = vmul.f32 %v956, %v881
    %v958 = vmul.f32 %v956, %v882
    %v959 = vadd.f32 %v935, %v957
    %v960 = vadd.f32 %v936, %v958
    %s961 = sld [smem:[#allocation2 + $0x6d]]
    %v962 = vstv %s961
    %v963 = vmul.f32 %v962, %v881
    %v964 = vmul.f32 %v962, %v882
    %v965 = vadd.f32 %v941, %v963
    %v966 = vadd.f32 %v942, %v964
    %s967 = sld [smem:[#allocation2 + $0x6e]]
    %v968 = vstv %s967
    %v969 = vmul.f32 %v968, %v881
    %v970 = vmul.f32 %v968, %v882
    %v971 = vadd.f32 %v947, %v969
    %v972 = vadd.f32 %v948, %v970
    %s973 = sld [smem:[#allocation2 + $0x6f]]
    %v974 = vstv %s973
    %v975 = vmul.f32 %v974, %v881
    %v976 = vmul.f32 %v974, %v882
    %v977 = vadd.f32 %v953, %v975
    %v978 = vadd.f32 %v954, %v976
    %s979 = scalar_lea.vmem %s1, 112
    %v980 = vld [vmem:[%s979] sm:$0xff]
    %v981 = vld [vmem:[%s979 + $0x8] sm:$0xff]
    %982 = vrot.lane.b32.xlu0 %v71, 112
    %v983 = vpop.permute.xlu0 %982
    %984 = vrot.lane.b32.xlu0 %v72, 112
    %v985 = vpop.permute.xlu0 %984
    %vm986 = vcmp.lt.s32.totalorder %v97, 112
    %v987 = vsel %vm986, %v983, %v985
    %v988 = vsel %vm986, %v985, %v983
    %v989 = vmul.f32 %v987, %v980
    %v990 = vmul.f32 %v988, %v981
    %991 = vrot.lane.b32.xlu0 %v74, 112
    %v992 = vpop.permute.xlu0 %991
    %993 = vrot.lane.b32.xlu0 %v75, 112
    %v994 = vpop.permute.xlu0 %993
    %v995 = vsel %vm986, %v992, %v994
    %v996 = vsel %vm986, %v994, %v992
    %v997 = vmul.f32 %v995, %v980
    %v998 = vmul.f32 %v996, %v981
    %999 = vrot.lane.b32.xlu0 %v77, 112
    %v1000 = vpop.permute.xlu0 %999
    %1001 = vrot.lane.b32.xlu0 %v78, 112
    %v1002 = vpop.permute.xlu0 %1001
    %v1003 = vsel %vm986, %v1000, %v1002
    %v1004 = vsel %vm986, %v1002, %v1000
    %v1005 = vmul.f32 %v1003, %v980
    %v1006 = vmul.f32 %v1004, %v981
    %1007 = vrot.lane.b32.xlu0 %v80, 112
    %v1008 = vpop.permute.xlu0 %1007
    %1009 = vrot.lane.b32.xlu0 %v81, 112
    %v1010 = vpop.permute.xlu0 %1009
    %v1011 = vsel %vm986, %v1008, %v1010
    %v1012 = vsel %vm986, %v1010, %v1008
    %v1013 = vmul.f32 %v1011, %v980
    %v1014 = vmul.f32 %v1012, %v981
    %s1015 = sld [smem:[#allocation2 + $0x70]]
    %v1016 = vstv %s1015
    %v1017 = vmul.f32 %v1016, %v989
    %v1018 = vmul.f32 %v1016, %v990
    %v1019 = vadd.f32 %v959, %v1017
    %v1020 = vadd.f32 %v960, %v1018
    %s1021 = sld [smem:[#allocation2 + $0x71]]
    %v1022 = vstv %s1021
    %v1023 = vmul.f32 %v1022, %v989
    %v1024 = vmul.f32 %v1022, %v990
    %v1025 = vadd.f32 %v965, %v1023
    %v1026 = vadd.f32 %v966, %v1024
    %s1027 = sld [smem:[#allocation2 + $0x72]]
    %v1028 = vstv %s1027
    %v1029 = vmul.f32 %v1028, %v989
    %v1030 = vmul.f32 %v1028, %v990
    %v1031 = vadd.f32 %v971, %v1029
    %v1032 = vadd.f32 %v972, %v1030
    %s1033 = sld [smem:[#allocation2 + $0x73]]
    %v1034 = vstv %s1033
    %v1035 = vmul.f32 %v1034, %v989
    %v1036 = vmul.f32 %v1034, %v990
    %v1037 = vadd.f32 %v977, %v1035
    %v1038 = vadd.f32 %v978, %v1036
    %s1039 = sld [smem:[#allocation2 + $0x74]]
    %v1040 = vstv %s1039
    %v1041 = vmul.f32 %v1040, %v997
    %v1042 = vmul.f32 %v1040, %v998
    %v1043 = vadd.f32 %v1019, %v1041
    %v1044 = vadd.f32 %v1020, %v1042
    %s1045 = sld [smem:[#allocation2 + $0x75]]
    %v1046 = vstv %s1045
    %v1047 = vmul.f32 %v1046, %v997
    %v1048 = vmul.f32 %v1046, %v998
    %v1049 = vadd.f32 %v1025, %v1047
    %v1050 = vadd.f32 %v1026, %v1048
    %s1051 = sld [smem:[#allocation2 + $0x76]]
    %v1052 = vstv %s1051
    %v1053 = vmul.f32 %v1052, %v997
    %v1054 = vmul.f32 %v1052, %v998
    %v1055 = vadd.f32 %v1031, %v1053
    %v1056 = vadd.f32 %v1032, %v1054
    %s1057 = sld [smem:[#allocation2 + $0x77]]
    %v1058 = vstv %s1057
    %v1059 = vmul.f32 %v1058, %v997
    %v1060 = vmul.f32 %v1058, %v998
    %v1061 = vadd.f32 %v1037, %v1059
    %v1062 = vadd.f32 %v1038, %v1060
    %s1063 = sld [smem:[#allocation2 + $0x78]]
    %v1064 = vstv %s1063
    %v1065 = vmul.f32 %v1064, %v1005
    %v1066 = vmul.f32 %v1064, %v1006
    %v1067 = vadd.f32 %v1043, %v1065
    %v1068 = vadd.f32 %v1044, %v1066
    %s1069 = sld [smem:[#allocation2 + $0x79]]
    %v1070 = vstv %s1069
    %v1071 = vmul.f32 %v1070, %v1005
    %v1072 = vmul.f32 %v1070, %v1006
    %v1073 = vadd.f32 %v1049, %v1071
    %v1074 = vadd.f32 %v1050, %v1072
    %s1075 = sld [smem:[#allocation2 + $0x7a]]
    %v1076 = vstv %s1075
    %v1077 = vmul.f32 %v1076, %v1005
    %v1078 = vmul.f32 %v1076, %v1006
    %v1079 = vadd.f32 %v1055, %v1077
    %v1080 = vadd.f32 %v1056, %v1078
    %s1081 = sld [smem:[#allocation2 + $0x7b]]
    %v1082 = vstv %s1081
    %v1083 = vmul.f32 %v1082, %v1005
    %v1084 = vmul.f32 %v1082, %v1006
    %v1085 = vadd.f32 %v1061, %v1083
    %v1086 = vadd.f32 %v1062, %v1084
    %s1087 = sld [smem:[#allocation2 + $0x7c]]
    %v1088 = vstv %s1087
    %v1089 = vmul.f32 %v1088, %v1013
    %v1090 = vmul.f32 %v1088, %v1014
    %v1091 = vadd.f32 %v1067, %v1089
    %v1092 = vadd.f32 %v1068, %v1090
    %s1093 = sld [smem:[#allocation2 + $0x7d]]
    %v1094 = vstv %s1093
    %v1095 = vmul.f32 %v1094, %v1013
    %v1096 = vmul.f32 %v1094, %v1014
    %v1097 = vadd.f32 %v1073, %v1095
    %v1098 = vadd.f32 %v1074, %v1096
    %s1099 = sld [smem:[#allocation2 + $0x7e]]
    %v1100 = vstv %s1099
    %v1101 = vmul.f32 %v1100, %v1013
    %v1102 = vmul.f32 %v1100, %v1014
    %v1103 = vadd.f32 %v1079, %v1101
    %v1104 = vadd.f32 %v1080, %v1102
    %s1105 = sld [smem:[#allocation2 + $0x7f]]
    %v1106 = vstv %s1105
    %v1107 = vmul.f32 %v1106, %v1013
    %v1108 = vmul.f32 %v1106, %v1014
    %v1109 = vadd.f32 %v1085, %v1107
    %v1110 = vadd.f32 %v1086, %v1108
    %s1111 = scalar_lea.vmem %s1, 128
    %v1112 = vld [vmem:[%s1111] sm:$0xff]
    %v1113 = vld [vmem:[%s1111 + $0x8] sm:$0xff]
    %1114 = vrot.lane.b32.xlu0 %v71, 111
    %v1115 = vpop.permute.xlu0 %1114
    %1116 = vrot.lane.b32.xlu0 %v72, 111
    %v1117 = vpop.permute.xlu0 %1116
    %vm1118 = vcmp.lt.s32.totalorder %v97, 111
    %v1119 = vsel %vm1118, %v1115, %v1117
    %v1120 = vsel %vm1118, %v1117, %v1115
    %v1121 = vmul.f32 %v1119, %v1112
    %v1122 = vmul.f32 %v1120, %v1113
    %1123 = vrot.lane.b32.xlu0 %v74, 111
    %v1124 = vpop.permute.xlu0 %1123
    %1125 = vrot.lane.b32.xlu0 %v75, 111
    %v1126 = vpop.permute.xlu0 %1125
    %v1127 = vsel %vm1118, %v1124, %v1126
    %v1128 = vsel %vm1118, %v1126, %v1124
    %v1129 = vmul.f32 %v1127, %v1112
    %v1130 = vmul.f32 %v1128, %v1113
    %1131 = vrot.lane.b32.xlu0 %v77, 111
    %v1132 = vpop.permute.xlu0 %1131
    %1133 = vrot.lane.b32.xlu0 %v78, 111
    %v1134 = vpop.permute.xlu0 %1133
    %v1135 = vsel %vm1118, %v1132, %v1134
    %v1136 = vsel %vm1118, %v1134, %v1132
    %v1137 = vmul.f32 %v1135, %v1112
    %v1138 = vmul.f32 %v1136, %v1113
    %1139 = vrot.lane.b32.xlu0 %v80, 111
    %v1140 = vpop.permute.xlu0 %1139
    %1141 = vrot.lane.b32.xlu0 %v81, 111
    %v1142 = vpop.permute.xlu0 %1141
    %v1143 = vsel %vm1118, %v1140, %v1142
    %v1144 = vsel %vm1118, %v1142, %v1140
    %v1145 = vmul.f32 %v1143, %v1112
    %v1146 = vmul.f32 %v1144, %v1113
    %s1147 = sld [smem:[#allocation2 + $0x80]]
    %v1148 = vstv %s1147
    %v1149 = vmul.f32 %v1148, %v1121
    %v1150 = vmul.f32 %v1148, %v1122
    %v1151 = vadd.f32 %v1091, %v1149
    %v1152 = vadd.f32 %v1092, %v1150
    %s1153 = sld [smem:[#allocation2 + $0x81]]
    %v1154 = vstv %s1153
    %v1155 = vmul.f32 %v1154, %v1121
    %v1156 = vmul.f32 %v1154, %v1122
    %v1157 = vadd.f32 %v1097, %v1155
    %v1158 = vadd.f32 %v1098, %v1156
    %s1159 = sld [smem:[#allocation2 + $0x82]]
    %v1160 = vstv %s1159
    %v1161 = vmul.f32 %v1160, %v1121
    %v1162 = vmul.f32 %v1160, %v1122
    %v1163 = vadd.f32 %v1103, %v1161
    %v1164 = vadd.f32 %v1104, %v1162
    %s1165 = sld [smem:[#allocation2 + $0x83]]
    %v1166 = vstv %s1165
    %v1167 = vmul.f32 %v1166, %v1121
    %v1168 = vmul.f32 %v1166, %v1122
    %v1169 = vadd.f32 %v1109, %v1167
    %v1170 = vadd.f32 %v1110, %v1168
    %s1171 = sld [smem:[#allocation2 + $0x84]]
    %v1172 = vstv %s1171
    %v1173 = vmul.f32 %v1172, %v1129
    %v1174 = vmul.f32 %v1172, %v1130
    %v1175 = vadd.f32 %v1151, %v1173
    %v1176 = vadd.f32 %v1152, %v1174
    %s1177 = sld [smem:[#allocation2 + $0x85]]
    %v1178 = vstv %s1177
    %v1179 = vmul.f32 %v1178, %v1129
    %v1180 = vmul.f32 %v1178, %v1130
    %v1181 = vadd.f32 %v1157, %v1179
    %v1182 = vadd.f32 %v1158, %v1180
    %s1183 = sld [smem:[#allocation2 + $0x86]]
    %v1184 = vstv %s1183
    %v1185 = vmul.f32 %v1184, %v1129
    %v1186 = vmul.f32 %v1184, %v1130
    %v1187 = vadd.f32 %v1163, %v1185
    %v1188 = vadd.f32 %v1164, %v1186
    %s1189 = sld [smem:[#allocation2 + $0x87]]
    %v1190 = vstv %s1189
    %v1191 = vmul.f32 %v1190, %v1129
    %v1192 = vmul.f32 %v1190, %v1130
    %v1193 = vadd.f32 %v1169, %v1191
    %v1194 = vadd.f32 %v1170, %v1192
    %s1195 = sld [smem:[#allocation2 + $0x88]]
    %v1196 = vstv %s1195
    %v1197 = vmul.f32 %v1196, %v1137
    %v1198 = vmul.f32 %v1196, %v1138
    %v1199 = vadd.f32 %v1175, %v1197
    %v1200 = vadd.f32 %v1176, %v1198
    %s1201 = sld [smem:[#allocation2 + $0x89]]
    %v1202 = vstv %s1201
    %v1203 = vmul.f32 %v1202, %v1137
    %v1204 = vmul.f32 %v1202, %v1138
    %v1205 = vadd.f32 %v1181, %v1203
    %v1206 = vadd.f32 %v1182, %v1204
    %s1207 = sld [smem:[#allocation2 + $0x8a]]
    %v1208 = vstv %s1207
    %v1209 = vmul.f32 %v1208, %v1137
    %v1210 = vmul.f32 %v1208, %v1138
    %v1211 = vadd.f32 %v1187, %v1209
    %v1212 = vadd.f32 %v1188, %v1210
    %s1213 = sld [smem:[#allocation2 + $0x8b]]
    %v1214 = vstv %s1213
    %v1215 = vmul.f32 %v1214, %v1137
    %v1216 = vmul.f32 %v1214, %v1138
    %v1217 = vadd.f32 %v1193, %v1215
    %v1218 = vadd.f32 %v1194, %v1216
    %s1219 = sld [smem:[#allocation2 + $0x8c]]
    %v1220 = vstv %s1219
    %v1221 = vmul.f32 %v1220, %v1145
    %v1222 = vmul.f32 %v1220, %v1146
    %v1223 = vadd.f32 %v1199, %v1221
    %v1224 = vadd.f32 %v1200, %v1222
    %s1225 = sld [smem:[#allocation2 + $0x8d]]
    %v1226 = vstv %s1225
    %v1227 = vmul.f32 %v1226, %v1145
    %v1228 = vmul.f32 %v1226, %v1146
    %v1229 = vadd.f32 %v1205, %v1227
    %v1230 = vadd.f32 %v1206, %v1228
    %s1231 = sld [smem:[#allocation2 + $0x8e]]
    %v1232 = vstv %s1231
    %v1233 = vmul.f32 %v1232, %v1145
    %v1234 = vmul.f32 %v1232, %v1146
    %v1235 = vadd.f32 %v1211, %v1233
    %v1236 = vadd.f32 %v1212, %v1234
    %s1237 = sld [smem:[#allocation2 + $0x8f]]
    %v1238 = vstv %s1237
    %v1239 = vmul.f32 %v1238, %v1145
    %v1240 = vmul.f32 %v1238, %v1146
    %v1241 = vadd.f32 %v1217, %v1239
    %v1242 = vadd.f32 %v1218, %v1240
    %v1243 = vmax.f32 %v1223, 0.0
    %v1244 = vmax.f32 %v1224, 0.0
    %v1245 = vmax.f32 %v1229, 0.0
    %v1246 = vmax.f32 %v1230, 0.0
    %v1247 = vmax.f32 %v1235, 0.0
    %v1248 = vmax.f32 %v1236, 0.0
    %v1249 = vmax.f32 %v1241, 0.0
    %v1250 = vmax.f32 %v1242, 0.0
    %s1251 = sld [smem:[#allocation7]]
    %v1252 = vstv %s1251
    %s1253 = sld [smem:[#allocation7 + $0x1]]
    %v1254 = vstv %s1253
    %s1255 = sld [smem:[#allocation7 + $0x2]]
    %v1256 = vstv %s1255
    %s1257 = sld [smem:[#allocation7 + $0x3]]
    %v1258 = vstv %s1257
    %1259 = vrot.lane.b32.xlu0 %v1243, 17
    %v1260 = vpop.permute.xlu0 %1259
    %1261 = vrot.lane.b32.xlu0 %v1244, 17
    %v1262 = vpop.permute.xlu0 %1261
    %v1263 = vsel %vm98, %v1260, %v1262
    %v1264 = vsel %vm98, %v1262, %v1260
    %v1265 = vmul.f32 %v1264, %v90
    %v1266 = vmul.f32 %v1263, %v91
    %1267 = vrot.lane.b32.xlu0 %v1245, 17
    %v1268 = vpop.permute.xlu0 %1267
    %1269 = vrot.lane.b32.xlu0 %v1246, 17
    %v1270 = vpop.permute.xlu0 %1269
    %v1271 = vsel %vm98, %v1268, %v1270
    %v1272 = vsel %vm98, %v1270, %v1268
    %v1273 = vmul.f32 %v1272, %v90
    %v1274 = vmul.f32 %v1271, %v91
    %1275 = vrot.lane.b32.xlu0 %v1247, 17
    %v1276 = vpop.permute.xlu0 %1275
    %1277 = vrot.lane.b32.xlu0 %v1248, 17
    %v1278 = vpop.permute.xlu0 %1277
    %v1279 = vsel %vm98, %v1276, %v1278
    %v1280 = vsel %vm98, %v1278, %v1276
    %v1281 = vmul.f32 %v1280, %v90
    %v1282 = vmul.f32 %v1279, %v91
    %1283 = vrot.lane.b32.xlu0 %v1249, 17
    %v1284 = vpop.permute.xlu0 %1283
    %1285 = vrot.lane.b32.xlu0 %v1250, 17
    %v1286 = vpop.permute.xlu0 %1285
    %v1287 = vsel %vm98, %v1284, %v1286
    %v1288 = vsel %vm98, %v1286, %v1284
    %v1289 = vmul.f32 %v1288, %v90
    %v1290 = vmul.f32 %v1287, %v91
    %s1291 = sld [smem:[#allocation6]]
    %v1292 = vstv %s1291
    %v1293 = vmul.f32 %v1292, %v1265
    %v1294 = vmul.f32 %v1292, %v1266
    %v1295 = vadd.f32 %v1252, %v1293
    %v1296 = vadd.f32 %v1252, %v1294
    %s1297 = sld [smem:[#allocation6 + $0x1]]
    %v1298 = vstv %s1297
    %v1299 = vmul.f32 %v1298, %v1265
    %v1300 = vmul.f32 %v1298, %v1266
    %v1301 = vadd.f32 %v1254, %v1299
    %v1302 = vadd.f32 %v1254, %v1300
    %s1303 = sld [smem:[#allocation6 + $0x2]]
    %v1304 = vstv %s1303
    %v1305 = vmul.f32 %v1304, %v1265
    %v1306 = vmul.f32 %v1304, %v1266
    %v1307 = vadd.f32 %v1256, %v1305
    %v1308 = vadd.f32 %v1256, %v1306
    %s1309 = sld [smem:[#allocation6 + $0x3]]
    %v1310 = vstv %s1309
    %v1311 = vmul.f32 %v1310, %v1265
    %v1312 = vmul.f32 %v1310, %v1266
    %v1313 = vadd.f32 %v1258, %v1311
    %v1314 = vadd.f32 %v1258, %v1312
    %s1315 = sld [smem:[#allocation6 + $0x4]]
    %v1316 = vstv %s1315
    %v1317 = vmul.f32 %v1316, %v1273
    %v1318 = vmul.f32 %v1316, %v1274
    %v1319 = vadd.f32 %v1295, %v1317
    %v1320 = vadd.f32 %v1296, %v1318
    %s1321 = sld [smem:[#allocation6 + $0x5]]
    %v1322 = vstv %s1321
    %v1323 = vmul.f32 %v1322, %v1273
    %v1324 = vmul.f32 %v1322, %v1274
    %v1325 = vadd.f32 %v1301, %v1323
    %v1326 = vadd.f32 %v1302, %v1324
    %s1327 = sld [smem:[#allocation6 + $0x6]]
    %v1328 = vstv %s1327
    %v1329 = vmul.f32 %v1328, %v1273
    %v1330 = vmul.f32 %v1328, %v1274
    %v1331 = vadd.f32 %v1307, %v1329
    %v1332 = vadd.f32 %v1308, %v1330
    %s1333 = sld [smem:[#allocation6 + $0x7]]
    %v1334 = vstv %s1333
    %v1335 = vmul.f32 %v1334, %v1273
    %v1336 = vmul.f32 %v1334, %v1274
    %v1337 = vadd.f32 %v1313, %v1335
    %v1338 = vadd.f32 %v1314, %v1336
    %s1339 = sld [smem:[#allocation6 + $0x8]]
    %v1340 = vstv %s1339
    %v1341 = vmul.f32 %v1340, %v1281
    %v1342 = vmul.f32 %v1340, %v1282
    %v1343 = vadd.f32 %v1319, %v1341
    %v1344 = vadd.f32 %v1320, %v1342
    %s1345 = sld [smem:[#allocation6 + $0x9]]
    %v1346 = vstv %s1345
    %v1347 = vmul.f32 %v1346, %v1281
    %v1348 = vmul.f32 %v1346, %v1282
    %v1349 = vadd.f32 %v1325, %v1347
    %v1350 = vadd.f32 %v1326, %v1348
    %s1351 = sld [smem:[#allocation6 + $0xa]]
    %v1352 = vstv %s1351
    %v1353 = vmul.f32 %v1352, %v1281
    %v1354 = vmul.f32 %v1352, %v1282
    %v1355 = vadd.f32 %v1331, %v1353
    %v1356 = vadd.f32 %v1332, %v1354
    %s1357 = sld [smem:[#allocation6 + $0xb]]
    %v1358 = vstv %s1357
    %v1359 = vmul.f32 %v1358, %v1281
    %v1360 = vmul.f32 %v1358, %v1282
    %v1361 = vadd.f32 %v1337, %v1359
    %v1362 = vadd.f32 %v1338, %v1360
    %s1363 = sld [smem:[#allocation6 + $0xc]]
    %v1364 = vstv %s1363
    %v1365 = vmul.f32 %v1364, %v1289
    %v1366 = vmul.f32 %v1364, %v1290
    %v1367 = vadd.f32 %v1343, %v1365
    %v1368 = vadd.f32 %v1344, %v1366
    %s1369 = sld [smem:[#allocation6 + $0xd]]
    %v1370 = vstv %s1369
    %v1371 = vmul.f32 %v1370, %v1289
    %v1372 = vmul.f32 %v1370, %v1290
    %v1373 = vadd.f32 %v1349, %v1371
    %v1374 = vadd.f32 %v1350, %v1372
    %s1375 = sld [smem:[#allocation6 + $0xe]]
    %v1376 = vstv %s1375
    %v1377 = vmul.f32 %v1376, %v1289
    %v1378 = vmul.f32 %v1376, %v1290
    %v1379 = vadd.f32 %v1355, %v1377
    %v1380 = vadd.f32 %v1356, %v1378
    %s1381 = sld [smem:[#allocation6 + $0xf]]
    %v1382 = vstv %s1381
    %v1383 = vmul.f32 %v1382, %v1289
    %v1384 = vmul.f32 %v1382, %v1290
    %v1385 = vadd.f32 %v1361, %v1383
    %v1386 = vadd.f32 %v1362, %v1384
    %1387 = vrot.lane.b32.xlu0 %v1243, 16
    %v1388 = vpop.permute.xlu0 %1387
    %1389 = vrot.lane.b32.xlu0 %v1244, 16
    %v1390 = vpop.permute.xlu0 %1389
    %v1391 = vsel %vm230, %v1388, %v1390
    %v1392 = vsel %vm230, %v1390, %v1388
    %v1393 = vmul.f32 %v1392, %v224
    %v1394 = vmul.f32 %v1391, %v225
    %1395 = vrot.lane.b32.xlu0 %v1245, 16
    %v1396 = vpop.permute.xlu0 %1395
    %1397 = vrot.lane.b32.xlu0 %v1246, 16
    %v1398 = vpop.permute.xlu0 %1397
    %v1399 = vsel %vm230, %v1396, %v1398
    %v1400 = vsel %vm230, %v1398, %v1396
    %v1401 = vmul.f32 %v1400, %v224
    %v1402 = vmul.f32 %v1399, %v225
    %1403 = vrot.lane.b32.xlu0 %v1247, 16
    %v1404 = vpop.permute.xlu0 %1403
    %1405 = vrot.lane.b32.xlu0 %v1248, 16
    %v1406 = vpop.permute.xlu0 %1405
    %v1407 = vsel %vm230, %v1404, %v1406
    %v1408 = vsel %vm230, %v1406, %v1404
    %v1409 = vmul.f32 %v1408, %v224
    %v1410 = vmul.f32 %v1407, %v225
    %1411 = vrot.lane.b32.xlu0 %v1249, 16
    %v1412 = vpop.permute.xlu0 %1411
    %1413 = vrot.lane.b32.xlu0 %v1250, 16
    %v1414 = vpop.permute.xlu0 %1413
    %v1415 = vsel %vm230, %v1412, %v1414
    %v1416 = vsel %vm230, %v1414, %v1412
    %v1417 = vmul.f32 %v1416, %v224
    %v1418 = vmul.f32 %v1415, %v225
    %s1419 = sld [smem:[#allocation6 + $0x10]]
    %v1420 = vstv %s1419
    %v1421 = vmul.f32 %v1420, %v1393
    %v1422 = vmul.f32 %v1420, %v1394
    %v1423 = vadd.f32 %v1367, %v1421
    %v1424 = vadd.f32 %v1368, %v1422
    %s1425 = sld [smem:[#allocation6 + $0x11]]
    %v1426 = vstv %s1425
    %v1427 = vmul.f32 %v1426, %v1393
    %v1428 = vmul.f32 %v1426, %v1394
    %v1429 = vadd.f32 %v1373, %v1427
    %v1430 = vadd.f32 %v1374, %v1428
    %s1431 = sld [smem:[#allocation6 + $0x12]]
    %v1432 = vstv %s1431
    %v1433 = vmul.f32 %v1432, %v1393
    %v1434 = vmul.f32 %v1432, %v1394
    %v1435 = vadd.f32 %v1379, %v1433
    %v1436 = vadd.f32 %v1380, %v1434
    %s1437 = sld [smem:[#allocation6 + $0x13]]
    %v1438 = vstv %s1437
    %v1439 = vmul.f32 %v1438, %v1393
    %v1440 = vmul.f32 %v1438, %v1394
    %v1441 = vadd.f32 %v1385, %v1439
    %v1442 = vadd.f32 %v1386, %v1440
    %s1443 = sld [smem:[#allocation6 + $0x14]]
    %v1444 = vstv %s1443
    %v1445 = vmul.f32 %v1444, %v1401
    %v1446 = vmul.f32 %v1444, %v1402
    %v1447 = vadd.f32 %v1423, %v1445
    %v1448 = vadd.f32 %v1424, %v1446
    %s1449 = sld [smem:[#allocation6 + $0x15]]
    %v1450 = vstv %s1449
    %v1451 = vmul.f32 %v1450, %v1401
    %v1452 = vmul.f32 %v1450, %v1402
    %v1453 = vadd.f32 %v1429, %v1451
    %v1454 = vadd.f32 %v1430, %v1452
    %s1455 = sld [smem:[#allocation6 + $0x16]]
    %v1456 = vstv %s1455
    %v1457 = vmul.f32 %v1456, %v1401
    %v1458 = vmul.f32 %v1456, %v1402
    %v1459 = vadd.f32 %v1435, %v1457
    %v1460 = vadd.f32 %v1436, %v1458
    %s1461 = sld [smem:[#allocation6 + $0x17]]
    %v1462 = vstv %s1461
    %v1463 = vmul.f32 %v1462, %v1401
    %v1464 = vmul.f32 %v1462, %v1402
    %v1465 = vadd.f32 %v1441, %v1463
    %v1466 = vadd.f32 %v1442, %v1464
    %s1467 = sld [smem:[#allocation6 + $0x18]]
    %v1468 = vstv %s1467
    %v1469 = vmul.f32 %v1468, %v1409
    %v1470 = vmul.f32 %v1468, %v1410
    %v1471 = vadd.f32 %v1447, %v1469
    %v1472 = vadd.f32 %v1448, %v1470
    %s1473 = sld [smem:[#allocation6 + $0x19]]
    %v1474 = vstv %s1473
    %v1475 = vmul.f32 %v1474, %v1409
    %v1476 = vmul.f32 %v1474, %v1410
    %v1477 = vadd.f32 %v1453, %v1475
    %v1478 = vadd.f32 %v1454, %v1476
    %s1479 = sld [smem:[#allocation6 + $0x1a]]
    %v1480 = vstv %s1479
    %v1481 = vmul.f32 %v1480, %v1409
    %v1482 = vmul.f32 %v1480, %v1410
    %v1483 = vadd.f32 %v1459, %v1481
    %v1484 = vadd.f32 %v1460, %v1482
    %s1485 = sld [smem:[#allocation6 + $0x1b]]
    %v1486 = vstv %s1485
    %v1487 = vmul.f32 %v1486, %v1409
    %v1488 = vmul.f32 %v1486, %v1410
    %v1489 = vadd.f32 %v1465, %v1487
    %v1490 = vadd.f32 %v1466, %v1488
    %s1491 = sld [smem:[#allocation6 + $0x1c]]
    %v1492 = vstv %s1491
    %v1493 = vmul.f32 %v1492, %v1417
    %v1494 = vmul.f32 %v1492, %v1418
    %v1495 = vadd.f32 %v1471, %v1493
    %v1496 = vadd.f32 %v1472, %v1494
    %s1497 = sld [smem:[#allocation6 + $0x1d]]
    %v1498 = vstv %s1497
    %v1499 = vmul.f32 %v1498, %v1417
    %v1500 = vmul.f32 %v1498, %v1418
    %v1501 = vadd.f32 %v1477, %v1499
    %v1502 = vadd.f32 %v1478, %v1500
    %s1503 = sld [smem:[#allocation6 + $0x1e]]
    %v1504 = vstv %s1503
    %v1505 = vmul.f32 %v1504, %v1417
    %v1506 = vmul.f32 %v1504, %v1418
    %v1507 = vadd.f32 %v1483, %v1505
    %v1508 = vadd.f32 %v1484, %v1506
    %s1509 = sld [smem:[#allocation6 + $0x1f]]
    %v1510 = vstv %s1509
    %v1511 = vmul.f32 %v1510, %v1417
    %v1512 = vmul.f32 %v1510, %v1418
    %v1513 = vadd.f32 %v1489, %v1511
    %v1514 = vadd.f32 %v1490, %v1512
    %1515 = vrot.lane.b32.xlu0 %v1243, 15
    %v1516 = vpop.permute.xlu0 %1515
    %1517 = vrot.lane.b32.xlu0 %v1244, 15
    %v1518 = vpop.permute.xlu0 %1517
    %v1519 = vsel %vm362, %v1516, %v1518
    %v1520 = vsel %vm362, %v1518, %v1516
    %v1521 = vmul.f32 %v1520, %v356
    %v1522 = vmul.f32 %v1519, %v357
    %1523 = vrot.lane.b32.xlu0 %v1245, 15
    %v1524 = vpop.permute.xlu0 %1523
    %1525 = vrot.lane.b32.xlu0 %v1246, 15
    %v1526 = vpop.permute.xlu0 %1525
    %v1527 = vsel %vm362, %v1524, %v1526
    %v1528 = vsel %vm362, %v1526, %v1524
    %v1529 = vmul.f32 %v1528, %v356
    %v1530 = vmul.f32 %v1527, %v357
    %1531 = vrot.lane.b32.xlu0 %v1247, 15
    %v1532 = vpop.permute.xlu0 %1531
    %1533 = vrot.lane.b32.xlu0 %v1248, 15
    %v1534 = vpop.permute.xlu0 %1533
    %v1535 = vsel %vm362, %v1532, %v1534
    %v1536 = vsel %vm362, %v1534, %v1532
    %v1537 = vmul.f32 %v1536, %v356
    %v1538 = vmul.f32 %v1535, %v357
    %1539 = vrot.lane.b32.xlu0 %v1249, 15
    %v1540 = vpop.permute.xlu0 %1539
    %1541 = vrot.lane.b32.xlu0 %v1250, 15
    %v1542 = vpop.permute.xlu0 %1541
    %v1543 = vsel %vm362, %v1540, %v1542
    %v1544 = vsel %vm362, %v1542, %v1540
    %v1545 = vmul.f32 %v1544, %v356
    %v1546 = vmul.f32 %v1543, %v357
    %s1547 = sld [smem:[#allocation6 + $0x20]]
    %v1548 = vstv %s1547
    %v1549 = vmul.f32 %v1548, %v1521
    %v1550 = vmul.f32 %v1548, %v1522
    %v1551 = vadd.f32 %v1495, %v1549
    %v1552 = vadd.f32 %v1496, %v1550
    %s1553 = sld [smem:[#allocation6 + $0x21]]
    %v1554 = vstv %s1553
    %v1555 = vmul.f32 %v1554, %v1521
    %v1556 = vmul.f32 %v1554, %v1522
    %v1557 = vadd.f32 %v1501, %v1555
    %v1558 = vadd.f32 %v1502, %v1556
    %s1559 = sld [smem:[#allocation6 + $0x22]]
    %v1560 = vstv %s1559
    %v1561 = vmul.f32 %v1560, %v1521
    %v1562 = vmul.f32 %v1560, %v1522
    %v1563 = vadd.f32 %v1507, %v1561
    %v1564 = vadd.f32 %v1508, %v1562
    %s1565 = sld [smem:[#allocation6 + $0x23]]
    %v1566 = vstv %s1565
    %v1567 = vmul.f32 %v1566, %v1521
    %v1568 = vmul.f32 %v1566, %v1522
    %v1569 = vadd.f32 %v1513, %v1567
    %v1570 = vadd.f32 %v1514, %v1568
    %s1571 = sld [smem:[#allocation6 + $0x24]]
    %v1572 = vstv %s1571
    %v1573 = vmul.f32 %v1572, %v1529
    %v1574 = vmul.f32 %v1572, %v1530
    %v1575 = vadd.f32 %v1551, %v1573
    %v1576 = vadd.f32 %v1552, %v1574
    %s1577 = sld [smem:[#allocation6 + $0x25]]
    %v1578 = vstv %s1577
    %v1579 = vmul.f32 %v1578, %v1529
    %v1580 = vmul.f32 %v1578, %v1530
    %v1581 = vadd.f32 %v1557, %v1579
    %v1582 = vadd.f32 %v1558, %v1580
    %s1583 = sld [smem:[#allocation6 + $0x26]]
    %v1584 = vstv %s1583
    %v1585 = vmul.f32 %v1584, %v1529
    %v1586 = vmul.f32 %v1584, %v1530
    %v1587 = vadd.f32 %v1563, %v1585
    %v1588 = vadd.f32 %v1564, %v1586
    %s1589 = sld [smem:[#allocation6 + $0x27]]
    %v1590 = vstv %s1589
    %v1591 = vmul.f32 %v1590, %v1529
    %v1592 = vmul.f32 %v1590, %v1530
    %v1593 = vadd.f32 %v1569, %v1591
    %v1594 = vadd.f32 %v1570, %v1592
    %s1595 = sld [smem:[#allocation6 + $0x28]]
    %v1596 = vstv %s1595
    %v1597 = vmul.f32 %v1596, %v1537
    %v1598 = vmul.f32 %v1596, %v1538
    %v1599 = vadd.f32 %v1575, %v1597
    %v1600 = vadd.f32 %v1576, %v1598
    %s1601 = sld [smem:[#allocation6 + $0x29]]
    %v1602 = vstv %s1601
    %v1603 = vmul.f32 %v1602, %v1537
    %v1604 = vmul.f32 %v1602, %v1538
    %v1605 = vadd.f32 %v1581, %v1603
    %v1606 = vadd.f32 %v1582, %v1604
    %s1607 = sld [smem:[#allocation6 + $0x2a]]
    %v1608 = vstv %s1607
    %v1609 = vmul.f32 %v1608, %v1537
    %v1610 = vmul.f32 %v1608, %v1538
    %v1611 = vadd.f32 %v1587, %v1609
    %v1612 = vadd.f32 %v1588, %v1610
    %s1613 = sld [smem:[#allocation6 + $0x2b]]
    %v1614 = vstv %s1613
    %v1615 = vmul.f32 %v1614, %v1537
    %v1616 = vmul.f32 %v1614, %v1538
    %v1617 = vadd.f32 %v1593, %v1615
    %v1618 = vadd.f32 %v1594, %v1616
    %s1619 = sld [smem:[#allocation6 + $0x2c]]
    %v1620 = vstv %s1619
    %v1621 = vmul.f32 %v1620, %v1545
    %v1622 = vmul.f32 %v1620, %v1546
    %v1623 = vadd.f32 %v1599, %v1621
    %v1624 = vadd.f32 %v1600, %v1622
    %s1625 = sld [smem:[#allocation6 + $0x2d]]
    %v1626 = vstv %s1625
    %v1627 = vmul.f32 %v1626, %v1545
    %v1628 = vmul.f32 %v1626, %v1546
    %v1629 = vadd.f32 %v1605, %v1627
    %v1630 = vadd.f32 %v1606, %v1628
    %s1631 = sld [smem:[#allocation6 + $0x2e]]
    %v1632 = vstv %s1631
    %v1633 = vmul.f32 %v1632, %v1545
    %v1634 = vmul.f32 %v1632, %v1546
    %v1635 = vadd.f32 %v1611, %v1633
    %v1636 = vadd.f32 %v1612, %v1634
    %s1637 = sld [smem:[#allocation6 + $0x2f]]
    %v1638 = vstv %s1637
    %v1639 = vmul.f32 %v1638, %v1545
    %v1640 = vmul.f32 %v1638, %v1546
    %v1641 = vadd.f32 %v1617, %v1639
    %v1642 = vadd.f32 %v1618, %v1640
    %1643 = vrot.lane.b32.xlu0 %v1243, 1
    %v1644 = vpop.permute.xlu0 %1643
    %1645 = vrot.lane.b32.xlu0 %v1244, 1
    %v1646 = vpop.permute.xlu0 %1645
    %v1647 = vsel %vm494, %v1644, %v1646
    %v1648 = vsel %vm494, %v1646, %v1644
    %v1649 = vmul.f32 %v1648, %v488
    %v1650 = vmul.f32 %v1647, %v489
    %1651 = vrot.lane.b32.xlu0 %v1245, 1
    %v1652 = vpop.permute.xlu0 %1651
    %1653 = vrot.lane.b32.xlu0 %v1246, 1
    %v1654 = vpop.permute.xlu0 %1653
    %v1655 = vsel %vm494, %v1652, %v1654
    %v1656 = vsel %vm494, %v1654, %v1652
    %v1657 = vmul.f32 %v1656, %v488
    %v1658 = vmul.f32 %v1655, %v489
    %1659 = vrot.lane.b32.xlu0 %v1247, 1
    %v1660 = vpop.permute.xlu0 %1659
    %1661 = vrot.lane.b32.xlu0 %v1248, 1
    %v1662 = vpop.permute.xlu0 %1661
    %v1663 = vsel %vm494, %v1660, %v1662
    %v1664 = vsel %vm494, %v1662, %v1660
    %v1665 = vmul.f32 %v1664, %v488
    %v1666 = vmul.f32 %v1663, %v489
    %1667 = vrot.lane.b32.xlu0 %v1249, 1
    %v1668 = vpop.permute.xlu0 %1667
    %1669 = vrot.lane.b32.xlu0 %v1250, 1
    %v1670 = vpop.permute.xlu0 %1669
    %v1671 = vsel %vm494, %v1668, %v1670
    %v1672 = vsel %vm494, %v1670, %v1668
    %v1673 = vmul.f32 %v1672, %v488
    %v1674 = vmul.f32 %v1671, %v489
    %s1675 = sld [smem:[#allocation6 + $0x30]]
    %v1676 = vstv %s1675
    %v1677 = vmul.f32 %v1676, %v1649
    %v1678 = vmul.f32 %v1676, %v1650
    %v1679 = vadd.f32 %v1623, %v1677
    %v1680 = vadd.f32 %v1624, %v1678
    %s1681 = sld [smem:[#allocation6 + $0x31]]
    %v1682 = vstv %s1681
    %v1683 = vmul.f32 %v1682, %v1649
    %v1684 = vmul.f32 %v1682, %v1650
    %v1685 = vadd.f32 %v1629, %v1683
    %v1686 = vadd.f32 %v1630, %v1684
    %s1687 = sld [smem:[#allocation6 + $0x32]]
    %v1688 = vstv %s1687
    %v1689 = vmul.f32 %v1688, %v1649
    %v1690 = vmul.f32 %v1688, %v1650
    %v1691 = vadd.f32 %v1635, %v1689
    %v1692 = vadd.f32 %v1636, %v1690
    %s1693 = sld [smem:[#allocation6 + $0x33]]
    %v1694 = vstv %s1693
    %v1695 = vmul.f32 %v1694, %v1649
    %v1696 = vmul.f32 %v1694, %v1650
    %v1697 = vadd.f32 %v1641, %v1695
    %v1698 = vadd.f32 %v1642, %v1696
    %s1699 = sld [smem:[#allocation6 + $0x34]]
    %v1700 = vstv %s1699
    %v1701 = vmul.f32 %v1700, %v1657
    %v1702 = vmul.f32 %v1700, %v1658
    %v1703 = vadd.f32 %v1679, %v1701
    %v1704 = vadd.f32 %v1680, %v1702
    %s1705 = sld [smem:[#allocation6 + $0x35]]
    %v1706 = vstv %s1705
    %v1707 = vmul.f32 %v1706, %v1657
    %v1708 = vmul.f32 %v1706, %v1658
    %v1709 = vadd.f32 %v1685, %v1707
    %v1710 = vadd.f32 %v1686, %v1708
    %s1711 = sld [smem:[#allocation6 + $0x36]]
    %v1712 = vstv %s1711
    %v1713 = vmul.f32 %v1712, %v1657
    %v1714 = vmul.f32 %v1712, %v1658
    %v1715 = vadd.f32 %v1691, %v1713
    %v1716 = vadd.f32 %v1692, %v1714
    %s1717 = sld [smem:[#allocation6 + $0x37]]
    %v1718 = vstv %s1717
    %v1719 = vmul.f32 %v1718, %v1657
    %v1720 = vmul.f32 %v1718, %v1658
    %v1721 = vadd.f32 %v1697, %v1719
    %v1722 = vadd.f32 %v1698, %v1720
    %s1723 = sld [smem:[#allocation6 + $0x38]]
    %v1724 = vstv %s1723
    %v1725 = vmul.f32 %v1724, %v1665
    %v1726 = vmul.f32 %v1724, %v1666
    %v1727 = vadd.f32 %v1703, %v1725
    %v1728 = vadd.f32 %v1704, %v1726
    %s1729 = sld [smem:[#allocation6 + $0x39]]
    %v1730 = vstv %s1729
    %v1731 = vmul.f32 %v1730, %v1665
    %v1732 = vmul.f32 %v1730, %v1666
    %v1733 = vadd.f32 %v1709, %v1731
    %v1734 = vadd.f32 %v1710, %v1732
    %s1735 = sld [smem:[#allocation6 + $0x3a]]
    %v1736 = vstv %s1735
    %v1737 = vmul.f32 %v1736, %v1665
    %v1738 = vmul.f32 %v1736, %v1666
    %v1739 = vadd.f32 %v1715, %v1737
    %v1740 = vadd.f32 %v1716, %v1738
    %s1741 = sld [smem:[#allocation6 + $0x3b]]
    %v1742 = vstv %s1741
    %v1743 = vmul.f32 %v1742, %v1665
    %v1744 = vmul.f32 %v1742, %v1666
    %v1745 = vadd.f32 %v1721, %v1743
    %v1746 = vadd.f32 %v1722, %v1744
    %s1747 = sld [smem:[#allocation6 + $0x3c]]
    %v1748 = vstv %s1747
    %v1749 = vmul.f32 %v1748, %v1673
    %v1750 = vmul.f32 %v1748, %v1674
    %v1751 = vadd.f32 %v1727, %v1749
    %v1752 = vadd.f32 %v1728, %v1750
    %s1753 = sld [smem:[#allocation6 + $0x3d]]
    %v1754 = vstv %s1753
    %v1755 = vmul.f32 %v1754, %v1673
    %v1756 = vmul.f32 %v1754, %v1674
    %v1757 = vadd.f32 %v1733, %v1755
    %v1758 = vadd.f32 %v1734, %v1756
    %s1759 = sld [smem:[#allocation6 + $0x3e]]
    %v1760 = vstv %s1759
    %v1761 = vmul.f32 %v1760, %v1673
    %v1762 = vmul.f32 %v1760, %v1674
    %v1763 = vadd.f32 %v1739, %v1761
    %v1764 = vadd.f32 %v1740, %v1762
    %s1765 = sld [smem:[#allocation6 + $0x3f]]
    %v1766 = vstv %s1765
    %v1767 = vmul.f32 %v1766, %v1673
    %v1768 = vmul.f32 %v1766, %v1674
    %v1769 = vadd.f32 %v1745, %v1767
    %v1770 = vadd.f32 %v1746, %v1768
    %s1771 = sld [smem:[#allocation6 + $0x40]]
    %v1772 = vstv %s1771
    %v1773 = vmul.f32 %v1772, %v1243
    %v1774 = vmul.f32 %v1772, %v1244
    %v1775 = vadd.f32 %v1751, %v1773
    %v1776 = vadd.f32 %v1752, %v1774
    %s1777 = sld [smem:[#allocation6 + $0x41]]
    %v1778 = vstv %s1777
    %v1779 = vmul.f32 %v1778, %v1243
    %v1780 = vmul.f32 %v1778, %v1244
    %v1781 = vadd.f32 %v1757, %v1779
    %v1782 = vadd.f32 %v1758, %v1780
    %s1783 = sld [smem:[#allocation6 + $0x42]]
    %v1784 = vstv %s1783
    %v1785 = vmul.f32 %v1784, %v1243
    %v1786 = vmul.f32 %v1784, %v1244
    %v1787 = vadd.f32 %v1763, %v1785
    %v1788 = vadd.f32 %v1764, %v1786
    %s1789 = sld [smem:[#allocation6 + $0x43]]
    %v1790 = vstv %s1789
    %v1791 = vmul.f32 %v1790, %v1243
    %v1792 = vmul.f32 %v1790, %v1244
    %v1793 = vadd.f32 %v1769, %v1791
    %v1794 = vadd.f32 %v1770, %v1792
    %s1795 = sld [smem:[#allocation6 + $0x44]]
    %v1796 = vstv %s1795
    %v1797 = vmul.f32 %v1796, %v1245
    %v1798 = vmul.f32 %v1796, %v1246
    %v1799 = vadd.f32 %v1775, %v1797
    %v1800 = vadd.f32 %v1776, %v1798
    %s1801 = sld [smem:[#allocation6 + $0x45]]
    %v1802 = vstv %s1801
    %v1803 = vmul.f32 %v1802, %v1245
    %v1804 = vmul.f32 %v1802, %v1246
    %v1805 = vadd.f32 %v1781, %v1803
    %v1806 = vadd.f32 %v1782, %v1804
    %s1807 = sld [smem:[#allocation6 + $0x46]]
    %v1808 = vstv %s1807
    %v1809 = vmul.f32 %v1808, %v1245
    %v1810 = vmul.f32 %v1808, %v1246
    %v1811 = vadd.f32 %v1787, %v1809
    %v1812 = vadd.f32 %v1788, %v1810
    %s1813 = sld [smem:[#allocation6 + $0x47]]
    %v1814 = vstv %s1813
    %v1815 = vmul.f32 %v1814, %v1245
    %v1816 = vmul.f32 %v1814, %v1246
    %v1817 = vadd.f32 %v1793, %v1815
    %v1818 = vadd.f32 %v1794, %v1816
    %s1819 = sld [smem:[#allocation6 + $0x48]]
    %v1820 = vstv %s1819
    %v1821 = vmul.f32 %v1820, %v1247
    %v1822 = vmul.f32 %v1820, %v1248
    %v1823 = vadd.f32 %v1799, %v1821
    %v1824 = vadd.f32 %v1800, %v1822
    %s1825 = sld [smem:[#allocation6 + $0x49]]
    %v1826 = vstv %s1825
    %v1827 = vmul.f32 %v1826, %v1247
    %v1828 = vmul.f32 %v1826, %v1248
    %v1829 = vadd.f32 %v1805, %v1827
    %v1830 = vadd.f32 %v1806, %v1828
    %s1831 = sld [smem:[#allocation6 + $0x4a]]
    %v1832 = vstv %s1831
    %v1833 = vmul.f32 %v1832, %v1247
    %v1834 = vmul.f32 %v1832, %v1248
    %v1835 = vadd.f32 %v1811, %v1833
    %v1836 = vadd.f32 %v1812, %v1834
    %s1837 = sld [smem:[#allocation6 + $0x4b]]
    %v1838 = vstv %s1837
    %v1839 = vmul.f32 %v1838, %v1247
    %v1840 = vmul.f32 %v1838, %v1248
    %v1841 = vadd.f32 %v1817, %v1839
    %v1842 = vadd.f32 %v1818, %v1840
    %s1843 = sld [smem:[#allocation6 + $0x4c]]
    %v1844 = vstv %s1843
    %v1845 = vmul.f32 %v1844, %v1249
    %v1846 = vmul.f32 %v1844, %v1250
    %v1847 = vadd.f32 %v1823, %v1845
    %v1848 = vadd.f32 %v1824, %v1846
    %s1849 = sld [smem:[#allocation6 + $0x4d]]
    %v1850 = vstv %s1849
    %v1851 = vmul.f32 %v1850, %v1249
    %v1852 = vmul.f32 %v1850, %v1250
    %v1853 = vadd.f32 %v1829, %v1851
    %v1854 = vadd.f32 %v1830, %v1852
    %s1855 = sld [smem:[#allocation6 + $0x4e]]
    %v1856 = vstv %s1855
    %v1857 = vmul.f32 %v1856, %v1249
    %v1858 = vmul.f32 %v1856, %v1250
    %v1859 = vadd.f32 %v1835, %v1857
    %v1860 = vadd.f32 %v1836, %v1858
    %s1861 = sld [smem:[#allocation6 + $0x4f]]
    %v1862 = vstv %s1861
    %v1863 = vmul.f32 %v1862, %v1249
    %v1864 = vmul.f32 %v1862, %v1250
    %v1865 = vadd.f32 %v1841, %v1863
    %v1866 = vadd.f32 %v1842, %v1864
    %1867 = vrot.lane.b32.xlu0 %v1243, 127
    %v1868 = vpop.permute.xlu0 %1867
    %1869 = vrot.lane.b32.xlu0 %v1244, 127
    %v1870 = vpop.permute.xlu0 %1869
    %v1871 = vsel %vm722, %v1868, %v1870
    %v1872 = vsel %vm722, %v1870, %v1868
    %v1873 = vmul.f32 %v1871, %v716
    %v1874 = vmul.f32 %v1872, %v717
    %1875 = vrot.lane.b32.xlu0 %v1245, 127
    %v1876 = vpop.permute.xlu0 %1875
    %1877 = vrot.lane.b32.xlu0 %v1246, 127
    %v1878 = vpop.permute.xlu0 %1877
    %v1879 = vsel %vm722, %v1876, %v1878
    %v1880 = vsel %vm722, %v1878, %v1876
    %v1881 = vmul.f32 %v1879, %v716
    %v1882 = vmul.f32 %v1880, %v717
    %1883 = vrot.lane.b32.xlu0 %v1247, 127
    %v1884 = vpop.permute.xlu0 %1883
    %1885 = vrot.lane.b32.xlu0 %v1248, 127
    %v1886 = vpop.permute.xlu0 %1885
    %v1887 = vsel %vm722, %v1884, %v1886
    %v1888 = vsel %vm722, %v1886, %v1884
    %v1889 = vmul.f32 %v1887, %v716
    %v1890 = vmul.f32 %v1888, %v717
    %1891 = vrot.lane.b32.xlu0 %v1249, 127
    %v1892 = vpop.permute.xlu0 %1891
    %1893 = vrot.lane.b32.xlu0 %v1250, 127
    %v1894 = vpop.permute.xlu0 %1893
    %v1895 = vsel %vm722, %v1892, %v1894
    %v1896 = vsel %vm722, %v1894, %v1892
    %v1897 = vmul.f32 %v1895, %v716
    %v1898 = vmul.f32 %v1896, %v717
    %s1899 = sld [smem:[#allocation6 + $0x50]]
    %v1900 = vstv %s1899
    %v1901 = vmul.f32 %v1900, %v1873
    %v1902 = vmul.f32 %v1900, %v1874
    %v1903 = vadd.f32 %v1847, %v1901
    %v1904 = vadd.f32 %v1848, %v1902
    %s1905 = sld [smem:[#allocation6 + $0x51]]
    %v1906 = vstv %s1905
    %v1907 = vmul.f32 %v1906, %v1873
    %v1908 = vmul.f32 %v1906, %v1874
    %v1909 = vadd.f32 %v1853, %v1907
    %v1910 = vadd.f32 %v1854, %v1908
    %s1911 = sld [smem:[#allocation6 + $0x52]]
    %v1912 = vstv %s1911
    %v1913 = vmul.f32 %v1912, %v1873
    %v1914 = vmul.f32 %v1912, %v1874
    %v1915 = vadd.f32 %v1859, %v1913
    %v1916 = vadd.f32 %v1860, %v1914
    %s1917 = sld [smem:[#allocation6 + $0x53]]
    %v1918 = vstv %s1917
    %v1919 = vmul.f32 %v1918, %v1873
    %v1920 = vmul.f32 %v1918, %v1874
    %v1921 = vadd.f32 %v1865, %v1919
    %v1922 = vadd.f32 %v1866, %v1920
    %s1923 = sld [smem:[#allocation6 + $0x54]]
    %v1924 = vstv %s1923
    %v1925 = vmul.f32 %v1924, %v1881
    %v1926 = vmul.f32 %v1924, %v1882
    %v1927 = vadd.f32 %v1903, %v1925
    %v1928 = vadd.f32 %v1904, %v1926
    %s1929 = sld [smem:[#allocation6 + $0x55]]
    %v1930 = vstv %s1929
    %v1931 = vmul.f32 %v1930, %v1881
    %v1932 = vmul.f32 %v1930, %v1882
    %v1933 = vadd.f32 %v1909, %v1931
    %v1934 = vadd.f32 %v1910, %v1932
    %s1935 = sld [smem:[#allocation6 + $0x56]]
    %v1936 = vstv %s1935
    %v1937 = vmul.f32 %v1936, %v1881
    %v1938 = vmul.f32 %v1936, %v1882
    %v1939 = vadd.f32 %v1915, %v1937
    %v1940 = vadd.f32 %v1916, %v1938
    %s1941 = sld [smem:[#allocation6 + $0x57]]
    %v1942 = vstv %s1941
    %v1943 = vmul.f32 %v1942, %v1881
    %v1944 = vmul.f32 %v1942, %v1882
    %v1945 = vadd.f32 %v1921, %v1943
    %v1946 = vadd.f32 %v1922, %v1944
    %s1947 = sld [smem:[#allocation6 + $0x58]]
    %v1948 = vstv %s1947
    %v1949 = vmul.f32 %v1948, %v1889
    %v1950 = vmul.f32 %v1948, %v1890
    %v1951 = vadd.f32 %v1927, %v1949
    %v1952 = vadd.f32 %v1928, %v1950
    %s1953 = sld [smem:[#allocation6 + $0x59]]
    %v1954 = vstv %s1953
    %v1955 = vmul.f32 %v1954, %v1889
    %v1956 = vmul.f32 %v1954, %v1890
    %v1957 = vadd.f32 %v1933, %v1955
    %v1958 = vadd.f32 %v1934, %v1956
    %s1959 = sld [smem:[#allocation6 + $0x5a]]
    %v1960 = vstv %s1959
    %v1961 = vmul.f32 %v1960, %v1889
    %v1962 = vmul.f32 %v1960, %v1890
    %v1963 = vadd.f32 %v1939, %v1961
    %v1964 = vadd.f32 %v1940, %v1962
    %s1965 = sld [smem:[#allocation6 + $0x5b]]
    %v1966 = vstv %s1965
    %v1967 = vmul.f32 %v1966, %v1889
    %v1968 = vmul.f32 %v1966, %v1890
    %v1969 = vadd.f32 %v1945, %v1967
    %v1970 = vadd.f32 %v1946, %v1968
    %s1971 = sld [smem:[#allocation6 + $0x5c]]
    %v1972 = vstv %s1971
    %v1973 = vmul.f32 %v1972, %v1897
    %v1974 = vmul.f32 %v1972, %v1898
    %v1975 = vadd.f32 %v1951, %v1973
    %v1976 = vadd.f32 %v1952, %v1974
    %s1977 = sld [smem:[#allocation6 + $0x5d]]
    %v1978 = vstv %s1977
    %v1979 = vmul.f32 %v1978, %v1897
    %v1980 = vmul.f32 %v1978, %v1898
    %v1981 = vadd.f32 %v1957, %v1979
    %v1982 = vadd.f32 %v1958, %v1980
    %s1983 = sld [smem:[#allocation6 + $0x5e]]
    %v1984 = vstv %s1983
    %v1985 = vmul.f32 %v1984, %v1897
    %v1986 = vmul.f32 %v1984, %v1898
    %v1987 = vadd.f32 %v1963, %v1985
    %v1988 = vadd.f32 %v1964, %v1986
    %s1989 = sld [smem:[#allocation6 + $0x5f]]
    %v1990 = vstv %s1989
    %v1991 = vmul.f32 %v1990, %v1897
    %v1992 = vmul.f32 %v1990, %v1898
    %v1993 = vadd.f32 %v1969, %v1991
    %v1994 = vadd.f32 %v1970, %v1992
    %1995 = vrot.lane.b32.xlu0 %v1243, 113
    %v1996 = vpop.permute.xlu0 %1995
    %1997 = vrot.lane.b32.xlu0 %v1244, 113
    %v1998 = vpop.permute.xlu0 %1997
    %v1999 = vsel %vm854, %v1996, %v1998
    %v2000 = vsel %vm854, %v1998, %v1996
    %v2001 = vmul.f32 %v1999, %v848
    %v2002 = vmul.f32 %v2000, %v849
    %2003 = vrot.lane.b32.xlu0 %v1245, 113
    %v2004 = vpop.permute.xlu0 %2003
    %2005 = vrot.lane.b32.xlu0 %v1246, 113
    %v2006 = vpop.permute.xlu0 %2005
    %v2007 = vsel %vm854, %v2004, %v2006
    %v2008 = vsel %vm854, %v2006, %v2004
    %v2009 = vmul.f32 %v2007, %v848
    %v2010 = vmul.f32 %v2008, %v849
    %2011 = vrot.lane.b32.xlu0 %v1247, 113
    %v2012 = vpop.permute.xlu0 %2011
    %2013 = vrot.lane.b32.xlu0 %v1248, 113
    %v2014 = vpop.permute.xlu0 %2013
    %v2015 = vsel %vm854, %v2012, %v2014
    %v2016 = vsel %vm854, %v2014, %v2012
    %v2017 = vmul.f32 %v2015, %v848
    %v2018 = vmul.f32 %v2016, %v849
    %2019 = vrot.lane.b32.xlu0 %v1249, 113
    %v2020 = vpop.permute.xlu0 %2019
    %2021 = vrot.lane.b32.xlu0 %v1250, 113
    %v2022 = vpop.permute.xlu0 %2021
    %v2023 = vsel %vm854, %v2020, %v2022
    %v2024 = vsel %vm854, %v2022, %v2020
    %v2025 = vmul.f32 %v2023, %v848
    %v2026 = vmul.f32 %v2024, %v849
    %s2027 = sld [smem:[#allocation6 + $0x60]]
    %v2028 = vstv %s2027
    %v2029 = vmul.f32 %v2028, %v2001
    %v2030 = vmul.f32 %v2028, %v2002
    %v2031 = vadd.f32 %v1975, %v2029
    %v2032 = vadd.f32 %v1976, %v2030
    %s2033 = sld [smem:[#allocation6 + $0x61]]
    %v2034 = vstv %s2033
    %v2035 = vmul.f32 %v2034, %v2001
    %v2036 = vmul.f32 %v2034, %v2002
    %v2037 = vadd.f32 %v1981, %v2035
    %v2038 = vadd.f32 %v1982, %v2036
    %s2039 = sld [smem:[#allocation6 + $0x62]]
    %v2040 = vstv %s2039
    %v2041 = vmul.f32 %v2040, %v2001
    %v2042 = vmul.f32 %v2040, %v2002
    %v2043 = vadd.f32 %v1987, %v2041
    %v2044 = vadd.f32 %v1988, %v2042
    %s2045 = sld [smem:[#allocation6 + $0x63]]
    %v2046 = vstv %s2045
    %v2047 = vmul.f32 %v2046, %v2001
    %v2048 = vmul.f32 %v2046, %v2002
    %v2049 = vadd.f32 %v1993, %v2047
    %v2050 = vadd.f32 %v1994, %v2048
    %s2051 = sld [smem:[#allocation6 + $0x64]]
    %v2052 = vstv %s2051
    %v2053 = vmul.f32 %v2052, %v2009
    %v2054 = vmul.f32 %v2052, %v2010
    %v2055 = vadd.f32 %v2031, %v2053
    %v2056 = vadd.f32 %v2032, %v2054
    %s2057 = sld [smem:[#allocation6 + $0x65]]
    %v2058 = vstv %s2057
    %v2059 = vmul.f32 %v2058, %v2009
    %v2060 = vmul.f32 %v2058, %v2010
    %v2061 = vadd.f32 %v2037, %v2059
    %v2062 = vadd.f32 %v2038, %v2060
    %s2063 = sld [smem:[#allocation6 + $0x66]]
    %v2064 = vstv %s2063
    %v2065 = vmul.f32 %v2064, %v2009
    %v2066 = vmul.f32 %v2064, %v2010
    %v2067 = vadd.f32 %v2043, %v2065
    %v2068 = vadd.f32 %v2044, %v2066
    %s2069 = sld [smem:[#allocation6 + $0x67]]
    %v2070 = vstv %s2069
    %v2071 = vmul.f32 %v2070, %v2009
    %v2072 = vmul.f32 %v2070, %v2010
    %v2073 = vadd.f32 %v2049, %v2071
    %v2074 = vadd.f32 %v2050, %v2072
    %s2075 = sld [smem:[#allocation6 + $0x68]]
    %v2076 = vstv %s2075
    %v2077 = vmul.f32 %v2076, %v2017
    %v2078 = vmul.f32 %v2076, %v2018
    %v2079 = vadd.f32 %v2055, %v2077
    %v2080 = vadd.f32 %v2056, %v2078
    %s2081 = sld [smem:[#allocation6 + $0x69]]
    %v2082 = vstv %s2081
    %v2083 = vmul.f32 %v2082, %v2017
    %v2084 = vmul.f32 %v2082, %v2018
    %v2085 = vadd.f32 %v2061, %v2083
    %v2086 = vadd.f32 %v2062, %v2084
    %s2087 = sld [smem:[#allocation6 + $0x6a]]
    %v2088 = vstv %s2087
    %v2089 = vmul.f32 %v2088, %v2017
    %v2090 = vmul.f32 %v2088, %v2018
    %v2091 = vadd.f32 %v2067, %v2089
    %v2092 = vadd.f32 %v2068, %v2090
    %s2093 = sld [smem:[#allocation6 + $0x6b]]
    %v2094 = vstv %s2093
    %v2095 = vmul.f32 %v2094, %v2017
    %v2096 = vmul.f32 %v2094, %v2018
    %v2097 = vadd.f32 %v2073, %v2095
    %v2098 = vadd.f32 %v2074, %v2096
    %s2099 = sld [smem:[#allocation6 + $0x6c]]
    %v2100 = vstv %s2099
    %v2101 = vmul.f32 %v2100, %v2025
    %v2102 = vmul.f32 %v2100, %v2026
    %v2103 = vadd.f32 %v2079, %v2101
    %v2104 = vadd.f32 %v2080, %v2102
    %s2105 = sld [smem:[#allocation6 + $0x6d]]
    %v2106 = vstv %s2105
    %v2107 = vmul.f32 %v2106, %v2025
    %v2108 = vmul.f32 %v2106, %v2026
    %v2109 = vadd.f32 %v2085, %v2107
    %v2110 = vadd.f32 %v2086, %v2108
    %s2111 = sld [smem:[#allocation6 + $0x6e]]
    %v2112 = vstv %s2111
    %v2113 = vmul.f32 %v2112, %v2025
    %v2114 = vmul.f32 %v2112, %v2026
    %v2115 = vadd.f32 %v2091, %v2113
    %v2116 = vadd.f32 %v2092, %v2114
    %s2117 = sld [smem:[#allocation6 + $0x6f]]
    %v2118 = vstv %s2117
    %v2119 = vmul.f32 %v2118, %v2025
    %v2120 = vmul.f32 %v2118, %v2026
    %v2121 = vadd.f32 %v2097, %v2119
    %v2122 = vadd.f32 %v2098, %v2120
    %2123 = vrot.lane.b32.xlu0 %v1243, 112
    %v2124 = vpop.permute.xlu0 %2123
    %2125 = vrot.lane.b32.xlu0 %v1244, 112
    %v2126 = vpop.permute.xlu0 %2125
    %v2127 = vsel %vm986, %v2124, %v2126
    %v2128 = vsel %vm986, %v2126, %v2124
    %v2129 = vmul.f32 %v2127, %v980
    %v2130 = vmul.f32 %v2128, %v981
    %2131 = vrot.lane.b32.xlu0 %v1245, 112
    %v2132 = vpop.permute.xlu0 %2131
    %2133 = vrot.lane.b32.xlu0 %v1246, 112
    %v2134 = vpop.permute.xlu0 %2133
    %v2135 = vsel %vm986, %v2132, %v2134
    %v2136 = vsel %vm986, %v2134, %v2132
    %v2137 = vmul.f32 %v2135, %v980
    %v2138 = vmul.f32 %v2136, %v981
    %2139 = vrot.lane.b32.xlu0 %v1247, 112
    %v2140 = vpop.permute.xlu0 %2139
    %2141 = vrot.lane.b32.xlu0 %v1248, 112
    %v2142 = vpop.permute.xlu0 %2141
    %v2143 = vsel %vm986, %v2140, %v2142
    %v2144 = vsel %vm986, %v2142, %v2140
    %v2145 = vmul.f32 %v2143, %v980
    %v2146 = vmul.f32 %v2144, %v981
    %2147 = vrot.lane.b32.xlu0 %v1249, 112
    %v2148 = vpop.permute.xlu0 %2147
    %2149 = vrot.lane.b32.xlu0 %v1250, 112
    %v2150 = vpop.permute.xlu0 %2149
    %v2151 = vsel %vm986, %v2148, %v2150
    %v2152 = vsel %vm986, %v2150, %v2148
    %v2153 = vmul.f32 %v2151, %v980
    %v2154 = vmul.f32 %v2152, %v981
    %s2155 = sld [smem:[#allocation6 + $0x70]]
    %v2156 = vstv %s2155
    %v2157 = vmul.f32 %v2156, %v2129
    %v2158 = vmul.f32 %v2156, %v2130
    %v2159 = vadd.f32 %v2103, %v2157
    %v2160 = vadd.f32 %v2104, %v2158
    %s2161 = sld [smem:[#allocation6 + $0x71]]
    %v2162 = vstv %s2161
    %v2163 = vmul.f32 %v2162, %v2129
    %v2164 = vmul.f32 %v2162, %v2130
    %v2165 = vadd.f32 %v2109, %v2163
    %v2166 = vadd.f32 %v2110, %v2164
    %s2167 = sld [smem:[#allocation6 + $0x72]]
    %v2168 = vstv %s2167
    %v2169 = vmul.f32 %v2168, %v2129
    %v2170 = vmul.f32 %v2168, %v2130
    %v2171 = vadd.f32 %v2115, %v2169
    %v2172 = vadd.f32 %v2116, %v2170
    %s2173 = sld [smem:[#allocation6 + $0x73]]
    %v2174 = vstv %s2173
    %v2175 = vmul.f32 %v2174, %v2129
    %v2176 = vmul.f32 %v2174, %v2130
    %v2177 = vadd.f32 %v2121, %v2175
    %v2178 = vadd.f32 %v2122, %v2176
    %s2179 = sld [smem:[#allocation6 + $0x74]]
    %v2180 = vstv %s2179
    %v2181 = vmul.f32 %v2180, %v2137
    %v2182 = vmul.f32 %v2180, %v2138
    %v2183 = vadd.f32 %v2159, %v2181
    %v2184 = vadd.f32 %v2160, %v2182
    %s2185 = sld [smem:[#allocation6 + $0x75]]
    %v2186 = vstv %s2185
    %v2187 = vmul.f32 %v2186, %v2137
    %v2188 = vmul.f32 %v2186, %v2138
    %v2189 = vadd.f32 %v2165, %v2187
    %v2190 = vadd.f32 %v2166, %v2188
    %s2191 = sld [smem:[#allocation6 + $0x76]]
    %v2192 = vstv %s2191
    %v2193 = vmul.f32 %v2192, %v2137
    %v2194 = vmul.f32 %v2192, %v2138
    %v2195 = vadd.f32 %v2171, %v2193
    %v2196 = vadd.f32 %v2172, %v2194
    %s2197 = sld [smem:[#allocation6 + $0x77]]
    %v2198 = vstv %s2197
    %v2199 = vmul.f32 %v2198, %v2137
    %v2200 = vmul.f32 %v2198, %v2138
    %v2201 = vadd.f32 %v2177, %v2199
    %v2202 = vadd.f32 %v2178, %v2200
    %s2203 = sld [smem:[#allocation6 + $0x78]]
    %v2204 = vstv %s2203
    %v2205 = vmul.f32 %v2204, %v2145
    %v2206 = vmul.f32 %v2204, %v2146
    %v2207 = vadd.f32 %v2183, %v2205
    %v2208 = vadd.f32 %v2184, %v2206
    %s2209 = sld [smem:[#allocation6 + $0x79]]
    %v2210 = vstv %s2209
    %v2211 = vmul.f32 %v2210, %v2145
    %v2212 = vmul.f32 %v2210, %v2146
    %v2213 = vadd.f32 %v2189, %v2211
    %v2214 = vadd.f32 %v2190, %v2212
    %s2215 = sld [smem:[#allocation6 + $0x7a]]
    %v2216 = vstv %s2215
    %v2217 = vmul.f32 %v2216, %v2145
    %v2218 = vmul.f32 %v2216, %v2146
    %v2219 = vadd.f32 %v2195, %v2217
    %v2220 = vadd.f32 %v2196, %v2218
    %s2221 = sld [smem:[#allocation6 + $0x7b]]
    %v2222 = vstv %s2221
    %v2223 = vmul.f32 %v2222, %v2145
    %v2224 = vmul.f32 %v2222, %v2146
    %v2225 = vadd.f32 %v2201, %v2223
    %v2226 = vadd.f32 %v2202, %v2224
    %s2227 = sld [smem:[#allocation6 + $0x7c]]
    %v2228 = vstv %s2227
    %v2229 = vmul.f32 %v2228, %v2153
    %v2230 = vmul.f32 %v2228, %v2154
    %v2231 = vadd.f32 %v2207, %v2229
    %v2232 = vadd.f32 %v2208, %v2230
    %s2233 = sld [smem:[#allocation6 + $0x7d]]
    %v2234 = vstv %s2233
    %v2235 = vmul.f32 %v2234, %v2153
    %v2236 = vmul.f32 %v2234, %v2154
    %v2237 = vadd.f32 %v2213, %v2235
    %v2238 = vadd.f32 %v2214, %v2236
    %s2239 = sld [smem:[#allocation6 + $0x7e]]
    %v2240 = vstv %s2239
    %v2241 = vmul.f32 %v2240, %v2153
    %v2242 = vmul.f32 %v2240, %v2154
    %v2243 = vadd.f32 %v2219, %v2241
    %v2244 = vadd.f32 %v2220, %v2242
    %s2245 = sld [smem:[#allocation6 + $0x7f]]
    %v2246 = vstv %s2245
    %v2247 = vmul.f32 %v2246, %v2153
    %v2248 = vmul.f32 %v2246, %v2154
    %v2249 = vadd.f32 %v2225, %v2247
    %v2250 = vadd.f32 %v2226, %v2248
    %2251 = vrot.lane.b32.xlu0 %v1243, 111
    %v2252 = vpop.permute.xlu0 %2251
    %2253 = vrot.lane.b32.xlu0 %v1244, 111
    %v2254 = vpop.permute.xlu0 %2253
    %v2255 = vsel %vm1118, %v2252, %v2254
    %v2256 = vsel %vm1118, %v2254, %v2252
    %v2257 = vmul.f32 %v2255, %v1112
    %v2258 = vmul.f32 %v2256, %v1113
    %2259 = vrot.lane.b32.xlu0 %v1245, 111
    %v2260 = vpop.permute.xlu0 %2259
    %2261 = vrot.lane.b32.xlu0 %v1246, 111
    %v2262 = vpop.permute.xlu0 %2261
    %v2263 = vsel %vm1118, %v2260, %v2262
    %v2264 = vsel %vm1118, %v2262, %v2260
    %v2265 = vmul.f32 %v2263, %v1112
    %v2266 = vmul.f32 %v2264, %v1113
    %2267 = vrot.lane.b32.xlu0 %v1247, 111
    %v2268 = vpop.permute.xlu0 %2267
    %2269 = vrot.lane.b32.xlu0 %v1248, 111
    %v2270 = vpop.permute.xlu0 %2269
    %v2271 = vsel %vm1118, %v2268, %v2270
    %v2272 = vsel %vm1118, %v2270, %v2268
    %v2273 = vmul.f32 %v2271, %v1112
    %v2274 = vmul.f32 %v2272, %v1113
    %2275 = vrot.lane.b32.xlu0 %v1249, 111
    %v2276 = vpop.permute.xlu0 %2275
    %2277 = vrot.lane.b32.xlu0 %v1250, 111
    %v2278 = vpop.permute.xlu0 %2277
    %v2279 = vsel %vm1118, %v2276, %v2278
    %v2280 = vsel %vm1118, %v2278, %v2276
    %v2281 = vmul.f32 %v2279, %v1112
    %v2282 = vmul.f32 %v2280, %v1113
    %s2283 = sld [smem:[#allocation6 + $0x80]]
    %v2284 = vstv %s2283
    %v2285 = vmul.f32 %v2284, %v2257
    %v2286 = vmul.f32 %v2284, %v2258
    %v2287 = vadd.f32 %v2231, %v2285
    %v2288 = vadd.f32 %v2232, %v2286
    %s2289 = sld [smem:[#allocation6 + $0x81]]
    %v2290 = vstv %s2289
    %v2291 = vmul.f32 %v2290, %v2257
    %v2292 = vmul.f32 %v2290, %v2258
    %v2293 = vadd.f32 %v2237, %v2291
    %v2294 = vadd.f32 %v2238, %v2292
    %s2295 = sld [smem:[#allocation6 + $0x82]]
    %v2296 = vstv %s2295
    %v2297 = vmul.f32 %v2296, %v2257
    %v2298 = vmul.f32 %v2296, %v2258
    %v2299 = vadd.f32 %v2243, %v2297
    %v2300 = vadd.f32 %v2244, %v2298
    %s2301 = sld [smem:[#allocation6 + $0x83]]
    %v2302 = vstv %s2301
    %v2303 = vmul.f32 %v2302, %v2257
    %v2304 = vmul.f32 %v2302, %v2258
    %v2305 = vadd.f32 %v2249, %v2303
    %v2306 = vadd.f32 %v2250, %v2304
    %s2307 = sld [smem:[#allocation6 + $0x84]]
    %v2308 = vstv %s2307
    %v2309 = vmul.f32 %v2308, %v2265
    %v2310 = vmul.f32 %v2308, %v2266
    %v2311 = vadd.f32 %v2287, %v2309
    %v2312 = vadd.f32 %v2288, %v2310
    %s2313 = sld [smem:[#allocation6 + $0x85]]
    %v2314 = vstv %s2313
    %v2315 = vmul.f32 %v2314, %v2265
    %v2316 = vmul.f32 %v2314, %v2266
    %v2317 = vadd.f32 %v2293, %v2315
    %v2318 = vadd.f32 %v2294, %v2316
    %s2319 = sld [smem:[#allocation6 + $0x86]]
    %v2320 = vstv %s2319
    %v2321 = vmul.f32 %v2320, %v2265
    %v2322 = vmul.f32 %v2320, %v2266
    %v2323 = vadd.f32 %v2299, %v2321
    %v2324 = vadd.f32 %v2300, %v2322
    %s2325 = sld [smem:[#allocation6 + $0x87]]
    %v2326 = vstv %s2325
    %v2327 = vmul.f32 %v2326, %v2265
    %v2328 = vmul.f32 %v2326, %v2266
    %v2329 = vadd.f32 %v2305, %v2327
    %v2330 = vadd.f32 %v2306, %v2328
    %s2331 = sld [smem:[#allocation6 + $0x88]]
    %v2332 = vstv %s2331
    %v2333 = vmul.f32 %v2332, %v2273
    %v2334 = vmul.f32 %v2332, %v2274
    %v2335 = vadd.f32 %v2311, %v2333
    %v2336 = vadd.f32 %v2312, %v2334
    %s2337 = sld [smem:[#allocation6 + $0x89]]
    %v2338 = vstv %s2337
    %v2339 = vmul.f32 %v2338, %v2273
    %v2340 = vmul.f32 %v2338, %v2274
    %v2341 = vadd.f32 %v2317, %v2339
    %v2342 = vadd.f32 %v2318, %v2340
    %s2343 = sld [smem:[#allocation6 + $0x8a]]
    %v2344 = vstv %s2343
    %v2345 = vmul.f32 %v2344, %v2273
    %v2346 = vmul.f32 %v2344, %v2274
    %v2347 = vadd.f32 %v2323, %v2345
    %v2348 = vadd.f32 %v2324, %v2346
    %s2349 = sld [smem:[#allocation6 + $0x8b]]
    %v2350 = vstv %s2349
    %v2351 = vmul.f32 %v2350, %v2273
    %v2352 = vmul.f32 %v2350, %v2274
    %v2353 = vadd.f32 %v2329, %v2351
    %v2354 = vadd.f32 %v2330, %v2352
    %s2355 = sld [smem:[#allocation6 + $0x8c]]
    %v2356 = vstv %s2355
    %v2357 = vmul.f32 %v2356, %v2281
    %v2358 = vmul.f32 %v2356, %v2282
    %v2359 = vadd.f32 %v2335, %v2357
    %v2360 = vadd.f32 %v2336, %v2358
    %s2361 = sld [smem:[#allocation6 + $0x8d]]
    %v2362 = vstv %s2361
    %v2363 = vmul.f32 %v2362, %v2281
    %v2364 = vmul.f32 %v2362, %v2282
    %v2365 = vadd.f32 %v2341, %v2363
    %v2366 = vadd.f32 %v2342, %v2364
    %s2367 = sld [smem:[#allocation6 + $0x8e]]
    %v2368 = vstv %s2367
    %v2369 = vmul.f32 %v2368, %v2281
    %v2370 = vmul.f32 %v2368, %v2282
    %v2371 = vadd.f32 %v2347, %v2369
    %v2372 = vadd.f32 %v2348, %v2370
    %s2373 = sld [smem:[#allocation6 + $0x8f]]
    %v2374 = vstv %s2373
    %v2375 = vmul.f32 %v2374, %v2281
    %v2376 = vmul.f32 %v2374, %v2282
    %v2377 = vadd.f32 %v2353, %v2375
    %v2378 = vadd.f32 %v2354, %v2376
    %v2379 = vadd.f32 %v71, %v2359
    %v2380 = vadd.f32 %v72, %v2360
    %v2381 = vmax.f32 %v2379, 0.0
    %v2382 = vmax.f32 %v2380, 0.0
    %2383 = vst [vmem:[%s6] sm:$0xff] %v2381
    %2384 = vst [vmem:[%s6 + $0x8] sm:$0xff] %v2382
    %v2385 = vld [vmem:[%s73] sm:$0xff]
    %v2386 = vld [vmem:[%s73 + $0x8] sm:$0xff]
    %v2387 = vadd.f32 %v2385, %v2365
    %v2388 = vadd.f32 %v2386, %v2366
    %v2389 = vmax.f32 %v2387, 0.0
    %v2390 = vmax.f32 %v2388, 0.0
    %s2391 = scalar_lea.vmem %s6, 16
    %2392 = vst [vmem:[%s2391] sm:$0xff] %v2389
    %2393 = vst [vmem:[%s2391 + $0x8] sm:$0xff] %v2390
    %v2394 = vld [vmem:[%s76] sm:$0xff]
    %v2395 = vld [vmem:[%s76 + $0x8] sm:$0xff]
    %v2396 = vadd.f32 %v2394, %v2371
    %v2397 = vadd.f32 %v2395, %v2372
    %v2398 = vmax.f32 %v2396, 0.0
    %v2399 = vmax.f32 %v2397, 0.0
    %s2400 = scalar_lea.vmem %s6, 32
    %2401 = vst [vmem:[%s2400] sm:$0xff] %v2398
    %2402 = vst [vmem:[%s2400 + $0x8] sm:$0xff] %v2399
    %v2403 = vld [vmem:[%s79] sm:$0xff]
    %v2404 = vld [vmem:[%s79 + $0x8] sm:$0xff]
    %v2405 = vadd.f32 %v2403, %v2377
    %v2406 = vadd.f32 %v2404, %v2378
    %v2407 = vmax.f32 %v2405, 0.0
    %v2408 = vmax.f32 %v2406, 0.0
    %s2409 = scalar_lea.vmem %s6, 48
    %2410 = vst [vmem:[%s2409] sm:$0xff] %v2407
    %2411 = vst [vmem:[%s2409 + $0x8] sm:$0xff] %v2408
    // Predicated region
    $region42: #{resblock_pallas.1} parent=1 // pred_check
      _
    $region43: #{resblock_pallas.1} parent=1 // pred_check_branch
      %2413 = sbr.rel (0) target = $region45
    $region44: #{resblock_pallas.1} parent=1 // pred_region
      _
    $region45: #{resblock_pallas.1} parent=1 // pred_fallthru
      _
    // Predicated region
    $region46: #{resblock_pallas.1} parent=1 // pred_check
      _
    $region47: #{resblock_pallas.1} parent=1 // pred_check_branch
      %2415 = sbr.rel (0) target = $region49
    $region48: #{resblock_pallas.1} parent=1 // pred_region
      _
    $region49: #{resblock_pallas.1} parent=1 // pred_fallthru
      _
    %2416 = vsyncpa [#allocation3], 1
    %2417 = vsyncpa [#allocation5], 1
    %2418 = vsyncpa [#allocation8], 1

</llo_original>
